<compile_context>
chip_gen: v7x
topology: tpu7x:2x2x1
jax: 0.10.0
libtpu: 0.0.40
codegen_flags: <defaults>
</compile_context>

<pallas_src>
import jax
import jax.numpy as jnp
import numpy as np
from jax.experimental import pallas as pl
from jax.experimental.pallas import tpu as pltpu

_SQRT2_INV = 0.7071067811865476
_LN_EPS = 1e-6
_LANE = 128


def _round_up(n, m):
    return ((n + m - 1) // m) * m


def _erf(x):
    # Numerical-Recipes erfc rational approximation (max abs err ~1.2e-7).
    a = jnp.abs(x)
    t = pl.reciprocal(1.0 + 0.5 * a, approx=True)     # EUP slot
    poly = -1.26551223 + t * (1.00002368 + t * (0.37409196 + t * (0.09678418 +
           t * (-0.18628806 + t * (0.27886807 + t * (-1.13520398 + t * (1.48851587 +
           t * (-0.82215223 + t * 0.17087277))))))))
    erfc = t * jnp.exp(-a * a + poly)
    return jnp.where(x >= 0.0, 1.0 - erfc, erfc - 1.0)


def _gelu_exact(x):
    # nn.GELU() default = exact (erf) form; heavier on the VALU.
    return 0.5 * x * (1.0 + _erf(x * _SQRT2_INV))


def _gelu_tanh(x):
    # tanh-form GELU: the transcendental runs on the EUP slot, off the VALU.
    return 0.5 * x * (1.0 + jnp.tanh(0.7978845608028654 * (x + 0.044715 * x * x * x)))


def _choose_config(H, W, K, P, Cp, hip, ccp, row_tile):
    """Pick the row-band height, x residency strategy and VMEM limit."""
    NM = 2 * hip + ccp
    LW = RW = 8
    Ws = LW + W + RW
    try:
        cap = int(pltpu.get_tpu_info().vmem_capacity_bytes)
        if cap < 16 * 1024 * 1024:
            cap = 64 * 1024 * 1024
    except Exception:
        cap = 64 * 1024 * 1024            # conservative: v7x physical VMEM / core
    budget = int(cap * 0.70)

    def est_bytes(TH, x_in_vmem):
        THP = TH + 2 * P
        w = 2 * (Cp * NM * 2 + Cp * ccp * 2 + hip * Cp * 2 + ccp * Cp * 2
                 + K * K * ccp * 4 + (NM + 3 * ccp + 3 * Cp) * 4)
        x = 2 * (H + 2 * P) * W * Cp * 4 if x_in_vmem else THP * W * Cp * 4
        o = 2 * TH * W * Cp * 4
        scr = THP * Ws * ccp * 4 + TH * W * ccp * 4
        inter = (THP * W * (Cp * 6 + ccp * 4)
                 + TH * W * (NM * 4 + hip * 6 + ccp * 6 + Cp * 6))
        return w + x + o + scr + int(1.3 * inter)

    # bigger row bands on 128 MiB parts (v5e/v6e), tighter on 64 MiB (v7x)
    max_pix = 4096 if cap >= 96 * 1024 * 1024 else 2048

    if row_tile is not None:
        TH = int(row_tile)
        assert H % TH == 0, "row_tile must divide H"
    else:
        divisors = [t for t in range(1, H + 1) if H % t == 0]
        cand = [t for t in divisors
                if t * W <= max_pix and est_bytes(t, False) <= budget]
        TH = max(cand) if cand else min(divisors)

    x_in_vmem = est_bytes(TH, True) <= budget
    vmem_limit = int(min(cap * 0.9,
                         max(2 * est_bytes(TH, x_in_vmem), 32 * 1024 * 1024)))
    return TH, x_in_vmem, vmem_limit


def gated_cnn_block(x_nchw, full_params, row_tile=None, x_in_hbm=None,
                    approximate_gelu=True):
    """x_nchw: (B, C, H, W) float32 (PyTorch layout). Returns (B, C, H, W)."""
    gamma, beta, w1, b1, convw, convb, w2, b2, hidden, cc = full_params
    B, C, H, W = x_nchw.shape
    K = convw.shape[0]
    P = K // 2
    hi = hidden - cc
    assert hi >= 1 and cc >= 1
    assert W % 8 == 0, "W must be a multiple of 8"

    # ---- lane-friendly padded sizes ----
    Cp = _round_up(C, _LANE)
    hip = _round_up(hi, _LANE)
    ccp = _round_up(cc, _LANE)
    NM = 2 * hip + ccp                       # fc1 "main" columns: [g_i | g_c | i]

    # ---- conv scratch geometry: sublane-aligned interior ----
    LW = 8
    RW = 8
    Ws = LW + W + RW

    # ---- tiling / residency decisions ----
    TH, x_block_in_vmem, vmem_limit = _choose_config(H, W, K, P, Cp, hip, ccp, row_tile)
    if x_in_hbm is not None:
        x_block_in_vmem = not x_in_hbm
    NR = H // TH
    THP = TH + 2 * P

    gelu = _gelu_tanh if approximate_gelu else _gelu_exact

    # ---- host-side weight packing / zero padding (once per call) ----
    f32 = jnp.float32
    bf16 = jnp.bfloat16
    gammaf = jnp.zeros((1, Cp), f32).at[0, :C].set(gamma.reshape(-1))
    betaf = jnp.zeros((1, Cp), f32).at[0, :C].set(beta.reshape(-1))

    b1v = b1.reshape(-1)
    w1m = jnp.zeros((Cp, NM), f32)
    w1m = w1m.at[:C, 0:hi].set(w1[:, 0:hi])                                   # g_i
    w1m = w1m.at[:C, hip:hip + cc].set(w1[:, hi:hidden])                      # g_c
    w1m = w1m.at[:C, hip + ccp:hip + ccp + hi].set(w1[:, hidden:hidden + hi]) # i
    b1m = jnp.zeros((1, NM), f32)
    b1m = b1m.at[0, 0:hi].set(b1v[0:hi])
    b1m = b1m.at[0, hip:hip + cc].set(b1v[hi:hidden])
    b1m = b1m.at[0, hip + ccp:hip + ccp + hi].set(b1v[hidden:hidden + hi])

    w1c = jnp.zeros((Cp, ccp), f32).at[:C, :cc].set(w1[:, hidden + hi:])      # c
    b1c = jnp.zeros((1, ccp), f32).at[0, :cc].set(b1v[hidden + hi:])

    convwf = jnp.zeros((K, K, ccp), f32).at[:, :, :cc].set(convw)
    convbf = jnp.zeros((1, ccp), f32).at[0, :cc].set(convb.reshape(-1))

    w2i = jnp.zeros((hip, Cp), f32).at[:hi, :C].set(w2[0:hi, :])
    w2c = jnp.zeros((ccp, Cp), f32).at[:cc, :C].set(w2[hi:hidden, :])
    b2f = jnp.zeros((1, Cp), f32).at[0, :C].set(b2.reshape(-1))

    # bf16 weights at the MXU input; f32 accumulation inside the kernel.
    w1m = w1m.astype(bf16)
    w1c = w1c.astype(bf16)
    w2i = w2i.astype(bf16)
    w2c = w2c.astype(bf16)

    # ---- input: NCHW -> NHWC, channel pad to Cp, P zero rows top/bottom ----
    x_nhwc = jnp.transpose(x_nchw, (0, 2, 3, 1)).astype(f32)
    x_pad = jnp.zeros((B, H + 2 * P, W, Cp), f32)
    x_pad = x_pad.at[:, P:P + H, :, :C].set(x_nhwc)

    inv_c = 1.0 / C
    r0 = P * W                                # interior-row start (multiple of 8)
    r1 = r0 + TH * W

    def kernel(x_ref, gamma_ref, beta_ref, w1m_ref, b1m_ref, w1c_ref, b1c_ref,
               convw_ref, convb_ref, w2i_ref, w2c_ref, b2_ref, out_ref,
               conv_scr, cout_scr, *dma_scr):
        r = pl.program_id(1)
        row0 = r * TH
        if TH % 8 == 0:
            row0 = pl.multiple_of(row0, 8)

        # --- row band with conv halo (x pre-padded along H on the host) ---
        if x_block_in_vmem:
            xwin = x_ref[pl.ds(row0, THP), :, :]                 # (THP, W, Cp)
        else:
            xband_ref, xsem = dma_scr
            b = pl.program_id(0)
            cp = pltpu.make_async_copy(x_ref.at[b, pl.ds(row0, THP)], xband_ref, xsem)
            cp.start()
            cp.wait()
            xwin = xband_ref[...]                                # (THP, W, Cp)
        xflat = xwin.reshape(THP * W, Cp)

        # --- LayerNorm over the real C channels (padding lanes masked out) ---
        mean = jnp.sum(xflat, axis=-1, keepdims=True) * inv_c
        lane_ids = jax.lax.broadcasted_iota(jnp.int32, (1, Cp), 1)
        cmask = lane_ids < C
        xc = jnp.where(cmask, xflat - mean, 0.0)
        var = jnp.sum(xc * xc, axis=-1, keepdims=True) * inv_c
        xn = xc * jax.lax.rsqrt(var + _LN_EPS)
        xn = xn * gamma_ref[...] + beta_ref[...]

        # --- fc1, split: conv columns over the full halo band, main columns
        #     ([g_i|g_c|i]) only over the interior rows (no wasted halo MACs) ---
        y_c = jnp.dot(xn.astype(jnp.bfloat16), w1c_ref[...],
                      preferred_element_type=jnp.float32) + b1c_ref[...]
        y_m = jnp.dot(xn[r0:r1].astype(jnp.bfloat16), w1m_ref[...],
                      preferred_element_type=jnp.float32) + b1m_ref[...]
        g_i = y_m[:, 0:hip]
        g_c = y_m[:, hip:hip + ccp]
        i_p = y_m[:, hip + ccp:]

        # --- depthwise KxK conv, SAME zero padding ---
        # zero only the never-written W-border strips (aligned full-tile stores);
        # out-of-image halo rows are zeroed via the row mask below.
        conv_scr[:, 0:LW, :] = jnp.zeros((THP, LW, ccp), jnp.float32)
        conv_scr[:, LW + W:, :] = jnp.zeros((THP, RW, ccp), jnp.float32)

        pids = jax.lax.broadcasted_iota(jnp.int32, (THP * W, 1), 0)
        lo_p = (P - row0) * W
        hi_p = (H + P - row0) * W
        rmask = jnp.logical_and(pids >= lo_p, pids < hi_p)
        conv_scr[:, LW:LW + W, :] = jnp.where(rmask, y_c, 0.0).reshape(THP, W, ccp)

        convw_v = convw_ref[...]                                 # (K, K, ccp)

        def conv_row(h, carry):
            # (W, ccp) register-resident accumulator; 49-tap unroll innermost.
            acc = jnp.zeros((W, ccp), jnp.float32)
            for dy in range(K):
                rowv = conv_scr[h + dy]                          # (Ws, ccp), one load
                for dx in range(K):
                    w_tap = convw_v[dy, dx].reshape(1, ccp)
                    acc = acc + rowv[LW - P + dx: LW - P + dx + W, :] * w_tap
            cout_scr[h] = acc
            return carry

        jax.lax.fori_loop(0, TH, conv_row, 0)
        c_out = cout_scr[...].reshape(TH * W, ccp) + convb_ref[...]

        # --- gate + fc2 as two accumulated dots (no concat buffer), residual ---
        zi = gelu(g_i) * i_p
        zc = gelu(g_c) * c_out
        o = jnp.dot(zi.astype(jnp.bfloat16), w2i_ref[...],
                    preferred_element_type=jnp.float32)
        o = o + jnp.dot(zc.astype(jnp.bfloat16), w2c_ref[...],
                        preferred_element_type=jnp.float32)
        o = o + b2_ref[...] + xwin[P:P + TH].reshape(TH * W, Cp)
        out_ref[...] = o.reshape(TH, W, Cp)                      # lane-dense store

    weights = [gammaf, betaf, w1m, b1m, w1c, b1c, convwf, convbf, w2i, w2c, b2f]

    def _w_spec(a):
        # full-array weight block, constant index -> fetched once and revisited.
        return pl.BlockSpec(a.shape, lambda b, rr, _n=a.ndim: (0,) * _n)

    if x_block_in_vmem:
        x_spec = pl.BlockSpec((None, H + 2 * P, W, Cp), lambda b, rr: (b, 0, 0, 0))
        dims = ("parallel", "arbitrary")     # never split rows -> no duplicated image
    else:
        x_spec = pl.BlockSpec(memory_space=pl.ANY)   # x stays in HBM; band DMA'd
        dims = ("parallel", "parallel")
    out_spec = pl.BlockSpec((None, TH, W, Cp), lambda b, rr: (b, rr, 0, 0))

    scratch = [pltpu.VMEM((THP, Ws, ccp), jnp.float32),          # conv input band
               pltpu.VMEM((TH, W, ccp), jnp.float32)]            # conv output band
    if not x_block_in_vmem:
        scratch += [pltpu.VMEM((THP, W, Cp), jnp.float32),       # x band buffer
                    pltpu.SemaphoreType.DMA]

    out_nhwc = pl.pallas_call(
        kernel,
        out_shape=jax.ShapeDtypeStruct((B, H, W, Cp), jnp.float32),
        grid_spec=pltpu.PrefetchScalarGridSpec(
            num_scalar_prefetch=0,
            grid=(B, NR),
            in_specs=[x_spec] + [_w_spec(a) for a in weights],
            out_specs=out_spec,
            scratch_shapes=scratch,
        ),
        compiler_params=pltpu.CompilerParams(
            dimension_semantics=dims,
            vmem_limit_bytes=int(vmem_limit),
        ),
    )(x_pad, *weights)

    out = out_nhwc[..., :C]
    return jnp.transpose(out, (0, 3, 1, 2))


def init_params(key, dim, expansion_ratio=8.0 / 3.0, kernel_size=7, conv_ratio=1.0):
    """Deterministic synthetic parameters with the same shapes as the PyTorch module."""
    hidden = int(expansion_ratio * dim)
    cc = int(conv_ratio * dim)
    ks = jax.random.split(key, 8)

    gamma = (1.0 + 0.1 * jax.random.normal(ks[0], (1, dim))).astype(jnp.float32)
    beta = (0.05 * jax.random.normal(ks[1], (1, dim))).astype(jnp.float32)
    w1 = (0.2 * jax.random.normal(ks[2], (dim, 2 * hidden))).astype(jnp.float32)
    b1 = (0.05 * jax.random.normal(ks[3], (1, 2 * hidden))).astype(jnp.float32)
    convw = (0.1 * jax.random.normal(ks[4], (kernel_size, kernel_size, cc))).astype(jnp.float32)
    convb = (0.05 * jax.random.normal(ks[5], (1, cc))).astype(jnp.float32)
    w2 = (0.2 * jax.random.normal(ks[6], (hidden, dim))).astype(jnp.float32)
    b2 = (0.05 * jax.random.normal(ks[7], (1, dim))).astype(jnp.float32)
    return (gamma, beta, w1, b1, convw, convb, w2, b2, hidden, cc)


def reference_forward(x_nchw, full_params):
    """Pure-JAX reference replicating the PyTorch forward exactly (drop_path=0)."""
    gamma, beta, w1, b1, convw, convb, w2, b2, hidden, cc = full_params
    hi = hidden - cc
    K = convw.shape[0]

    x = jnp.transpose(x_nchw, (0, 2, 3, 1))
    shortcut = x
    mean = x.mean(-1, keepdims=True)
    var = jnp.mean((x - mean) ** 2, axis=-1, keepdims=True)
    xn = (x - mean) / jnp.sqrt(var + _LN_EPS) * gamma.reshape(-1) + beta.reshape(-1)

    y = xn @ w1 + b1.reshape(-1)
    g = y[..., :hidden]
    i_p = y[..., hidden:hidden + hi]
    c_p = y[..., hidden + hi:]

    c = jax.lax.conv_general_dilated(
        c_p, convw.reshape(K, K, 1, cc),
        window_strides=(1, 1), padding="SAME",
        dimension_numbers=("NHWC", "HWIO", "NHWC"),
        feature_group_count=cc) + convb.reshape(-1)

    z = jax.nn.gelu(g, approximate=False) * jnp.concatenate([i_p, c], axis=-1)
    out = z @ w2 + b2.reshape(-1) + shortcut
    return jnp.transpose(out, (0, 3, 1, 2))


if __name__ == "__main__":
    B, dim, H, W = 2, 4, 16, 16
    key = jax.random.PRNGKey(0)
    kx, kp = jax.random.split(key)

    x = jax.random.normal(kx, (B, dim, H, W), dtype=jnp.float32)
    full_params = init_params(kp, dim)

    ref = jax.block_until_ready(reference_forward(x, full_params))

    # 1) auto-tiled path (whole padded image resident as a VMEM block).
    out_auto = jax.block_until_ready(gated_cnn_block(x, full_params))
    # 2) multi-band path: 2 row bands per image with halos, x kept in HBM and
    #    band-DMA'd per step (the v7x-safe residency strategy).
    out_hbm = jax.block_until_ready(
        gated_cnn_block(x, full_params, row_tile=8, x_in_hbm=True))

    for name, out in (("auto", out_auto), ("hbm-band", out_hbm)):
        assert out.shape == (B, dim, H, W)
        err = float(np.max(np.abs(np.asarray(out) - np.asarray(ref))))
        assert np.allclose(np.asarray(out), np.asarray(ref), atol=3e-2, rtol=3e-2), (
            f"{name}: mismatch vs pure-JAX reference: max abs err = {err}")

    print("KERNEL_OK")
</pallas_src>

<mosaic_0001>
module attributes {stable_mosaic.version = 11 : i64} {
  func.func @kernel(%arg0: i32, %arg1: i32, %arg2: memref<1x22x16x128xf32, #tpu.memory_space<vmem>>, %arg3: memref<1x128xf32, #tpu.memory_space<vmem>>, %arg4: memref<1x128xf32, #tpu.memory_space<vmem>>, %arg5: memref<128x384xbf16, #tpu.memory_space<vmem>>, %arg6: memref<1x384xf32, #tpu.memory_space<vmem>>, %arg7: memref<128x128xbf16, #tpu.memory_space<vmem>>, %arg8: memref<1x128xf32, #tpu.memory_space<vmem>>, %arg9: memref<7x7x128xf32, #tpu.memory_space<vmem>>, %arg10: memref<1x128xf32, #tpu.memory_space<vmem>>, %arg11: memref<128x128xbf16, #tpu.memory_space<vmem>>, %arg12: memref<128x128xbf16, #tpu.memory_space<vmem>>, %arg13: memref<1x128xf32, #tpu.memory_space<vmem>>, %arg14: memref<1x16x16x128xf32, #tpu.memory_space<vmem>>, %arg15: memref<22x32x128xf32, #tpu.memory_space<vmem>>, %arg16: memref<16x16x128xf32, #tpu.memory_space<vmem>>) attributes {dimension_semantics = [#tpu.dimension_semantics<parallel>, #tpu.dimension_semantics<arbitrary>], iteration_bounds = array<i64: 2, 1>, scalar_prefetch = 0 : i64, scratch_operands = 2 : i64, tpu.core_type = #tpu.core_type<tc>, window_params = [{transform_indices = @transform_0, window_bounds = array<i64: 1, 22, 16, 128>}, {pipeline_mode = #tpu.pipeline_mode<synchronous>, transform_indices = @transform_1, window_bounds = array<i64: 1, 128>}, {pipeline_mode = #tpu.pipeline_mode<synchronous>, transform_indices = @transform_2, window_bounds = array<i64: 1, 128>}, {pipeline_mode = #tpu.pipeline_mode<synchronous>, transform_indices = @transform_3, window_bounds = array<i64: 128, 384>}, {pipeline_mode = #tpu.pipeline_mode<synchronous>, transform_indices = @transform_4, window_bounds = array<i64: 1, 384>}, {pipeline_mode = #tpu.pipeline_mode<synchronous>, transform_indices = @transform_5, window_bounds = array<i64: 128, 128>}, {pipeline_mode = #tpu.pipeline_mode<synchronous>, transform_indices = @transform_6, window_bounds = array<i64: 1, 128>}, {pipeline_mode = #tpu.pipeline_mode<synchronous>, transform_indices = @transform_7, window_bounds = array<i64: 7, 7, 128>}, {pipeline_mode = #tpu.pipeline_mode<synchronous>, transform_indices = @transform_8, window_bounds = array<i64: 1, 128>}, {pipeline_mode = #tpu.pipeline_mode<synchronous>, transform_indices = @transform_9, window_bounds = array<i64: 128, 128>}, {pipeline_mode = #tpu.pipeline_mode<synchronous>, transform_indices = @transform_10, window_bounds = array<i64: 128, 128>}, {pipeline_mode = #tpu.pipeline_mode<synchronous>, transform_indices = @transform_11, window_bounds = array<i64: 1, 128>}, {transform_indices = @transform_12, window_bounds = array<i64: 1, 16, 16, 128>}]} {
    %c16_i32 = arith.constant 16 : i32
    %0 = arith.muli %arg1, %c16_i32 : i32
    %1 = tpu.assume_multiple %0, 8 : i32
    %c0 = arith.constant 0 : index
    %2 = arith.index_cast %1 : i32 to index
    %c0_0 = arith.constant 0 : index
    %c0_1 = arith.constant 0 : index
    %3 = vector.load %arg2[%c0, %2, %c0_0, %c0_1] : memref<1x22x16x128xf32, #tpu.memory_space<vmem>>, vector<1x22x16x128xf32>
    %4 = vector.shape_cast %3 : vector<1x22x16x128xf32> to vector<22x16x128xf32>
    %5 = vector.shape_cast %4 : vector<22x16x128xf32> to vector<352x128xf32>
    %cst = arith.constant dense<0.000000e+00> : vector<352xf32>
    %6 = vector.multi_reduction <add>, %5, %cst [1] : vector<352x128xf32> to vector<352xf32>
    %7 = vector.shape_cast %6 : vector<352xf32> to vector<352x1xf32>
    %cst_2 = arith.constant 2.500000e-01 : f32
    %8 = vector.broadcast %cst_2 : f32 to vector<352x1xf32>
    %9 = arith.mulf %7, %8 : vector<352x1xf32>
    %10 = tpu.iota {dimensions = array<i32: 1>} : vector<1x128xi32>
    %c4_i32 = arith.constant 4 : i32
    %11 = vector.broadcast %c4_i32 : i32 to vector<1x128xi32>
    %12 = arith.cmpi slt, %10, %11 : vector<1x128xi32>
    %13 = vector.broadcast %9 : vector<352x1xf32> to vector<352x128xf32>
    %14 = arith.subf %5, %13 : vector<352x128xf32>
    %cst_3 = arith.constant 0.000000e+00 : f32
    %15 = vector.shape_cast %12 : vector<1x128xi1> to vector<1x128xi1>
    %16 = vector.broadcast %15 : vector<1x128xi1> to vector<352x128xi1>
    %17 = vector.broadcast %cst_3 : f32 to vector<352x128xf32>
    %18 = arith.select %16, %14, %17 : vector<352x128xi1>, vector<352x128xf32>
    %19 = arith.mulf %18, %18 : vector<352x128xf32>
    %cst_4 = arith.constant dense<0.000000e+00> : vector<352xf32>
    %20 = vector.multi_reduction <add>, %19, %cst_4 [1] : vector<352x128xf32> to vector<352xf32>
    %21 = vector.shape_cast %20 : vector<352xf32> to vector<352x1xf32>
    %cst_5 = arith.constant 2.500000e-01 : f32
    %22 = vector.broadcast %cst_5 : f32 to vector<352x1xf32>
    %23 = arith.mulf %21, %22 : vector<352x1xf32>
    %cst_6 = arith.constant 9.99999997E-7 : f32
    %24 = vector.broadcast %cst_6 : f32 to vector<352x1xf32>
    %25 = arith.addf %23, %24 : vector<352x1xf32>
    %26 = math.rsqrt %25 : vector<352x1xf32>
    %27 = vector.broadcast %26 : vector<352x1xf32> to vector<352x128xf32>
    %28 = arith.mulf %18, %27 : vector<352x128xf32>
    %c0_7 = arith.constant 0 : index
    %c0_8 = arith.constant 0 : index
    %29 = vector.load %arg3[%c0_7, %c0_8] : memref<1x128xf32, #tpu.memory_space<vmem>>, vector<1x128xf32>
    %30 = vector.broadcast %29 : vector<1x128xf32> to vector<352x128xf32>
    %31 = arith.mulf %28, %30 : vector<352x128xf32>
    %c0_9 = arith.constant 0 : index
    %c0_10 = arith.constant 0 : index
    %32 = vector.load %arg4[%c0_9, %c0_10] : memref<1x128xf32, #tpu.memory_space<vmem>>, vector<1x128xf32>
    %33 = vector.broadcast %32 : vector<1x128xf32> to vector<352x128xf32>
    %34 = arith.addf %31, %33 : vector<352x128xf32>
    %35 = arith.truncf %34 : vector<352x128xf32> to vector<352x128xbf16>
    %c0_11 = arith.constant 0 : index
    %c0_12 = arith.constant 0 : index
    %36 = vector.load %arg7[%c0_11, %c0_12] : memref<128x128xbf16, #tpu.memory_space<vmem>>, vector<128x128xbf16>
    %cst_13 = arith.constant dense<0.000000e+00> : vector<352x128xf32>
    %37 = tpu.matmul %35, %36, %cst_13 {dimension_numbers = #tpu.dot_dimension_numbers<[1], [0], [0], [1], [0, 0, 1, 1], [], []>} : vector<352x128xbf16>, vector<128x128xbf16>, vector<352x128xf32> -> vector<352x128xf32>
    %c0_14 = arith.constant 0 : index
    %c0_15 = arith.constant 0 : index
    %38 = vector.load %arg8[%c0_14, %c0_15] : memref<1x128xf32, #tpu.memory_space<vmem>>, vector<1x128xf32>
    %39 = vector.broadcast %38 : vector<1x128xf32> to vector<352x128xf32>
    %40 = arith.addf %37, %39 : vector<352x128xf32>
    %41 = vector.extract_strided_slice %34 {offsets = [48, 0], sizes = [256, 128], strides = [1, 1]} : vector<352x128xf32> to vector<256x128xf32>
    %42 = arith.truncf %41 : vector<256x128xf32> to vector<256x128xbf16>
    %c0_16 = arith.constant 0 : index
    %c0_17 = arith.constant 0 : index
    %43 = vector.load %arg5[%c0_16, %c0_17] : memref<128x384xbf16, #tpu.memory_space<vmem>>, vector<128x384xbf16>
    %cst_18 = arith.constant dense<0.000000e+00> : vector<256x384xf32>
    %44 = tpu.matmul %42, %43, %cst_18 {dimension_numbers = #tpu.dot_dimension_numbers<[1], [0], [0], [1], [0, 0, 1, 1], [], []>} : vector<256x128xbf16>, vector<128x384xbf16>, vector<256x384xf32> -> vector<256x384xf32>
    %c0_19 = arith.constant 0 : index
    %c0_20 = arith.constant 0 : index
    %45 = vector.load %arg6[%c0_19, %c0_20] : memref<1x384xf32, #tpu.memory_space<vmem>>, vector<1x384xf32>
    %46 = vector.broadcast %45 : vector<1x384xf32> to vector<256x384xf32>
    %47 = arith.addf %44, %46 : vector<256x384xf32>
    %48 = vector.extract_strided_slice %47 {offsets = [0, 0], sizes = [256, 128], strides = [1, 1]} : vector<256x384xf32> to vector<256x128xf32>
    %49 = vector.extract_strided_slice %47 {offsets = [0, 128], sizes = [256, 128], strides = [1, 1]} : vector<256x384xf32> to vector<256x128xf32>
    %50 = vector.extract_strided_slice %47 {offsets = [0, 256], sizes = [256, 128], strides = [1, 1]} : vector<256x384xf32> to vector<256x128xf32>
    %cst_21 = arith.constant 0.000000e+00 : f32
    %51 = vector.broadcast %cst_21 : f32 to vector<22x8x128xf32>
    %c0_22 = arith.constant 0 : index
    %c0_23 = arith.constant 0 : index
    %c0_24 = arith.constant 0 : index
    %52 = vector.load %arg15[%c0_22, %c0_23, %c0_24] : memref<22x32x128xf32, #tpu.memory_space<vmem>>, vector<22x8x128xf32>
    tpu.vector_store %arg15[%c0_22, %c0_23, %c0_24], %51 {strides = array<i32>} : memref<22x32x128xf32, #tpu.memory_space<vmem>>, vector<22x8x128xf32>,
    %cst_25 = arith.constant 0.000000e+00 : f32
    %53 = vector.broadcast %cst_25 : f32 to vector<22x8x128xf32>
    %c0_26 = arith.constant 0 : index
    %c24 = arith.constant 24 : index
    %c0_27 = arith.constant 0 : index
    %54 = vector.load %arg15[%c0_26, %c24, %c0_27] : memref<22x32x128xf32, #tpu.memory_space<vmem>>, vector<22x8x128xf32>
    tpu.vector_store %arg15[%c0_26, %c24, %c0_27], %53 {strides = array<i32>} : memref<22x32x128xf32, #tpu.memory_space<vmem>>, vector<22x8x128xf32>,
    %55 = tpu.iota {dimensions = array<i32: 0>} : vector<352x1xi32>
    %c3_i32 = arith.constant 3 : i32
    %56 = arith.subi %c3_i32, %1 : i32
    %c16_i32_28 = arith.constant 16 : i32
    %57 = arith.muli %56, %c16_i32_28 : i32
    %c19_i32 = arith.constant 19 : i32
    %58 = arith.subi %c19_i32, %1 : i32
    %c16_i32_29 = arith.constant 16 : i32
    %59 = arith.muli %58, %c16_i32_29 : i32
    %60 = vector.broadcast %57 : i32 to vector<352x1xi32>
    %61 = arith.cmpi sge, %55, %60 : vector<352x1xi32>
    %62 = vector.broadcast %59 : i32 to vector<352x1xi32>
    %63 = arith.cmpi slt, %55, %62 : vector<352x1xi32>
    %64 = arith.andi %61, %63 : vector<352x1xi1>
    %cst_30 = arith.constant 0.000000e+00 : f32
    %65 = vector.shape_cast %64 : vector<352x1xi1> to vector<352x1xi1>
    %66 = vector.broadcast %65 : vector<352x1xi1> to vector<352x128xi1>
    %67 = vector.broadcast %cst_30 : f32 to vector<352x128xf32>
    %68 = arith.select %66, %40, %67 : vector<352x128xi1>, vector<352x128xf32>
    %69 = vector.shape_cast %68 : vector<352x128xf32> to vector<22x16x128xf32>
    %c0_31 = arith.constant 0 : index
    %c8 = arith.constant 8 : index
    %c0_32 = arith.constant 0 : index
    %70 = vector.load %arg15[%c0_31, %c8, %c0_32] : memref<22x32x128xf32, #tpu.memory_space<vmem>>, vector<22x16x128xf32>
    tpu.vector_store %arg15[%c0_31, %c8, %c0_32], %69 {strides = array<i32>} : memref<22x32x128xf32, #tpu.memory_space<vmem>>, vector<22x16x128xf32>,
    %c0_33 = arith.constant 0 : index
    %c0_34 = arith.constant 0 : index
    %c0_35 = arith.constant 0 : index
    %71 = vector.load %arg9[%c0_33, %c0_34, %c0_35] : memref<7x7x128xf32, #tpu.memory_space<vmem>>, vector<7x7x128xf32>
    %c0_i32 = arith.constant 0 : i32
    %c16_i32_36 = arith.constant 16 : i32
    %72 = arith.addi %c0_i32, %c16_i32_36 : i32
    %c1_i32 = arith.constant 1 : i32
    scf.for %arg17 = %c0_i32 to %72 step %c1_i32  : i32 {
      %cst_63 = arith.constant 0.000000e+00 : f32
      %123 = vector.broadcast %cst_63 : f32 to vector<16x128xf32>
      %c0_i32_64 = arith.constant 0 : i32
      %124 = arith.addi %arg17, %c0_i32_64 : i32
      %125 = arith.index_cast %124 : i32 to index
      %c0_65 = arith.constant 0 : index
      %c0_66 = arith.constant 0 : index
      %126 = vector.load %arg15[%125, %c0_65, %c0_66] : memref<22x32x128xf32, #tpu.memory_space<vmem>>, vector<1x32x128xf32>
      %127 = vector.shape_cast %126 : vector<1x32x128xf32> to vector<32x128xf32>
      %128 = vector.extract_strided_slice %71 {offsets = [0, 0, 0], sizes = [1, 1, 128], strides = [1, 1, 1]} : vector<7x7x128xf32> to vector<1x1x128xf32>
      %129 = vector.shape_cast %128 : vector<1x1x128xf32> to vector<128xf32>
      %130 = vector.shape_cast %129 : vector<128xf32> to vector<1x128xf32>
      %131 = vector.extract_strided_slice %127 {offsets = [5, 0], sizes = [16, 128], strides = [1, 1]} : vector<32x128xf32> to vector<16x128xf32>
      %132 = vector.broadcast %130 : vector<1x128xf32> to vector<16x128xf32>
      %133 = arith.mulf %131, %132 : vector<16x128xf32>
      %134 = arith.addf %123, %133 : vector<16x128xf32>
      %135 = vector.extract_strided_slice %71 {offsets = [0, 1, 0], sizes = [1, 1, 128], strides = [1, 1, 1]} : vector<7x7x128xf32> to vector<1x1x128xf32>
      %136 = vector.shape_cast %135 : vector<1x1x128xf32> to vector<128xf32>
      %137 = vector.shape_cast %136 : vector<128xf32> to vector<1x128xf32>
      %138 = vector.extract_strided_slice %127 {offsets = [6, 0], sizes = [16, 128], strides = [1, 1]} : vector<32x128xf32> to vector<16x128xf32>
      %139 = vector.broadcast %137 : vector<1x128xf32> to vector<16x128xf32>
      %140 = arith.mulf %138, %139 : vector<16x128xf32>
      %141 = arith.addf %134, %140 : vector<16x128xf32>
      %142 = vector.extract_strided_slice %71 {offsets = [0, 2, 0], sizes = [1, 1, 128], strides = [1, 1, 1]} : vector<7x7x128xf32> to vector<1x1x128xf32>
      %143 = vector.shape_cast %142 : vector<1x1x128xf32> to vector<128xf32>
      %144 = vector.shape_cast %143 : vector<128xf32> to vector<1x128xf32>
      %145 = vector.extract_strided_slice %127 {offsets = [7, 0], sizes = [16, 128], strides = [1, 1]} : vector<32x128xf32> to vector<16x128xf32>
      %146 = vector.broadcast %144 : vector<1x128xf32> to vector<16x128xf32>
      %147 = arith.mulf %145, %146 : vector<16x128xf32>
      %148 = arith.addf %141, %147 : vector<16x128xf32>
      %149 = vector.extract_strided_slice %71 {offsets = [0, 3, 0], sizes = [1, 1, 128], strides = [1, 1, 1]} : vector<7x7x128xf32> to vector<1x1x128xf32>
      %150 = vector.shape_cast %149 : vector<1x1x128xf32> to vector<128xf32>
      %151 = vector.shape_cast %150 : vector<128xf32> to vector<1x128xf32>
      %152 = vector.extract_strided_slice %127 {offsets = [8, 0], sizes = [16, 128], strides = [1, 1]} : vector<32x128xf32> to vector<16x128xf32>
      %153 = vector.broadcast %151 : vector<1x128xf32> to vector<16x128xf32>
      %154 = arith.mulf %152, %153 : vector<16x128xf32>
      %155 = arith.addf %148, %154 : vector<16x128xf32>
      %156 = vector.extract_strided_slice %71 {offsets = [0, 4, 0], sizes = [1, 1, 128], strides = [1, 1, 1]} : vector<7x7x128xf32> to vector<1x1x128xf32>
      %157 = vector.shape_cast %156 : vector<1x1x128xf32> to vector<128xf32>
      %158 = vector.shape_cast %157 : vector<128xf32> to vector<1x128xf32>
      %159 = vector.extract_strided_slice %127 {offsets = [9, 0], sizes = [16, 128], strides = [1, 1]} : vector<32x128xf32> to vector<16x128xf32>
      %160 = vector.broadcast %158 : vector<1x128xf32> to vector<16x128xf32>
      %161 = arith.mulf %159, %160 : vector<16x128xf32>
      %162 = arith.addf %155, %161 : vector<16x128xf32>
      %163 = vector.extract_strided_slice %71 {offsets = [0, 5, 0], sizes = [1, 1, 128], strides = [1, 1, 1]} : vector<7x7x128xf32> to vector<1x1x128xf32>
      %164 = vector.shape_cast %163 : vector<1x1x128xf32> to vector<128xf32>
      %165 = vector.shape_cast %164 : vector<128xf32> to vector<1x128xf32>
      %166 = vector.extract_strided_slice %127 {offsets = [10, 0], sizes = [16, 128], strides = [1, 1]} : vector<32x128xf32> to vector<16x128xf32>
      %167 = vector.broadcast %165 : vector<1x128xf32> to vector<16x128xf32>
      %168 = arith.mulf %166, %167 : vector<16x128xf32>
      %169 = arith.addf %162, %168 : vector<16x128xf32>
      %170 = vector.extract_strided_slice %71 {offsets = [0, 6, 0], sizes = [1, 1, 128], strides = [1, 1, 1]} : vector<7x7x128xf32> to vector<1x1x128xf32>
      %171 = vector.shape_cast %170 : vector<1x1x128xf32> to vector<128xf32>
      %172 = vector.shape_cast %171 : vector<128xf32> to vector<1x128xf32>
      %173 = vector.extract_strided_slice %127 {offsets = [11, 0], sizes = [16, 128], strides = [1, 1]} : vector<32x128xf32> to vector<16x128xf32>
      %174 = vector.broadcast %172 : vector<1x128xf32> to vector<16x128xf32>
      %175 = arith.mulf %173, %174 : vector<16x128xf32>
      %176 = arith.addf %169, %175 : vector<16x128xf32>
      %c1_i32_67 = arith.constant 1 : i32
      %177 = arith.addi %arg17, %c1_i32_67 : i32
      %178 = arith.index_cast %177 : i32 to index
      %c0_68 = arith.constant 0 : index
      %c0_69 = arith.constant 0 : index
      %179 = vector.load %arg15[%178, %c0_68, %c0_69] : memref<22x32x128xf32, #tpu.memory_space<vmem>>, vector<1x32x128xf32>
      %180 = vector.shape_cast %179 : vector<1x32x128xf32> to vector<32x128xf32>
      %181 = vector.extract_strided_slice %71 {offsets = [1, 0, 0], sizes = [1, 1, 128], strides = [1, 1, 1]} : vector<7x7x128xf32> to vector<1x1x128xf32>
      %182 = vector.shape_cast %181 : vector<1x1x128xf32> to vector<128xf32>
      %183 = vector.shape_cast %182 : vector<128xf32> to vector<1x128xf32>
      %184 = vector.extract_strided_slice %180 {offsets = [5, 0], sizes = [16, 128], strides = [1, 1]} : vector<32x128xf32> to vector<16x128xf32>
      %185 = vector.broadcast %183 : vector<1x128xf32> to vector<16x128xf32>
      %186 = arith.mulf %184, %185 : vector<16x128xf32>
      %187 = arith.addf %176, %186 : vector<16x128xf32>
      %188 = vector.extract_strided_slice %71 {offsets = [1, 1, 0], sizes = [1, 1, 128], strides = [1, 1, 1]} : vector<7x7x128xf32> to vector<1x1x128xf32>
      %189 = vector.shape_cast %188 : vector<1x1x128xf32> to vector<128xf32>
      %190 = vector.shape_cast %189 : vector<128xf32> to vector<1x128xf32>
      %191 = vector.extract_strided_slice %180 {offsets = [6, 0], sizes = [16, 128], strides = [1, 1]} : vector<32x128xf32> to vector<16x128xf32>
      %192 = vector.broadcast %190 : vector<1x128xf32> to vector<16x128xf32>
      %193 = arith.mulf %191, %192 : vector<16x128xf32>
      %194 = arith.addf %187, %193 : vector<16x128xf32>
      %195 = vector.extract_strided_slice %71 {offsets = [1, 2, 0], sizes = [1, 1, 128], strides = [1, 1, 1]} : vector<7x7x128xf32> to vector<1x1x128xf32>
      %196 = vector.shape_cast %195 : vector<1x1x128xf32> to vector<128xf32>
      %197 = vector.shape_cast %196 : vector<128xf32> to vector<1x128xf32>
      %198 = vector.extract_strided_slice %180 {offsets = [7, 0], sizes = [16, 128], strides = [1, 1]} : vector<32x128xf32> to vector<16x128xf32>
      %199 = vector.broadcast %197 : vector<1x128xf32> to vector<16x128xf32>
      %200 = arith.mulf %198, %199 : vector<16x128xf32>
      %201 = arith.addf %194, %200 : vector<16x128xf32>
      %202 = vector.extract_strided_slice %71 {offsets = [1, 3, 0], sizes = [1, 1, 128], strides = [1, 1, 1]} : vector<7x7x128xf32> to vector<1x1x128xf32>
      %203 = vector.shape_cast %202 : vector<1x1x128xf32> to vector<128xf32>
      %204 = vector.shape_cast %203 : vector<128xf32> to vector<1x128xf32>
      %205 = vector.extract_strided_slice %180 {offsets = [8, 0], sizes = [16, 128], strides = [1, 1]} : vector<32x128xf32> to vector<16x128xf32>
      %206 = vector.broadcast %204 : vector<1x128xf32> to vector<16x128xf32>
      %207 = arith.mulf %205, %206 : vector<16x128xf32>
      %208 = arith.addf %201, %207 : vector<16x128xf32>
      %209 = vector.extract_strided_slice %71 {offsets = [1, 4, 0], sizes = [1, 1, 128], strides = [1, 1, 1]} : vector<7x7x128xf32> to vector<1x1x128xf32>
      %210 = vector.shape_cast %209 : vector<1x1x128xf32> to vector<128xf32>
      %211 = vector.shape_cast %210 : vector<128xf32> to vector<1x128xf32>
      %212 = vector.extract_strided_slice %180 {offsets = [9, 0], sizes = [16, 128], strides = [1, 1]} : vector<32x128xf32> to vector<16x128xf32>
      %213 = vector.broadcast %211 : vector<1x128xf32> to vector<16x128xf32>
      %214 = arith.mulf %212, %213 : vector<16x128xf32>
      %215 = arith.addf %208, %214 : vector<16x128xf32>
      %216 = vector.extract_strided_slice %71 {offsets = [1, 5, 0], sizes = [1, 1, 128], strides = [1, 1, 1]} : vector<7x7x128xf32> to vector<1x1x128xf32>
      %217 = vector.shape_cast %216 : vector<1x1x128xf32> to vector<128xf32>
      %218 = vector.shape_cast %217 : vector<128xf32> to vector<1x128xf32>
      %219 = vector.extract_strided_slice %180 {offsets = [10, 0], sizes = [16, 128], strides = [1, 1]} : vector<32x128xf32> to vector<16x128xf32>
      %220 = vector.broadcast %218 : vector<1x128xf32> to vector<16x128xf32>
      %221 = arith.mulf %219, %220 : vector<16x128xf32>
      %222 = arith.addf %215, %221 : vector<16x128xf32>
      %223 = vector.extract_strided_slice %71 {offsets = [1, 6, 0], sizes = [1, 1, 128], strides = [1, 1, 1]} : vector<7x7x128xf32> to vector<1x1x128xf32>
      %224 = vector.shape_cast %223 : vector<1x1x128xf32> to vector<128xf32>
      %225 = vector.shape_cast %224 : vector<128xf32> to vector<1x128xf32>
      %226 = vector.extract_strided_slice %180 {offsets = [11, 0], sizes = [16, 128], strides = [1, 1]} : vector<32x128xf32> to vector<16x128xf32>
      %227 = vector.broadcast %225 : vector<1x128xf32> to vector<16x128xf32>
      %228 = arith.mulf %226, %227 : vector<16x128xf32>
      %229 = arith.addf %222, %228 : vector<16x128xf32>
      %c2_i32 = arith.constant 2 : i32
      %230 = arith.addi %arg17, %c2_i32 : i32
      %231 = arith.index_cast %230 : i32 to index
      %c0_70 = arith.constant 0 : index
      %c0_71 = arith.constant 0 : index
      %232 = vector.load %arg15[%231, %c0_70, %c0_71] : memref<22x32x128xf32, #tpu.memory_space<vmem>>, vector<1x32x128xf32>
      %233 = vector.shape_cast %232 : vector<1x32x128xf32> to vector<32x128xf32>
      %234 = vector.extract_strided_slice %71 {offsets = [2, 0, 0], sizes = [1, 1, 128], strides = [1, 1, 1]} : vector<7x7x128xf32> to vector<1x1x128xf32>
      %235 = vector.shape_cast %234 : vector<1x1x128xf32> to vector<128xf32>
      %236 = vector.shape_cast %235 : vector<128xf32> to vector<1x128xf32>
      %237 = vector.extract_strided_slice %233 {offsets = [5, 0], sizes = [16, 128], strides = [1, 1]} : vector<32x128xf32> to vector<16x128xf32>
      %238 = vector.broadcast %236 : vector<1x128xf32> to vector<16x128xf32>
      %239 = arith.mulf %237, %238 : vector<16x128xf32>
      %240 = arith.addf %229, %239 : vector<16x128xf32>
      %241 = vector.extract_strided_slice %71 {offsets = [2, 1, 0], sizes = [1, 1, 128], strides = [1, 1, 1]} : vector<7x7x128xf32> to vector<1x1x128xf32>
      %242 = vector.shape_cast %241 : vector<1x1x128xf32> to vector<128xf32>
      %243 = vector.shape_cast %242 : vector<128xf32> to vector<1x128xf32>
      %244 = vector.extract_strided_slice %233 {offsets = [6, 0], sizes = [16, 128], strides = [1, 1]} : vector<32x128xf32> to vector<16x128xf32>
      %245 = vector.broadcast %243 : vector<1x128xf32> to vector<16x128xf32>
      %246 = arith.mulf %244, %245 : vector<16x128xf32>
      %247 = arith.addf %240, %246 : vector<16x128xf32>
      %248 = vector.extract_strided_slice %71 {offsets = [2, 2, 0], sizes = [1, 1, 128], strides = [1, 1, 1]} : vector<7x7x128xf32> to vector<1x1x128xf32>
      %249 = vector.shape_cast %248 : vector<1x1x128xf32> to vector<128xf32>
      %250 = vector.shape_cast %249 : vector<128xf32> to vector<1x128xf32>
      %251 = vector.extract_strided_slice %233 {offsets = [7, 0], sizes = [16, 128], strides = [1, 1]} : vector<32x128xf32> to vector<16x128xf32>
      %252 = vector.broadcast %250 : vector<1x128xf32> to vector<16x128xf32>
      %253 = arith.mulf %251, %252 : vector<16x128xf32>
      %254 = arith.addf %247, %253 : vector<16x128xf32>
      %255 = vector.extract_strided_slice %71 {offsets = [2, 3, 0], sizes = [1, 1, 128], strides = [1, 1, 1]} : vector<7x7x128xf32> to vector<1x1x128xf32>
      %256 = vector.shape_cast %255 : vector<1x1x128xf32> to vector<128xf32>
      %257 = vector.shape_cast %256 : vector<128xf32> to vector<1x128xf32>
      %258 = vector.extract_strided_slice %233 {offsets = [8, 0], sizes = [16, 128], strides = [1, 1]} : vector<32x128xf32> to vector<16x128xf32>
      %259 = vector.broadcast %257 : vector<1x128xf32> to vector<16x128xf32>
      %260 = arith.mulf %258, %259 : vector<16x128xf32>
      %261 = arith.addf %254, %260 : vector<16x128xf32>
      %262 = vector.extract_strided_slice %71 {offsets = [2, 4, 0], sizes = [1, 1, 128], strides = [1, 1, 1]} : vector<7x7x128xf32> to vector<1x1x128xf32>
      %263 = vector.shape_cast %262 : vector<1x1x128xf32> to vector<128xf32>
      %264 = vector.shape_cast %263 : vector<128xf32> to vector<1x128xf32>
      %265 = vector.extract_strided_slice %233 {offsets = [9, 0], sizes = [16, 128], strides = [1, 1]} : vector<32x128xf32> to vector<16x128xf32>
      %266 = vector.broadcast %264 : vector<1x128xf32> to vector<16x128xf32>
      %267 = arith.mulf %265, %266 : vector<16x128xf32>
      %268 = arith.addf %261, %267 : vector<16x128xf32>
      %269 = vector.extract_strided_slice %71 {offsets = [2, 5, 0], sizes = [1, 1, 128], strides = [1, 1, 1]} : vector<7x7x128xf32> to vector<1x1x128xf32>
      %270 = vector.shape_cast %269 : vector<1x1x128xf32> to vector<128xf32>
      %271 = vector.shape_cast %270 : vector<128xf32> to vector<1x128xf32>
      %272 = vector.extract_strided_slice %233 {offsets = [10, 0], sizes = [16, 128], strides = [1, 1]} : vector<32x128xf32> to vector<16x128xf32>
      %273 = vector.broadcast %271 : vector<1x128xf32> to vector<16x128xf32>
      %274 = arith.mulf %272, %273 : vector<16x128xf32>
      %275 = arith.addf %268, %274 : vector<16x128xf32>
      %276 = vector.extract_strided_slice %71 {offsets = [2, 6, 0], sizes = [1, 1, 128], strides = [1, 1, 1]} : vector<7x7x128xf32> to vector<1x1x128xf32>
      %277 = vector.shape_cast %276 : vector<1x1x128xf32> to vector<128xf32>
      %278 = vector.shape_cast %277 : vector<128xf32> to vector<1x128xf32>
      %279 = vector.extract_strided_slice %233 {offsets = [11, 0], sizes = [16, 128], strides = [1, 1]} : vector<32x128xf32> to vector<16x128xf32>
      %280 = vector.broadcast %278 : vector<1x128xf32> to vector<16x128xf32>
      %281 = arith.mulf %279, %280 : vector<16x128xf32>
      %282 = arith.addf %275, %281 : vector<16x128xf32>
      %c3_i32_72 = arith.constant 3 : i32
      %283 = arith.addi %arg17, %c3_i32_72 : i32
      %284 = arith.index_cast %283 : i32 to index
      %c0_73 = arith.constant 0 : index
      %c0_74 = arith.constant 0 : index
      %285 = vector.load %arg15[%284, %c0_73, %c0_74] : memref<22x32x128xf32, #tpu.memory_space<vmem>>, vector<1x32x128xf32>
      %286 = vector.shape_cast %285 : vector<1x32x128xf32> to vector<32x128xf32>
      %287 = vector.extract_strided_slice %71 {offsets = [3, 0, 0], sizes = [1, 1, 128], strides = [1, 1, 1]} : vector<7x7x128xf32> to vector<1x1x128xf32>
      %288 = vector.shape_cast %287 : vector<1x1x128xf32> to vector<128xf32>
      %289 = vector.shape_cast %288 : vector<128xf32> to vector<1x128xf32>
      %290 = vector.extract_strided_slice %286 {offsets = [5, 0], sizes = [16, 128], strides = [1, 1]} : vector<32x128xf32> to vector<16x128xf32>
      %291 = vector.broadcast %289 : vector<1x128xf32> to vector<16x128xf32>
      %292 = arith.mulf %290, %291 : vector<16x128xf32>
      %293 = arith.addf %282, %292 : vector<16x128xf32>
      %294 = vector.extract_strided_slice %71 {offsets = [3, 1, 0], sizes = [1, 1, 128], strides = [1, 1, 1]} : vector<7x7x128xf32> to vector<1x1x128xf32>
      %295 = vector.shape_cast %294 : vector<1x1x128xf32> to vector<128xf32>
      %296 = vector.shape_cast %295 : vector<128xf32> to vector<1x128xf32>
      %297 = vector.extract_strided_slice %286 {offsets = [6, 0], sizes = [16, 128], strides = [1, 1]} : vector<32x128xf32> to vector<16x128xf32>
      %298 = vector.broadcast %296 : vector<1x128xf32> to vector<16x128xf32>
      %299 = arith.mulf %297, %298 : vector<16x128xf32>
      %300 = arith.addf %293, %299 : vector<16x128xf32>
      %301 = vector.extract_strided_slice %71 {offsets = [3, 2, 0], sizes = [1, 1, 128], strides = [1, 1, 1]} : vector<7x7x128xf32> to vector<1x1x128xf32>
      %302 = vector.shape_cast %301 : vector<1x1x128xf32> to vector<128xf32>
      %303 = vector.shape_cast %302 : vector<128xf32> to vector<1x128xf32>
      %304 = vector.extract_strided_slice %286 {offsets = [7, 0], sizes = [16, 128], strides = [1, 1]} : vector<32x128xf32> to vector<16x128xf32>
      %305 = vector.broadcast %303 : vector<1x128xf32> to vector<16x128xf32>
      %306 = arith.mulf %304, %305 : vector<16x128xf32>
      %307 = arith.addf %300, %306 : vector<16x128xf32>
      %308 = vector.extract_strided_slice %71 {offsets = [3, 3, 0], sizes = [1, 1, 128], strides = [1, 1, 1]} : vector<7x7x128xf32> to vector<1x1x128xf32>
      %309 = vector.shape_cast %308 : vector<1x1x128xf32> to vector<128xf32>
      %310 = vector.shape_cast %309 : vector<128xf32> to vector<1x128xf32>
      %311 = vector.extract_strided_slice %286 {offsets = [8, 0], sizes = [16, 128], strides = [1, 1]} : vector<32x128xf32> to vector<16x128xf32>
      %312 = vector.broadcast %310 : vector<1x128xf32> to vector<16x128xf32>
      %313 = arith.mulf %311, %312 : vector<16x128xf32>
      %314 = arith.addf %307, %313 : vector<16x128xf32>
      %315 = vector.extract_strided_slice %71 {offsets = [3, 4, 0], sizes = [1, 1, 128], strides = [1, 1, 1]} : vector<7x7x128xf32> to vector<1x1x128xf32>
      %316 = vector.shape_cast %315 : vector<1x1x128xf32> to vector<128xf32>
      %317 = vector.shape_cast %316 : vector<128xf32> to vector<1x128xf32>
      %318 = vector.extract_strided_slice %286 {offsets = [9, 0], sizes = [16, 128], strides = [1, 1]} : vector<32x128xf32> to vector<16x128xf32>
      %319 = vector.broadcast %317 : vector<1x128xf32> to vector<16x128xf32>
      %320 = arith.mulf %318, %319 : vector<16x128xf32>
      %321 = arith.addf %314, %320 : vector<16x128xf32>
      %322 = vector.extract_strided_slice %71 {offsets = [3, 5, 0], sizes = [1, 1, 128], strides = [1, 1, 1]} : vector<7x7x128xf32> to vector<1x1x128xf32>
      %323 = vector.shape_cast %322 : vector<1x1x128xf32> to vector<128xf32>
      %324 = vector.shape_cast %323 : vector<128xf32> to vector<1x128xf32>
      %325 = vector.extract_strided_slice %286 {offsets = [10, 0], sizes = [16, 128], strides = [1, 1]} : vector<32x128xf32> to vector<16x128xf32>
      %326 = vector.broadcast %324 : vector<1x128xf32> to vector<16x128xf32>
      %327 = arith.mulf %325, %326 : vector<16x128xf32>
      %328 = arith.addf %321, %327 : vector<16x128xf32>
      %329 = vector.extract_strided_slice %71 {offsets = [3, 6, 0], sizes = [1, 1, 128], strides = [1, 1, 1]} : vector<7x7x128xf32> to vector<1x1x128xf32>
      %330 = vector.shape_cast %329 : vector<1x1x128xf32> to vector<128xf32>
      %331 = vector.shape_cast %330 : vector<128xf32> to vector<1x128xf32>
      %332 = vector.extract_strided_slice %286 {offsets = [11, 0], sizes = [16, 128], strides = [1, 1]} : vector<32x128xf32> to vector<16x128xf32>
      %333 = vector.broadcast %331 : vector<1x128xf32> to vector<16x128xf32>
      %334 = arith.mulf %332, %333 : vector<16x128xf32>
      %335 = arith.addf %328, %334 : vector<16x128xf32>
      %c4_i32_75 = arith.constant 4 : i32
      %336 = arith.addi %arg17, %c4_i32_75 : i32
      %337 = arith.index_cast %336 : i32 to index
      %c0_76 = arith.constant 0 : index
      %c0_77 = arith.constant 0 : index
      %338 = vector.load %arg15[%337, %c0_76, %c0_77] : memref<22x32x128xf32, #tpu.memory_space<vmem>>, vector<1x32x128xf32>
      %339 = vector.shape_cast %338 : vector<1x32x128xf32> to vector<32x128xf32>
      %340 = vector.extract_strided_slice %71 {offsets = [4, 0, 0], sizes = [1, 1, 128], strides = [1, 1, 1]} : vector<7x7x128xf32> to vector<1x1x128xf32>
      %341 = vector.shape_cast %340 : vector<1x1x128xf32> to vector<128xf32>
      %342 = vector.shape_cast %341 : vector<128xf32> to vector<1x128xf32>
      %343 = vector.extract_strided_slice %339 {offsets = [5, 0], sizes = [16, 128], strides = [1, 1]} : vector<32x128xf32> to vector<16x128xf32>
      %344 = vector.broadcast %342 : vector<1x128xf32> to vector<16x128xf32>
      %345 = arith.mulf %343, %344 : vector<16x128xf32>
      %346 = arith.addf %335, %345 : vector<16x128xf32>
      %347 = vector.extract_strided_slice %71 {offsets = [4, 1, 0], sizes = [1, 1, 128], strides = [1, 1, 1]} : vector<7x7x128xf32> to vector<1x1x128xf32>
      %348 = vector.shape_cast %347 : vector<1x1x128xf32> to vector<128xf32>
      %349 = vector.shape_cast %348 : vector<128xf32> to vector<1x128xf32>
      %350 = vector.extract_strided_slice %339 {offsets = [6, 0], sizes = [16, 128], strides = [1, 1]} : vector<32x128xf32> to vector<16x128xf32>
      %351 = vector.broadcast %349 : vector<1x128xf32> to vector<16x128xf32>
      %352 = arith.mulf %350, %351 : vector<16x128xf32>
      %353 = arith.addf %346, %352 : vector<16x128xf32>
      %354 = vector.extract_strided_slice %71 {offsets = [4, 2, 0], sizes = [1, 1, 128], strides = [1, 1, 1]} : vector<7x7x128xf32> to vector<1x1x128xf32>
      %355 = vector.shape_cast %354 : vector<1x1x128xf32> to vector<128xf32>
      %356 = vector.shape_cast %355 : vector<128xf32> to vector<1x128xf32>
      %357 = vector.extract_strided_slice %339 {offsets = [7, 0], sizes = [16, 128], strides = [1, 1]} : vector<32x128xf32> to vector<16x128xf32>
      %358 = vector.broadcast %356 : vector<1x128xf32> to vector<16x128xf32>
      %359 = arith.mulf %357, %358 : vector<16x128xf32>
      %360 = arith.addf %353, %359 : vector<16x128xf32>
      %361 = vector.extract_strided_slice %71 {offsets = [4, 3, 0], sizes = [1, 1, 128], strides = [1, 1, 1]} : vector<7x7x128xf32> to vector<1x1x128xf32>
      %362 = vector.shape_cast %361 : vector<1x1x128xf32> to vector<128xf32>
      %363 = vector.shape_cast %362 : vector<128xf32> to vector<1x128xf32>
      %364 = vector.extract_strided_slice %339 {offsets = [8, 0], sizes = [16, 128], strides = [1, 1]} : vector<32x128xf32> to vector<16x128xf32>
      %365 = vector.broadcast %363 : vector<1x128xf32> to vector<16x128xf32>
      %366 = arith.mulf %364, %365 : vector<16x128xf32>
      %367 = arith.addf %360, %366 : vector<16x128xf32>
      %368 = vector.extract_strided_slice %71 {offsets = [4, 4, 0], sizes = [1, 1, 128], strides = [1, 1, 1]} : vector<7x7x128xf32> to vector<1x1x128xf32>
      %369 = vector.shape_cast %368 : vector<1x1x128xf32> to vector<128xf32>
      %370 = vector.shape_cast %369 : vector<128xf32> to vector<1x128xf32>
      %371 = vector.extract_strided_slice %339 {offsets = [9, 0], sizes = [16, 128], strides = [1, 1]} : vector<32x128xf32> to vector<16x128xf32>
      %372 = vector.broadcast %370 : vector<1x128xf32> to vector<16x128xf32>
      %373 = arith.mulf %371, %372 : vector<16x128xf32>
      %374 = arith.addf %367, %373 : vector<16x128xf32>
      %375 = vector.extract_strided_slice %71 {offsets = [4, 5, 0], sizes = [1, 1, 128], strides = [1, 1, 1]} : vector<7x7x128xf32> to vector<1x1x128xf32>
      %376 = vector.shape_cast %375 : vector<1x1x128xf32> to vector<128xf32>
      %377 = vector.shape_cast %376 : vector<128xf32> to vector<1x128xf32>
      %378 = vector.extract_strided_slice %339 {offsets = [10, 0], sizes = [16, 128], strides = [1, 1]} : vector<32x128xf32> to vector<16x128xf32>
      %379 = vector.broadcast %377 : vector<1x128xf32> to vector<16x128xf32>
      %380 = arith.mulf %378, %379 : vector<16x128xf32>
      %381 = arith.addf %374, %380 : vector<16x128xf32>
      %382 = vector.extract_strided_slice %71 {offsets = [4, 6, 0], sizes = [1, 1, 128], strides = [1, 1, 1]} : vector<7x7x128xf32> to vector<1x1x128xf32>
      %383 = vector.shape_cast %382 : vector<1x1x128xf32> to vector<128xf32>
      %384 = vector.shape_cast %383 : vector<128xf32> to vector<1x128xf32>
      %385 = vector.extract_strided_slice %339 {offsets = [11, 0], sizes = [16, 128], strides = [1, 1]} : vector<32x128xf32> to vector<16x128xf32>
      %386 = vector.broadcast %384 : vector<1x128xf32> to vector<16x128xf32>
      %387 = arith.mulf %385, %386 : vector<16x128xf32>
      %388 = arith.addf %381, %387 : vector<16x128xf32>
      %c5_i32 = arith.constant 5 : i32
      %389 = arith.addi %arg17, %c5_i32 : i32
      %390 = arith.index_cast %389 : i32 to index
      %c0_78 = arith.constant 0 : index
      %c0_79 = arith.constant 0 : index
      %391 = vector.load %arg15[%390, %c0_78, %c0_79] : memref<22x32x128xf32, #tpu.memory_space<vmem>>, vector<1x32x128xf32>
      %392 = vector.shape_cast %391 : vector<1x32x128xf32> to vector<32x128xf32>
      %393 = vector.extract_strided_slice %71 {offsets = [5, 0, 0], sizes = [1, 1, 128], strides = [1, 1, 1]} : vector<7x7x128xf32> to vector<1x1x128xf32>
      %394 = vector.shape_cast %393 : vector<1x1x128xf32> to vector<128xf32>
      %395 = vector.shape_cast %394 : vector<128xf32> to vector<1x128xf32>
      %396 = vector.extract_strided_slice %392 {offsets = [5, 0], sizes = [16, 128], strides = [1, 1]} : vector<32x128xf32> to vector<16x128xf32>
      %397 = vector.broadcast %395 : vector<1x128xf32> to vector<16x128xf32>
      %398 = arith.mulf %396, %397 : vector<16x128xf32>
      %399 = arith.addf %388, %398 : vector<16x128xf32>
      %400 = vector.extract_strided_slice %71 {offsets = [5, 1, 0], sizes = [1, 1, 128], strides = [1, 1, 1]} : vector<7x7x128xf32> to vector<1x1x128xf32>
      %401 = vector.shape_cast %400 : vector<1x1x128xf32> to vector<128xf32>
      %402 = vector.shape_cast %401 : vector<128xf32> to vector<1x128xf32>
      %403 = vector.extract_strided_slice %392 {offsets = [6, 0], sizes = [16, 128], strides = [1, 1]} : vector<32x128xf32> to vector<16x128xf32>
      %404 = vector.broadcast %402 : vector<1x128xf32> to vector<16x128xf32>
      %405 = arith.mulf %403, %404 : vector<16x128xf32>
      %406 = arith.addf %399, %405 : vector<16x128xf32>
      %407 = vector.extract_strided_slice %71 {offsets = [5, 2, 0], sizes = [1, 1, 128], strides = [1, 1, 1]} : vector<7x7x128xf32> to vector<1x1x128xf32>
      %408 = vector.shape_cast %407 : vector<1x1x128xf32> to vector<128xf32>
      %409 = vector.shape_cast %408 : vector<128xf32> to vector<1x128xf32>
      %410 = vector.extract_strided_slice %392 {offsets = [7, 0], sizes = [16, 128], strides = [1, 1]} : vector<32x128xf32> to vector<16x128xf32>
      %411 = vector.broadcast %409 : vector<1x128xf32> to vector<16x128xf32>
      %412 = arith.mulf %410, %411 : vector<16x128xf32>
      %413 = arith.addf %406, %412 : vector<16x128xf32>
      %414 = vector.extract_strided_slice %71 {offsets = [5, 3, 0], sizes = [1, 1, 128], strides = [1, 1, 1]} : vector<7x7x128xf32> to vector<1x1x128xf32>
      %415 = vector.shape_cast %414 : vector<1x1x128xf32> to vector<128xf32>
      %416 = vector.shape_cast %415 : vector<128xf32> to vector<1x128xf32>
      %417 = vector.extract_strided_slice %392 {offsets = [8, 0], sizes = [16, 128], strides = [1, 1]} : vector<32x128xf32> to vector<16x128xf32>
      %418 = vector.broadcast %416 : vector<1x128xf32> to vector<16x128xf32>
      %419 = arith.mulf %417, %418 : vector<16x128xf32>
      %420 = arith.addf %413, %419 : vector<16x128xf32>
      %421 = vector.extract_strided_slice %71 {offsets = [5, 4, 0], sizes = [1, 1, 128], strides = [1, 1, 1]} : vector<7x7x128xf32> to vector<1x1x128xf32>
      %422 = vector.shape_cast %421 : vector<1x1x128xf32> to vector<128xf32>
      %423 = vector.shape_cast %422 : vector<128xf32> to vector<1x128xf32>
      %424 = vector.extract_strided_slice %392 {offsets = [9, 0], sizes = [16, 128], strides = [1, 1]} : vector<32x128xf32> to vector<16x128xf32>
      %425 = vector.broadcast %423 : vector<1x128xf32> to vector<16x128xf32>
      %426 = arith.mulf %424, %425 : vector<16x128xf32>
      %427 = arith.addf %420, %426 : vector<16x128xf32>
      %428 = vector.extract_strided_slice %71 {offsets = [5, 5, 0], sizes = [1, 1, 128], strides = [1, 1, 1]} : vector<7x7x128xf32> to vector<1x1x128xf32>
      %429 = vector.shape_cast %428 : vector<1x1x128xf32> to vector<128xf32>
      %430 = vector.shape_cast %429 : vector<128xf32> to vector<1x128xf32>
      %431 = vector.extract_strided_slice %392 {offsets = [10, 0], sizes = [16, 128], strides = [1, 1]} : vector<32x128xf32> to vector<16x128xf32>
      %432 = vector.broadcast %430 : vector<1x128xf32> to vector<16x128xf32>
      %433 = arith.mulf %431, %432 : vector<16x128xf32>
      %434 = arith.addf %427, %433 : vector<16x128xf32>
      %435 = vector.extract_strided_slice %71 {offsets = [5, 6, 0], sizes = [1, 1, 128], strides = [1, 1, 1]} : vector<7x7x128xf32> to vector<1x1x128xf32>
      %436 = vector.shape_cast %435 : vector<1x1x128xf32> to vector<128xf32>
      %437 = vector.shape_cast %436 : vector<128xf32> to vector<1x128xf32>
      %438 = vector.extract_strided_slice %392 {offsets = [11, 0], sizes = [16, 128], strides = [1, 1]} : vector<32x128xf32> to vector<16x128xf32>
      %439 = vector.broadcast %437 : vector<1x128xf32> to vector<16x128xf32>
      %440 = arith.mulf %438, %439 : vector<16x128xf32>
      %441 = arith.addf %434, %440 : vector<16x128xf32>
      %c6_i32 = arith.constant 6 : i32
      %442 = arith.addi %arg17, %c6_i32 : i32
      %443 = arith.index_cast %442 : i32 to index
      %c0_80 = arith.constant 0 : index
      %c0_81 = arith.constant 0 : index
      %444 = vector.load %arg15[%443, %c0_80, %c0_81] : memref<22x32x128xf32, #tpu.memory_space<vmem>>, vector<1x32x128xf32>
      %445 = vector.shape_cast %444 : vector<1x32x128xf32> to vector<32x128xf32>
      %446 = vector.extract_strided_slice %71 {offsets = [6, 0, 0], sizes = [1, 1, 128], strides = [1, 1, 1]} : vector<7x7x128xf32> to vector<1x1x128xf32>
      %447 = vector.shape_cast %446 : vector<1x1x128xf32> to vector<128xf32>
      %448 = vector.shape_cast %447 : vector<128xf32> to vector<1x128xf32>
      %449 = vector.extract_strided_slice %445 {offsets = [5, 0], sizes = [16, 128], strides = [1, 1]} : vector<32x128xf32> to vector<16x128xf32>
      %450 = vector.broadcast %448 : vector<1x128xf32> to vector<16x128xf32>
      %451 = arith.mulf %449, %450 : vector<16x128xf32>
      %452 = arith.addf %441, %451 : vector<16x128xf32>
      %453 = vector.extract_strided_slice %71 {offsets = [6, 1, 0], sizes = [1, 1, 128], strides = [1, 1, 1]} : vector<7x7x128xf32> to vector<1x1x128xf32>
      %454 = vector.shape_cast %453 : vector<1x1x128xf32> to vector<128xf32>
      %455 = vector.shape_cast %454 : vector<128xf32> to vector<1x128xf32>
      %456 = vector.extract_strided_slice %445 {offsets = [6, 0], sizes = [16, 128], strides = [1, 1]} : vector<32x128xf32> to vector<16x128xf32>
      %457 = vector.broadcast %455 : vector<1x128xf32> to vector<16x128xf32>
      %458 = arith.mulf %456, %457 : vector<16x128xf32>
      %459 = arith.addf %452, %458 : vector<16x128xf32>
      %460 = vector.extract_strided_slice %71 {offsets = [6, 2, 0], sizes = [1, 1, 128], strides = [1, 1, 1]} : vector<7x7x128xf32> to vector<1x1x128xf32>
      %461 = vector.shape_cast %460 : vector<1x1x128xf32> to vector<128xf32>
      %462 = vector.shape_cast %461 : vector<128xf32> to vector<1x128xf32>
      %463 = vector.extract_strided_slice %445 {offsets = [7, 0], sizes = [16, 128], strides = [1, 1]} : vector<32x128xf32> to vector<16x128xf32>
      %464 = vector.broadcast %462 : vector<1x128xf32> to vector<16x128xf32>
      %465 = arith.mulf %463, %464 : vector<16x128xf32>
      %466 = arith.addf %459, %465 : vector<16x128xf32>
      %467 = vector.extract_strided_slice %71 {offsets = [6, 3, 0], sizes = [1, 1, 128], strides = [1, 1, 1]} : vector<7x7x128xf32> to vector<1x1x128xf32>
      %468 = vector.shape_cast %467 : vector<1x1x128xf32> to vector<128xf32>
      %469 = vector.shape_cast %468 : vector<128xf32> to vector<1x128xf32>
      %470 = vector.extract_strided_slice %445 {offsets = [8, 0], sizes = [16, 128], strides = [1, 1]} : vector<32x128xf32> to vector<16x128xf32>
      %471 = vector.broadcast %469 : vector<1x128xf32> to vector<16x128xf32>
      %472 = arith.mulf %470, %471 : vector<16x128xf32>
      %473 = arith.addf %466, %472 : vector<16x128xf32>
      %474 = vector.extract_strided_slice %71 {offsets = [6, 4, 0], sizes = [1, 1, 128], strides = [1, 1, 1]} : vector<7x7x128xf32> to vector<1x1x128xf32>
      %475 = vector.shape_cast %474 : vector<1x1x128xf32> to vector<128xf32>
      %476 = vector.shape_cast %475 : vector<128xf32> to vector<1x128xf32>
      %477 = vector.extract_strided_slice %445 {offsets = [9, 0], sizes = [16, 128], strides = [1, 1]} : vector<32x128xf32> to vector<16x128xf32>
      %478 = vector.broadcast %476 : vector<1x128xf32> to vector<16x128xf32>
      %479 = arith.mulf %477, %478 : vector<16x128xf32>
      %480 = arith.addf %473, %479 : vector<16x128xf32>
      %481 = vector.extract_strided_slice %71 {offsets = [6, 5, 0], sizes = [1, 1, 128], strides = [1, 1, 1]} : vector<7x7x128xf32> to vector<1x1x128xf32>
      %482 = vector.shape_cast %481 : vector<1x1x128xf32> to vector<128xf32>
      %483 = vector.shape_cast %482 : vector<128xf32> to vector<1x128xf32>
      %484 = vector.extract_strided_slice %445 {offsets = [10, 0], sizes = [16, 128], strides = [1, 1]} : vector<32x128xf32> to vector<16x128xf32>
      %485 = vector.broadcast %483 : vector<1x128xf32> to vector<16x128xf32>
      %486 = arith.mulf %484, %485 : vector<16x128xf32>
      %487 = arith.addf %480, %486 : vector<16x128xf32>
      %488 = vector.extract_strided_slice %71 {offsets = [6, 6, 0], sizes = [1, 1, 128], strides = [1, 1, 1]} : vector<7x7x128xf32> to vector<1x1x128xf32>
      %489 = vector.shape_cast %488 : vector<1x1x128xf32> to vector<128xf32>
      %490 = vector.shape_cast %489 : vector<128xf32> to vector<1x128xf32>
      %491 = vector.extract_strided_slice %445 {offsets = [11, 0], sizes = [16, 128], strides = [1, 1]} : vector<32x128xf32> to vector<16x128xf32>
      %492 = vector.broadcast %490 : vector<1x128xf32> to vector<16x128xf32>
      %493 = arith.mulf %491, %492 : vector<16x128xf32>
      %494 = arith.addf %487, %493 : vector<16x128xf32>
      %495 = arith.index_cast %arg17 : i32 to index
      %c0_82 = arith.constant 0 : index
      %c0_83 = arith.constant 0 : index
      %496 = vector.load %arg16[%495, %c0_82, %c0_83] : memref<16x16x128xf32, #tpu.memory_space<vmem>>, vector<1x16x128xf32>
      %497 = vector.shape_cast %496 : vector<1x16x128xf32> to vector<16x128xf32>
      %498 = vector.shape_cast %494 : vector<16x128xf32> to vector<1x16x128xf32>
      tpu.vector_store %arg16[%495, %c0_82, %c0_83], %498 {strides = array<i32>} : memref<16x16x128xf32, #tpu.memory_space<vmem>>, vector<1x16x128xf32>,
    }
    %c16_i32_37 = arith.constant 16 : i32
    %c0_38 = arith.constant 0 : index
    %c0_39 = arith.constant 0 : index
    %c0_40 = arith.constant 0 : index
    %73 = vector.load %arg16[%c0_38, %c0_39, %c0_40] : memref<16x16x128xf32, #tpu.memory_space<vmem>>, vector<16x16x128xf32>
    %74 = vector.shape_cast %73 : vector<16x16x128xf32> to vector<256x128xf32>
    %c0_41 = arith.constant 0 : index
    %c0_42 = arith.constant 0 : index
    %75 = vector.load %arg10[%c0_41, %c0_42] : memref<1x128xf32, #tpu.memory_space<vmem>>, vector<1x128xf32>
    %76 = vector.broadcast %75 : vector<1x128xf32> to vector<256x128xf32>
    %77 = arith.addf %74, %76 : vector<256x128xf32>
    %cst_43 = arith.constant 5.000000e-01 : f32
    %78 = vector.broadcast %cst_43 : f32 to vector<256x128xf32>
    %79 = arith.mulf %78, %48 : vector<256x128xf32>
    %cst_44 = arith.constant 4.471500e-02 : f32
    %80 = vector.broadcast %cst_44 : f32 to vector<256x128xf32>
    %81 = arith.mulf %80, %48 : vector<256x128xf32>
    %82 = arith.mulf %81, %48 : vector<256x128xf32>
    %83 = arith.mulf %82, %48 : vector<256x128xf32>
    %84 = arith.addf %48, %83 : vector<256x128xf32>
    %cst_45 = arith.constant 0.797884583 : f32
    %85 = vector.broadcast %cst_45 : f32 to vector<256x128xf32>
    %86 = arith.mulf %85, %84 : vector<256x128xf32>
    %87 = math.tanh %86 : vector<256x128xf32>
    %cst_46 = arith.constant 1.000000e+00 : f32
    %88 = vector.broadcast %cst_46 : f32 to vector<256x128xf32>
    %89 = arith.addf %88, %87 : vector<256x128xf32>
    %90 = arith.mulf %79, %89 : vector<256x128xf32>
    %91 = arith.mulf %90, %50 : vector<256x128xf32>
    %cst_47 = arith.constant 5.000000e-01 : f32
    %92 = vector.broadcast %cst_47 : f32 to vector<256x128xf32>
    %93 = arith.mulf %92, %49 : vector<256x128xf32>
    %cst_48 = arith.constant 4.471500e-02 : f32
    %94 = vector.broadcast %cst_48 : f32 to vector<256x128xf32>
    %95 = arith.mulf %94, %49 : vector<256x128xf32>
    %96 = arith.mulf %95, %49 : vector<256x128xf32>
    %97 = arith.mulf %96, %49 : vector<256x128xf32>
    %98 = arith.addf %49, %97 : vector<256x128xf32>
    %cst_49 = arith.constant 0.797884583 : f32
    %99 = vector.broadcast %cst_49 : f32 to vector<256x128xf32>
    %100 = arith.mulf %99, %98 : vector<256x128xf32>
    %101 = math.tanh %100 : vector<256x128xf32>
    %cst_50 = arith.constant 1.000000e+00 : f32
    %102 = vector.broadcast %cst_50 : f32 to vector<256x128xf32>
    %103 = arith.addf %102, %101 : vector<256x128xf32>
    %104 = arith.mulf %93, %103 : vector<256x128xf32>
    %105 = arith.mulf %104, %77 : vector<256x128xf32>
    %106 = arith.truncf %91 : vector<256x128xf32> to vector<256x128xbf16>
    %c0_51 = arith.constant 0 : index
    %c0_52 = arith.constant 0 : index
    %107 = vector.load %arg11[%c0_51, %c0_52] : memref<128x128xbf16, #tpu.memory_space<vmem>>, vector<128x128xbf16>
    %cst_53 = arith.constant dense<0.000000e+00> : vector<256x128xf32>
    %108 = tpu.matmul %106, %107, %cst_53 {dimension_numbers = #tpu.dot_dimension_numbers<[1], [0], [0], [1], [0, 0, 1, 1], [], []>} : vector<256x128xbf16>, vector<128x128xbf16>, vector<256x128xf32> -> vector<256x128xf32>
    %109 = arith.truncf %105 : vector<256x128xf32> to vector<256x128xbf16>
    %c0_54 = arith.constant 0 : index
    %c0_55 = arith.constant 0 : index
    %110 = vector.load %arg12[%c0_54, %c0_55] : memref<128x128xbf16, #tpu.memory_space<vmem>>, vector<128x128xbf16>
    %cst_56 = arith.constant dense<0.000000e+00> : vector<256x128xf32>
    %111 = tpu.matmul %109, %110, %cst_56 {dimension_numbers = #tpu.dot_dimension_numbers<[1], [0], [0], [1], [0, 0, 1, 1], [], []>} : vector<256x128xbf16>, vector<128x128xbf16>, vector<256x128xf32> -> vector<256x128xf32>
    %112 = arith.addf %108, %111 : vector<256x128xf32>
    %c0_57 = arith.constant 0 : index
    %c0_58 = arith.constant 0 : index
    %113 = vector.load %arg13[%c0_57, %c0_58] : memref<1x128xf32, #tpu.memory_space<vmem>>, vector<1x128xf32>
    %114 = vector.broadcast %113 : vector<1x128xf32> to vector<256x128xf32>
    %115 = arith.addf %112, %114 : vector<256x128xf32>
    %116 = vector.extract_strided_slice %4 {offsets = [3, 0, 0], sizes = [16, 16, 128], strides = [1, 1, 1]} : vector<22x16x128xf32> to vector<16x16x128xf32>
    %117 = vector.shape_cast %116 : vector<16x16x128xf32> to vector<256x128xf32>
    %118 = arith.addf %115, %117 : vector<256x128xf32>
    %119 = vector.shape_cast %118 : vector<256x128xf32> to vector<16x16x128xf32>
    %c0_59 = arith.constant 0 : index
    %c0_60 = arith.constant 0 : index
    %c0_61 = arith.constant 0 : index
    %c0_62 = arith.constant 0 : index
    %120 = vector.load %arg14[%c0_59, %c0_60, %c0_61, %c0_62] : memref<1x16x16x128xf32, #tpu.memory_space<vmem>>, vector<1x16x16x128xf32>
    %121 = vector.shape_cast %120 : vector<1x16x16x128xf32> to vector<16x16x128xf32>
    %122 = vector.shape_cast %119 : vector<16x16x128xf32> to vector<1x16x16x128xf32>
    tpu.vector_store %arg14[%c0_59, %c0_60, %c0_61, %c0_62], %122 {strides = array<i32>} : memref<1x16x16x128xf32, #tpu.memory_space<vmem>>, vector<1x16x16x128xf32>,
    return
  }
  func.func @transform_0(%arg0: i32, %arg1: i32) -> (i32, i32, i32, i32) {
    %c0_i32 = arith.constant 0 : i32
    %c0_i32_0 = arith.constant 0 : i32
    %c0_i32_1 = arith.constant 0 : i32
    %c0_i32_2 = arith.constant 0 : i32
    return %arg0, %c0_i32, %c0_i32_0, %c0_i32_1 : i32, i32, i32, i32
  }
  func.func @transform_1(%arg0: i32, %arg1: i32) -> (i32, i32) {
    %c0_i32 = arith.constant 0 : i32
    %c0_i32_0 = arith.constant 0 : i32
    %c0_i32_1 = arith.constant 0 : i32
    return %c0_i32, %c0_i32_0 : i32, i32
  }
  func.func @transform_2(%arg0: i32, %arg1: i32) -> (i32, i32) {
    %c0_i32 = arith.constant 0 : i32
    %c0_i32_0 = arith.constant 0 : i32
    %c0_i32_1 = arith.constant 0 : i32
    return %c0_i32, %c0_i32_0 : i32, i32
  }
  func.func @transform_3(%arg0: i32, %arg1: i32) -> (i32, i32) {
    %c0_i32 = arith.constant 0 : i32
    %c0_i32_0 = arith.constant 0 : i32
    %c0_i32_1 = arith.constant 0 : i32
    return %c0_i32, %c0_i32_0 : i32, i32
  }
  func.func @transform_4(%arg0: i32, %arg1: i32) -> (i32, i32) {
    %c0_i32 = arith.constant 0 : i32
    %c0_i32_0 = arith.constant 0 : i32
    %c0_i32_1 = arith.constant 0 : i32
    return %c0_i32, %c0_i32_0 : i32, i32
  }
  func.func @transform_5(%arg0: i32, %arg1: i32) -> (i32, i32) {
    %c0_i32 = arith.constant 0 : i32
    %c0_i32_0 = arith.constant 0 : i32
    %c0_i32_1 = arith.constant 0 : i32
    return %c0_i32, %c0_i32_0 : i32, i32
  }
  func.func @transform_6(%arg0: i32, %arg1: i32) -> (i32, i32) {
    %c0_i32 = arith.constant 0 : i32
    %c0_i32_0 = arith.constant 0 : i32
    %c0_i32_1 = arith.constant 0 : i32
    return %c0_i32, %c0_i32_0 : i32, i32
  }
  func.func @transform_7(%arg0: i32, %arg1: i32) -> (i32, i32, i32) {
    %c0_i32 = arith.constant 0 : i32
    %c0_i32_0 = arith.constant 0 : i32
    %c0_i32_1 = arith.constant 0 : i32
    %c0_i32_2 = arith.constant 0 : i32
    return %c0_i32, %c0_i32_0, %c0_i32_1 : i32, i32, i32
  }
  func.func @transform_8(%arg0: i32, %arg1: i32) -> (i32, i32) {
    %c0_i32 = arith.constant 0 : i32
    %c0_i32_0 = arith.constant 0 : i32
    %c0_i32_1 = arith.constant 0 : i32
    return %c0_i32, %c0_i32_0 : i32, i32
  }
  func.func @transform_9(%arg0: i32, %arg1: i32) -> (i32, i32) {
    %c0_i32 = arith.constant 0 : i32
    %c0_i32_0 = arith.constant 0 : i32
    %c0_i32_1 = arith.constant 0 : i32
    return %c0_i32, %c0_i32_0 : i32, i32
  }
  func.func @transform_10(%arg0: i32, %arg1: i32) -> (i32, i32) {
    %c0_i32 = arith.constant 0 : i32
    %c0_i32_0 = arith.constant 0 : i32
    %c0_i32_1 = arith.constant 0 : i32
    return %c0_i32, %c0_i32_0 : i32, i32
  }
  func.func @transform_11(%arg0: i32, %arg1: i32) -> (i32, i32) {
    %c0_i32 = arith.constant 0 : i32
    %c0_i32_0 = arith.constant 0 : i32
    %c0_i32_1 = arith.constant 0 : i32
    return %c0_i32, %c0_i32_0 : i32, i32
  }
  func.func @transform_12(%arg0: i32, %arg1: i32) -> (i32, i32, i32, i32) {
    %c0_i32 = arith.constant 0 : i32
    %c0_i32_0 = arith.constant 0 : i32
    %c0_i32_1 = arith.constant 0 : i32
    return %arg0, %arg1, %c0_i32, %c0_i32_0 : i32, i32, i32, i32
  }
}

</mosaic_0001>

<llo_original>
// kernel: tpu_custom_call.1
$region0: #{tpu_custom_call.1}
  #allocation0 [shape = 'u32[]', space=smem, size = 0x4, offset = 0x4, fixed_abs, tag = 'smem constant byte address 0x4 - core index']
  #allocation1 [shape = 'u32[144,128]{1,0:T(1,128)}', space=vmem, size = 0x12000, scoped, tag = 'internal scratch']
  #allocation2 [shape = 'f32[22,32,128]{2,1,0:T(8,128)}', space=vmem, size = 0x58000, scoped, tag = 'scratch operand']
  #allocation3 [shape = 'f32[16,16,128]{2,1,0:T(8,128)}', space=vmem, size = 0x20000, scoped, tag = 'scratch operand']
  %s0 = inlined_call_operand.hbm [shape: f32[2,22,16,128], index: 0, kind: input, shape index: {}]
  %s1 = inlined_call_operand.vmem [shape: f32[1,128], index: 1, kind: input, shape index: {}]
  %s2 = inlined_call_operand.vmem [shape: f32[1,128], index: 2, kind: input, shape index: {}]
  %s3 = inlined_call_operand.hbm [shape: bf16[128,384], index: 3, kind: input, shape index: {}]
  %s4 = inlined_call_operand.vmem [shape: f32[1,384], index: 4, kind: input, shape index: {}]
  %s5 = inlined_call_operand.hbm [shape: bf16[128,128], index: 5, kind: input, shape index: {}]
  %s6 = inlined_call_operand.vmem [shape: f32[1,128], index: 6, kind: input, shape index: {}]
  %s7 = inlined_call_operand.hbm [shape: f32[7,7,128], index: 7, kind: input, shape index: {}]
  %s8 = inlined_call_operand.vmem [shape: f32[1,128], index: 8, kind: input, shape index: {}]
  %s9 = inlined_call_operand.hbm [shape: bf16[128,128], index: 9, kind: input, shape index: {}]
  %s10 = inlined_call_operand.hbm [shape: bf16[128,128], index: 10, kind: input, shape index: {}]
  %s11 = inlined_call_operand.vmem [shape: f32[1,128], index: 11, kind: input, shape index: {}]
  %s12 = inlined_call_operand.hbm [shape: f32[2,16,16,128], index: 12, kind: output, shape index: {}]
  %s13 = sld [smem:[#allocation0]]
  $region112: #{tpu_custom_call.1} parent=0
    _
  %s15 = ssub.s32 1, %s13
  %s16 = scalar_select 0, %s15, %s13
  $region1: #{tpu_custom_call.1} parent=0
    #allocation4 [shape = 'u8[360448]{0}', space=vmem, size = 0x58000, scoped, tag = 'input window, operand 0']
    #allocation5 [shape = 's32[2]{0}', space=sflag, size = 0x8, scoped, tag = 'scoped memory for tpu_custom_call.1']
    #allocation6 [shape = 's32[2]{0}', space=sflag, size = 0x8, scoped, tag = 'scoped memory for tpu_custom_call.1']
    #allocation7 [shape = 'u8[98304]{0}', space=vmem, size = 0x18000, scoped, tag = 'input window, operand 3, single buffered']
    #allocation8 [shape = 's32[1]{0}', space=sflag, size = 0x4, scoped, tag = 'scoped memory for tpu_custom_call.1']
    #allocation9 [shape = 'u8[32768]{0}', space=vmem, size = 0x8000, scoped, tag = 'input window, operand 5, single buffered']
    #allocation10 [shape = 'u8[28672]{0}', space=vmem, size = 0x7000, scoped, tag = 'input window, operand 7, single buffered']
    #allocation11 [shape = 's32[1]{0}', space=sflag, size = 0x4, scoped, tag = 'scoped memory for tpu_custom_call.1']
    #allocation12 [shape = 'u8[32768]{0}', space=vmem, size = 0x8000, scoped, tag = 'input window, operand 9, single buffered']
    #allocation13 [shape = 'u8[32768]{0}', space=vmem, size = 0x8000, scoped, tag = 'input window, operand 10, single buffered']
    #allocation14 [shape = 's32[1]{0}', space=sflag, size = 0x4, scoped, tag = 'scoped memory for tpu_custom_call.1']
    #allocation15 [shape = 'u8[262144]{0}', space=vmem, size = 0x40000, scoped, tag = 'output window, operand 0']
    %17 = vsyncpa [#allocation5], 0
    %s18 = scalar_lea.sflag [#allocation5], 1
    %19 = vsyncpa %s18, 0
    %20 = vsyncpa [#allocation8], 0
    %21 = vsyncpa [#allocation11], 0
    %22 = vsyncpa [#allocation14], 0
    %23 = vsyncpa [#allocation6], 0
    %s24 = scalar_lea.sflag [#allocation6], 1
    %25 = vsyncpa %s24, 0
    loop: start=0, step=1, limit=4
    $region2: #{tpu_custom_call.1} parent=1 // loop_pre_header
      _
    $region3: #{tpu_custom_call.1} parent=1 // loop_header
      %s27 = sphi 0, %s31
      %p28 = scmp.ge.s32.totalorder %s27, 4
      %s34 = sphi 0, %s46
      %s35 = sphi 0, %s42
      %s36 = sphi 0, %s34
      %s37 = sphi 0, %s35
      %s38 = sphi 0, %s36
      %s39 = sphi 0, %s37
      %s49 = sphi 0, %s51
      %s52 = sphi 0, %s49
      %s53 = sphi 0, %s52
      %s69 = sphi 0, %s53
      %s73 = sphi 0, %s73
      %s75 = sphi 0, %s73
      %s76 = sphi 0, %s75
      %s90 = sphi 0, %s76
      %s94 = sphi 0, %s94
      %s96 = sphi 0, %s94
      %s97 = sphi 0, %s96
      %s111 = sphi 0, %s97
      %s115 = sphi 0, %s115
      %s117 = sphi 0, %s115
      %s118 = sphi 0, %s117
      %s132 = sphi 0, %s118
      %s136 = sphi 0, %s136
      %s138 = sphi 0, %s136
      %s139 = sphi 0, %s138
      %s153 = sphi 0, %s139
      %s157 = sphi 0, %s157
      %s159 = sphi 0, %s157
      %s160 = sphi 0, %s159
      %s174 = sphi 0, %s160
      %s178 = sphi 0, %s178
      %s180 = sphi 0, %s178
      %s181 = sphi 0, %s180
      %s195 = sphi 0, %s181
      %s199 = sphi 0, %s199
      %s201 = sphi 0, %s199
      %s202 = sphi 0, %s201
      %s216 = sphi 0, %s202
      %s220 = sphi 0, %s220
      %s222 = sphi 0, %s220
      %s223 = sphi 0, %s222
      %s237 = sphi 0, %s223
      %s241 = sphi 0, %s241
      %s243 = sphi 0, %s241
      %s244 = sphi 0, %s243
      %s258 = sphi 0, %s244
      %s262 = sphi 0, %s262
      %s264 = sphi 0, %s262
      %s265 = sphi 0, %s264
      %s279 = sphi 0, %s265
      %s283 = sphi 0, %s283
      %s285 = sphi 0, %s283
      %s286 = sphi 0, %s285
      %s300 = sphi 0, %s286
      %s308 = sphi 0, %s310
      %s311 = sphi 0, %s308
      %s312 = sphi 0, %s311
      %s328 = sphi 0, %s312
    $region4: #{tpu_custom_call.1} parent=1 // loop_header_branch
      %30 = sbr.rel (%p28) target = $region8
    $region5: #{tpu_custom_call.1} parent=1 // loop_body
      %s32 = ssub.s32 %s27, 1
      %s33 = ssub.s32 %s27, 2
      %s40 = sadd.s32 1, %s35
      %p41 = scmp.ge.s32.totalorder %s40, 1
      %s42 = scalar_select %p41, 0, %s40
      %s43 = sadd.s32 1, %s34
      %s44 = scalar_select %p41, %s43, %s34
      %p45 = scmp.ge.s32.totalorder %s44, 2
      %s46 = scalar_select %p45, 0, %s44
      %s47 = ssub.s32 %s34, %s46
      %p48 = scmp.eq.s32.totalorder %s47, 0
      %s50 = sadd.s32 %s49, 1
      %s51 = scalar_select %p48, %s49, %s50
      %p54 = pneg %p48
      %p55 = scmp.eq.s32.totalorder %s27, 1
      %p56 = por %p54, %p55
      %p57 = scmp.ne.s32.totalorder %s49, %s52
      %p58 = scmp.eq.s32.totalorder %s27, 0
      %p59 = por %p57, %p58
      %p60 = scmp.ne.s32.totalorder %s49, %s52
      %p61 = scmp.eq.s32.totalorder %s32, 1
      %p62 = por %p60, %p61
      %p63 = scmp.ne.s32.totalorder %s52, %s53
      %p64 = scmp.eq.s32.totalorder %s32, 0
      %p65 = por %p63, %p64
      %p66 = scmp.ne.s32.totalorder %s52, %s53
      %p67 = scmp.eq.s32.totalorder %s33, 1
      %p68 = por %p66, %p67
      %p70 = scmp.ne.s32.totalorder %s53, %s69
      %p71 = scmp.eq.s32.totalorder %s33, 0
      %p72 = por %p70, %p71
      %s74 = sadd.s32 %s73, 1
      %p77 = scmp.eq.s32.totalorder %s27, 1
      %p78 = scmp.ne.s32.totalorder %s73, %s75
      %p79 = scmp.eq.s32.totalorder %s27, 0
      %p80 = por %p78, %p79
      %p81 = scmp.ne.s32.totalorder %s73, %s75
      %p82 = scmp.eq.s32.totalorder %s32, 1
      %p83 = por %p81, %p82
      %p84 = scmp.ne.s32.totalorder %s75, %s76
      %p85 = scmp.eq.s32.totalorder %s32, 0
      %p86 = por %p84, %p85
      %p87 = scmp.ne.s32.totalorder %s75, %s76
      %p88 = scmp.eq.s32.totalorder %s33, 1
      %p89 = por %p87, %p88
      %p91 = scmp.ne.s32.totalorder %s76, %s90
      %p92 = scmp.eq.s32.totalorder %s33, 0
      %p93 = por %p91, %p92
      %s95 = sadd.s32 %s94, 1
      %p98 = scmp.eq.s32.totalorder %s27, 1
      %p99 = scmp.ne.s32.totalorder %s94, %s96
      %p100 = scmp.eq.s32.totalorder %s27, 0
      %p101 = por %p99, %p100
      %p102 = scmp.ne.s32.totalorder %s94, %s96
      %p103 = scmp.eq.s32.totalorder %s32, 1
      %p104 = por %p102, %p103
      %p105 = scmp.ne.s32.totalorder %s96, %s97
      %p106 = scmp.eq.s32.totalorder %s32, 0
      %p107 = por %p105, %p106
      %p108 = scmp.ne.s32.totalorder %s96, %s97
      %p109 = scmp.eq.s32.totalorder %s33, 1
      %p110 = por %p108, %p109
      %p112 = scmp.ne.s32.totalorder %s97, %s111
      %p113 = scmp.eq.s32.totalorder %s33, 0
      %p114 = por %p112, %p113
      %s116 = sadd.s32 %s115, 1
      %p119 = scmp.eq.s32.totalorder %s27, 1
      %p120 = scmp.ne.s32.totalorder %s115, %s117
      %p121 = scmp.eq.s32.totalorder %s27, 0
      %p122 = por %p120, %p121
      %p123 = scmp.ne.s32.totalorder %s115, %s117
      %p124 = scmp.eq.s32.totalorder %s32, 1
      %p125 = por %p123, %p124
      %p126 = scmp.ne.s32.totalorder %s117, %s118
      %p127 = scmp.eq.s32.totalorder %s32, 0
      %p128 = por %p126, %p127
      %p129 = scmp.ne.s32.totalorder %s117, %s118
      %p130 = scmp.eq.s32.totalorder %s33, 1
      %p131 = por %p129, %p130
      %p133 = scmp.ne.s32.totalorder %s118, %s132
      %p134 = scmp.eq.s32.totalorder %s33, 0
      %p135 = por %p133, %p134
      %s137 = sadd.s32 %s136, 1
      %p140 = scmp.eq.s32.totalorder %s27, 1
      %p141 = scmp.ne.s32.totalorder %s136, %s138
      %p142 = scmp.eq.s32.totalorder %s27, 0
      %p143 = por %p141, %p142
      %p144 = scmp.ne.s32.totalorder %s136, %s138
      %p145 = scmp.eq.s32.totalorder %s32, 1
      %p146 = por %p144, %p145
      %p147 = scmp.ne.s32.totalorder %s138, %s139
      %p148 = scmp.eq.s32.totalorder %s32, 0
      %p149 = por %p147, %p148
      %p150 = scmp.ne.s32.totalorder %s138, %s139
      %p151 = scmp.eq.s32.totalorder %s33, 1
      %p152 = por %p150, %p151
      %p154 = scmp.ne.s32.totalorder %s139, %s153
      %p155 = scmp.eq.s32.totalorder %s33, 0
      %p156 = por %p154, %p155
      %s158 = sadd.s32 %s157, 1
      %p161 = scmp.eq.s32.totalorder %s27, 1
      %p162 = scmp.ne.s32.totalorder %s157, %s159
      %p163 = scmp.eq.s32.totalorder %s27, 0
      %p164 = por %p162, %p163
      %p165 = scmp.ne.s32.totalorder %s157, %s159
      %p166 = scmp.eq.s32.totalorder %s32, 1
      %p167 = por %p165, %p166
      %p168 = scmp.ne.s32.totalorder %s159, %s160
      %p169 = scmp.eq.s32.totalorder %s32, 0
      %p170 = por %p168, %p169
      %p171 = scmp.ne.s32.totalorder %s159, %s160
      %p172 = scmp.eq.s32.totalorder %s33, 1
      %p173 = por %p171, %p172
      %p175 = scmp.ne.s32.totalorder %s160, %s174
      %p176 = scmp.eq.s32.totalorder %s33, 0
      %p177 = por %p175, %p176
      %s179 = sadd.s32 %s178, 1
      %p182 = scmp.eq.s32.totalorder %s27, 1
      %p183 = scmp.ne.s32.totalorder %s178, %s180
      %p184 = scmp.eq.s32.totalorder %s27, 0
      %p185 = por %p183, %p184
      %p186 = scmp.ne.s32.totalorder %s178, %s180
      %p187 = scmp.eq.s32.totalorder %s32, 1
      %p188 = por %p186, %p187
      %p189 = scmp.ne.s32.totalorder %s180, %s181
      %p190 = scmp.eq.s32.totalorder %s32, 0
      %p191 = por %p189, %p190
      %p192 = scmp.ne.s32.totalorder %s180, %s181
      %p193 = scmp.eq.s32.totalorder %s33, 1
      %p194 = por %p192, %p193
      %p196 = scmp.ne.s32.totalorder %s181, %s195
      %p197 = scmp.eq.s32.totalorder %s33, 0
      %p198 = por %p196, %p197
      %s200 = sadd.s32 %s199, 1
      %p203 = scmp.eq.s32.totalorder %s27, 1
      %p204 = scmp.ne.s32.totalorder %s199, %s201
      %p205 = scmp.eq.s32.totalorder %s27, 0
      %p206 = por %p204, %p205
      %p207 = scmp.ne.s32.totalorder %s199, %s201
      %p208 = scmp.eq.s32.totalorder %s32, 1
      %p209 = por %p207, %p208
      %p210 = scmp.ne.s32.totalorder %s201, %s202
      %p211 = scmp.eq.s32.totalorder %s32, 0
      %p212 = por %p210, %p211
      %p213 = scmp.ne.s32.totalorder %s201, %s202
      %p214 = scmp.eq.s32.totalorder %s33, 1
      %p215 = por %p213, %p214
      %p217 = scmp.ne.s32.totalorder %s202, %s216
      %p218 = scmp.eq.s32.totalorder %s33, 0
      %p219 = por %p217, %p218
      %s221 = sadd.s32 %s220, 1
      %p224 = scmp.eq.s32.totalorder %s27, 1
      %p225 = scmp.ne.s32.totalorder %s220, %s222
      %p226 = scmp.eq.s32.totalorder %s27, 0
      %p227 = por %p225, %p226
      %p228 = scmp.ne.s32.totalorder %s220, %s222
      %p229 = scmp.eq.s32.totalorder %s32, 1
      %p230 = por %p228, %p229
      %p231 = scmp.ne.s32.totalorder %s222, %s223
      %p232 = scmp.eq.s32.totalorder %s32, 0
      %p233 = por %p231, %p232
      %p234 = scmp.ne.s32.totalorder %s222, %s223
      %p235 = scmp.eq.s32.totalorder %s33, 1
      %p236 = por %p234, %p235
      %p238 = scmp.ne.s32.totalorder %s223, %s237
      %p239 = scmp.eq.s32.totalorder %s33, 0
      %p240 = por %p238, %p239
      %s242 = sadd.s32 %s241, 1
      %p245 = scmp.eq.s32.totalorder %s27, 1
      %p246 = scmp.ne.s32.totalorder %s241, %s243
      %p247 = scmp.eq.s32.totalorder %s27, 0
      %p248 = por %p246, %p247
      %p249 = scmp.ne.s32.totalorder %s241, %s243
      %p250 = scmp.eq.s32.totalorder %s32, 1
      %p251 = por %p249, %p250
      %p252 = scmp.ne.s32.totalorder %s243, %s244
      %p253 = scmp.eq.s32.totalorder %s32, 0
      %p254 = por %p252, %p253
      %p255 = scmp.ne.s32.totalorder %s243, %s244
      %p256 = scmp.eq.s32.totalorder %s33, 1
      %p257 = por %p255, %p256
      %p259 = scmp.ne.s32.totalorder %s244, %s258
      %p260 = scmp.eq.s32.totalorder %s33, 0
      %p261 = por %p259, %p260
      %s263 = sadd.s32 %s262, 1
      %p266 = scmp.eq.s32.totalorder %s27, 1
      %p267 = scmp.ne.s32.totalorder %s262, %s264
      %p268 = scmp.eq.s32.totalorder %s27, 0
      %p269 = por %p267, %p268
      %p270 = scmp.ne.s32.totalorder %s262, %s264
      %p271 = scmp.eq.s32.totalorder %s32, 1
      %p272 = por %p270, %p271
      %p273 = scmp.ne.s32.totalorder %s264, %s265
      %p274 = scmp.eq.s32.totalorder %s32, 0
      %p275 = por %p273, %p274
      %p276 = scmp.ne.s32.totalorder %s264, %s265
      %p277 = scmp.eq.s32.totalorder %s33, 1
      %p278 = por %p276, %p277
      %p280 = scmp.ne.s32.totalorder %s265, %s279
      %p281 = scmp.eq.s32.totalorder %s33, 0
      %p282 = por %p280, %p281
      %s284 = sadd.s32 %s283, 1
      %p287 = scmp.eq.s32.totalorder %s27, 1
      %p288 = scmp.ne.s32.totalorder %s283, %s285
      %p289 = scmp.eq.s32.totalorder %s27, 0
      %p290 = por %p288, %p289
      %p291 = scmp.ne.s32.totalorder %s283, %s285
      %p292 = scmp.eq.s32.totalorder %s32, 1
      %p293 = por %p291, %p292
      %p294 = scmp.ne.s32.totalorder %s285, %s286
      %p295 = scmp.eq.s32.totalorder %s32, 0
      %p296 = por %p294, %p295
      %p297 = scmp.ne.s32.totalorder %s285, %s286
      %p298 = scmp.eq.s32.totalorder %s33, 1
      %p299 = por %p297, %p298
      %p301 = scmp.ne.s32.totalorder %s286, %s300
      %p302 = scmp.eq.s32.totalorder %s33, 0
      %p303 = por %p301, %p302
      %s304 = ssub.s32 %s34, %s46
      %s305 = ssub.s32 %s35, %s42
      %s306 = sor.u32 %s304, %s305
      %p307 = scmp.eq.s32.totalorder %s306, 0
      %s309 = sadd.s32 %s308, 1
      %s310 = scalar_select %p307, %s308, %s309
      %p313 = pneg %p307
      %p314 = scmp.eq.s32.totalorder %s27, 1
      %p315 = por %p313, %p314
      %p316 = scmp.ne.s32.totalorder %s308, %s311
      %p317 = scmp.eq.s32.totalorder %s27, 0
      %p318 = por %p316, %p317
      %p319 = scmp.ne.s32.totalorder %s308, %s311
      %p320 = scmp.eq.s32.totalorder %s32, 1
      %p321 = por %p319, %p320
      %p322 = scmp.ne.s32.totalorder %s311, %s312
      %p323 = scmp.eq.s32.totalorder %s32, 0
      %p324 = por %p322, %p323
      %p325 = scmp.ne.s32.totalorder %s311, %s312
      %p326 = scmp.eq.s32.totalorder %s33, 1
      %p327 = por %p325, %p326
      %p329 = scmp.ne.s32.totalorder %s312, %s328
      %p330 = scmp.eq.s32.totalorder %s33, 0
      %p331 = por %p329, %p330
      %p332 = scmp.le.s32.totalorder 1, %s27
      %p333 = scmp.lt.s32.totalorder %s27, 3
      %p334 = pnand %p332, %p333
      %p335 = pneg %p334
      // Predicated region
      $region9: #{tpu_custom_call.1} parent=5 // pred_check
        _
      $region10: #{tpu_custom_call.1} parent=5 // pred_check_branch
        %337 = sbr.rel (%p334) target = $region12
      $region11: #{tpu_custom_call.1} parent=5 // pred_region
        %s338 = ssub.s32 %s27, 1
        // Predicated region
        $region13: #{tpu_custom_call.1} parent=11 // pred_check
          %p339 = pneg %p86
        $region14: #{tpu_custom_call.1} parent=11 // pred_check_branch
          %341 = sbr.rel (%p339) target = $region16
        $region15: #{tpu_custom_call.1} parent=11 // pred_region
          _
        $region16: #{tpu_custom_call.1} parent=11 // pred_fallthru
          _
        // Predicated region
        $region17: #{tpu_custom_call.1} parent=11 // pred_check
          %p342 = pneg %p107
        $region18: #{tpu_custom_call.1} parent=11 // pred_check_branch
          %344 = sbr.rel (%p342) target = $region20
        $region19: #{tpu_custom_call.1} parent=11 // pred_region
          _
        $region20: #{tpu_custom_call.1} parent=11 // pred_fallthru
          _
        // Predicated region
        $region21: #{tpu_custom_call.1} parent=11 // pred_check
          %p345 = pneg %p128
        $region22: #{tpu_custom_call.1} parent=11 // pred_check_branch
          %347 = sbr.rel (%p345) target = $region24
        $region23: #{tpu_custom_call.1} parent=11 // pred_region
          %s349 = ssub.s32 3072, 3072
          %350 = vsyncadd [#allocation8], %s349
          %s351 = sshll.u32 [#allocation7], 4
          %s352 = int_to_ptr.vmem [resolvable:$true] %s351
          %357 = dma.hbm_to_vmem [thread:$0]  %s3, 3072, %s352, [#allocation8], 192, 192, 12
        $region24: #{tpu_custom_call.1} parent=11 // pred_fallthru
          _
        // Predicated region
        $region25: #{tpu_custom_call.1} parent=11 // pred_check
          %p358 = pneg %p149
        $region26: #{tpu_custom_call.1} parent=11 // pred_check_branch
          %360 = sbr.rel (%p358) target = $region28
        $region27: #{tpu_custom_call.1} parent=11 // pred_region
          _
        $region28: #{tpu_custom_call.1} parent=11 // pred_fallthru
          _
        // Predicated region
        $region29: #{tpu_custom_call.1} parent=11 // pred_check
          %p361 = pneg %p170
        $region30: #{tpu_custom_call.1} parent=11 // pred_check_branch
          %363 = sbr.rel (%p361) target = $region32
        $region31: #{tpu_custom_call.1} parent=11 // pred_region
          %s365 = ssub.s32 1024, 1024
          %366 = vsyncadd [#allocation8], %s365
          %s367 = sshll.u32 [#allocation9], 4
          %s368 = int_to_ptr.vmem [resolvable:$true] %s367
          %373 = dma.hbm_to_vmem [thread:$0]  %s5, 1024, %s368, [#allocation8], 64, 64, 4
        $region32: #{tpu_custom_call.1} parent=11 // pred_fallthru
          _
        // Predicated region
        $region33: #{tpu_custom_call.1} parent=11 // pred_check
          %p374 = pneg %p191
        $region34: #{tpu_custom_call.1} parent=11 // pred_check_branch
          %376 = sbr.rel (%p374) target = $region36
        $region35: #{tpu_custom_call.1} parent=11 // pred_region
          _
        $region36: #{tpu_custom_call.1} parent=11 // pred_fallthru
          _
        // Predicated region
        $region37: #{tpu_custom_call.1} parent=11 // pred_check
          %p377 = pneg %p212
        $region38: #{tpu_custom_call.1} parent=11 // pred_check_branch
          %379 = sbr.rel (%p377) target = $region40
        $region39: #{tpu_custom_call.1} parent=11 // pred_region
          %s381 = ssub.s32 896, 896
          %382 = vsyncadd [#allocation11], %s381
          %s383 = sshll.u32 [#allocation10], 4
          %s384 = int_to_ptr.vmem [resolvable:$true] %s383
          %389 = dma.hbm_to_vmem [thread:$0]  %s7, 896, %s384, [#allocation11], 128, 128, 8
        $region40: #{tpu_custom_call.1} parent=11 // pred_fallthru
          _
        // Predicated region
        $region41: #{tpu_custom_call.1} parent=11 // pred_check
          %p390 = pneg %p233
        $region42: #{tpu_custom_call.1} parent=11 // pred_check_branch
          %392 = sbr.rel (%p390) target = $region44
        $region43: #{tpu_custom_call.1} parent=11 // pred_region
          _
        $region44: #{tpu_custom_call.1} parent=11 // pred_fallthru
          _
        // Predicated region
        $region45: #{tpu_custom_call.1} parent=11 // pred_check
          %p393 = pneg %p254
        $region46: #{tpu_custom_call.1} parent=11 // pred_check_branch
          %395 = sbr.rel (%p393) target = $region48
        $region47: #{tpu_custom_call.1} parent=11 // pred_region
          %s397 = ssub.s32 1024, 1024
          %398 = vsyncadd [#allocation11], %s397
          %s399 = sshll.u32 [#allocation12], 4
          %s400 = int_to_ptr.vmem [resolvable:$true] %s399
          %405 = dma.hbm_to_vmem [thread:$0]  %s9, 1024, %s400, [#allocation11], 64, 64, 4
        $region48: #{tpu_custom_call.1} parent=11 // pred_fallthru
          _
        // Predicated region
        $region49: #{tpu_custom_call.1} parent=11 // pred_check
          %p406 = pneg %p275
        $region50: #{tpu_custom_call.1} parent=11 // pred_check_branch
          %408 = sbr.rel (%p406) target = $region52
        $region51: #{tpu_custom_call.1} parent=11 // pred_region
          %s410 = ssub.s32 1024, 1024
          %411 = vsyncadd [#allocation14], %s410
          %s412 = sshll.u32 [#allocation13], 4
          %s413 = int_to_ptr.vmem [resolvable:$true] %s412
          %418 = dma.hbm_to_vmem [thread:$0]  %s10, 1024, %s413, [#allocation14], 64, 64, 4
        $region52: #{tpu_custom_call.1} parent=11 // pred_fallthru
          _
        // Predicated region
        $region53: #{tpu_custom_call.1} parent=11 // pred_check
          %p419 = pneg %p296
        $region54: #{tpu_custom_call.1} parent=11 // pred_check_branch
          %421 = sbr.rel (%p419) target = $region56
        $region55: #{tpu_custom_call.1} parent=11 // pred_region
          _
        $region56: #{tpu_custom_call.1} parent=11 // pred_fallthru
          _
      $region12: #{tpu_custom_call.1} parent=5 // pred_fallthru
        _
      %p422 = scmp.lt.s32.totalorder %s27, 2
      // Predicated region
      $region57: #{tpu_custom_call.1} parent=5 // pred_check
        %p423 = pneg %p422
      $region58: #{tpu_custom_call.1} parent=5 // pred_check_branch
        %425 = sbr.rel (%p423) target = $region60
      $region59: #{tpu_custom_call.1} parent=5 // pred_region
        // Predicated region
        $region61: #{tpu_custom_call.1} parent=59 // pred_check
          %p426 = pneg %p59
        $region62: #{tpu_custom_call.1} parent=59 // pred_check_branch
          %428 = sbr.rel (%p426) target = $region64
        $region63: #{tpu_custom_call.1} parent=59 // pred_region
          %s429 = sand.u32 %s49, 1
          %s430 = scalar_lea.sflag [#allocation5], %s429
          %s431 = sand.u32 %s49, 1
          %s432 = smul.addr %s431, 352
          %s433 = scalar_lea.vmem [#allocation4], %s432
          %s435 = ssub.s32 5632, 5632
          %436 = vsyncadd %s430, %s435
          %s437 = smul.addr %s34, 44
          %s438 = smul.addr %s437, 128
          %s439 = scalar_lea.hbm %s0, %s438
          %s440 = sshll.u32 %s433, 4
          %s441 = int_to_ptr.vmem [resolvable:$true] %s440
          %446 = dma.hbm_to_vmem [thread:$0]  %s439, 5632, %s441, %s430, 128, 128, 8
        $region64: #{tpu_custom_call.1} parent=59 // pred_fallthru
          _
      $region60: #{tpu_custom_call.1} parent=5 // pred_fallthru
        _
      %p447 = scmp.le.s32.totalorder 1, %s27
      %p448 = scmp.lt.s32.totalorder %s27, 3
      %p449 = pnand %p447, %p448
      %p450 = pneg %p449
      // Predicated region
      $region65: #{tpu_custom_call.1} parent=5 // pred_check
        _
      $region66: #{tpu_custom_call.1} parent=5 // pred_check_branch
        %452 = sbr.rel (%p449) target = $region68
      $region67: #{tpu_custom_call.1} parent=5 // pred_region
        %s453 = ssub.s32 %s27, 1
        %s454 = sand.u32 %s52, 1
        %s455 = scalar_lea.sflag [#allocation5], %s454
        %s456 = sand.u32 %s52, 1
        %s457 = smul.addr %s456, 352
        %s458 = scalar_lea.vmem [#allocation4], %s457
        // Predicated region
        $region69: #{tpu_custom_call.1} parent=67 // pred_check
          %p459 = pneg %p65
        $region70: #{tpu_custom_call.1} parent=67 // pred_check_branch
          %461 = sbr.rel (%p459) target = $region72
        $region71: #{tpu_custom_call.1} parent=67 // pred_region
          %462 = dma.done %s455, 5632
        $region72: #{tpu_custom_call.1} parent=67 // pred_fallthru
          _
        // Predicated region
        $region73: #{tpu_custom_call.1} parent=67 // pred_check
          %p463 = pneg %p128
        $region74: #{tpu_custom_call.1} parent=67 // pred_check_branch
          %465 = sbr.rel (%p463) target = $region76
        $region75: #{tpu_custom_call.1} parent=67 // pred_region
          %466 = dma.done [#allocation8], 3072
        $region76: #{tpu_custom_call.1} parent=67 // pred_fallthru
          _
        // Predicated region
        $region77: #{tpu_custom_call.1} parent=67 // pred_check
          %p467 = pneg %p170
        $region78: #{tpu_custom_call.1} parent=67 // pred_check_branch
          %469 = sbr.rel (%p467) target = $region80
        $region79: #{tpu_custom_call.1} parent=67 // pred_region
          %470 = dma.done [#allocation8], 1024
        $region80: #{tpu_custom_call.1} parent=67 // pred_fallthru
          _
        // Predicated region
        $region81: #{tpu_custom_call.1} parent=67 // pred_check
          %p471 = pneg %p212
        $region82: #{tpu_custom_call.1} parent=67 // pred_check_branch
          %473 = sbr.rel (%p471) target = $region84
        $region83: #{tpu_custom_call.1} parent=67 // pred_region
          %474 = dma.done [#allocation11], 896
        $region84: #{tpu_custom_call.1} parent=67 // pred_fallthru
          _
        // Predicated region
        $region85: #{tpu_custom_call.1} parent=67 // pred_check
          %p475 = pneg %p254
        $region86: #{tpu_custom_call.1} parent=67 // pred_check_branch
          %477 = sbr.rel (%p475) target = $region88
        $region87: #{tpu_custom_call.1} parent=67 // pred_region
          %478 = dma.done [#allocation11], 1024
        $region88: #{tpu_custom_call.1} parent=67 // pred_fallthru
          _
        // Predicated region
        $region89: #{tpu_custom_call.1} parent=67 // pred_check
          %p479 = pneg %p275
        $region90: #{tpu_custom_call.1} parent=67 // pred_check_branch
          %481 = sbr.rel (%p479) target = $region92
        $region91: #{tpu_custom_call.1} parent=67 // pred_region
          %482 = dma.done [#allocation14], 1024
        $region92: #{tpu_custom_call.1} parent=67 // pred_fallthru
          _
        %s483 = sand.u32 %s52, 1
        %s484 = scalar_lea.sflag [#allocation5], %s483
        %s485 = sand.u32 %s52, 1
        %s486 = smul.addr %s485, 352
        %s487 = scalar_lea.vmem [#allocation4], %s486
        %p488 = pneg %p65
        %p489 = pneg %p62
        %p490 = pneg %p86
        %p491 = pneg %p83
        %p492 = pneg %p107
        %p493 = pneg %p104
        %p494 = pneg %p128
        %p495 = pneg %p125
        %p496 = pneg %p149
        %p497 = pneg %p146
        %p498 = pneg %p170
        %p499 = pneg %p167
        %p500 = pneg %p191
        %p501 = pneg %p188
        %p502 = pneg %p212
        %p503 = pneg %p209
        %p504 = pneg %p233
        %p505 = pneg %p230
        %p506 = pneg %p254
        %p507 = pneg %p251
        %p508 = pneg %p275
        %p509 = pneg %p272
        %p510 = pneg %p296
        %p511 = pneg %p293
        %p512 = pneg %p324
        %p513 = pneg %p321
        %s514 = sand.u32 %s311, 1
        %s515 = scalar_lea.sflag [#allocation6], %s514
        %s516 = sand.u32 %s311, 1
        %s517 = smul.addr %s516, 256
        %s518 = scalar_lea.vmem [#allocation15], %s517
        %s519 = smul.u32 16, %s37
        %s521 = smul.u32 %s37, 16
        %s522 = smul.u32 %s521, 16
        %s523 = scalar_lea.vmem %s458, %s522 [#allocation4]
        %v524 = vld [vmem:[%s523] sm:$0xff]
        %v525 = vld [vmem:[%s523 + $0x8] sm:$0xff]
        %v526 = vld [vmem:[%s523 + $0x10] sm:$0xff]
        %v527 = vld [vmem:[%s523 + $0x18] sm:$0xff]
        %v528 = vld [vmem:[%s523 + $0x20] sm:$0xff]
        %v529 = vld [vmem:[%s523 + $0x28] sm:$0xff]
        %v530 = vld [vmem:[%s523 + $0x30] sm:$0xff]
        %v531 = vld [vmem:[%s523 + $0x38] sm:$0xff]
        %v532 = vld [vmem:[%s523 + $0x40] sm:$0xff]
        %v533 = vld [vmem:[%s523 + $0x48] sm:$0xff]
        %v534 = vld [vmem:[%s523 + $0x50] sm:$0xff]
        %v535 = vld [vmem:[%s523 + $0x58] sm:$0xff]
        %v536 = vld [vmem:[%s523 + $0x60] sm:$0xff]
        %v537 = vld [vmem:[%s523 + $0x68] sm:$0xff]
        %v538 = vld [vmem:[%s523 + $0x70] sm:$0xff]
        %v539 = vld [vmem:[%s523 + $0x78] sm:$0xff]
        %v540 = vld [vmem:[%s523 + $0x80] sm:$0xff]
        %v541 = vld [vmem:[%s523 + $0x88] sm:$0xff]
        %v542 = vld [vmem:[%s523 + $0x90] sm:$0xff]
        %v543 = vld [vmem:[%s523 + $0x98] sm:$0xff]
        %v544 = vld [vmem:[%s523 + $0xa0] sm:$0xff]
        %v545 = vld [vmem:[%s523 + $0xa8] sm:$0xff]
        %v546 = vld [vmem:[%s523 + $0xb0] sm:$0xff]
        %v547 = vld [vmem:[%s523 + $0xb8] sm:$0xff]
        %v548 = vld [vmem:[%s523 + $0xc0] sm:$0xff]
        %v549 = vld [vmem:[%s523 + $0xc8] sm:$0xff]
        %v550 = vld [vmem:[%s523 + $0xd0] sm:$0xff]
        %v551 = vld [vmem:[%s523 + $0xd8] sm:$0xff]
        %v552 = vld [vmem:[%s523 + $0xe0] sm:$0xff]
        %v553 = vld [vmem:[%s523 + $0xe8] sm:$0xff]
        %v554 = vld [vmem:[%s523 + $0xf0] sm:$0xff]
        %v555 = vld [vmem:[%s523 + $0xf8] sm:$0xff]
        %v556 = vld [vmem:[%s523 + $0x100] sm:$0xff]
        %v557 = vld [vmem:[%s523 + $0x108] sm:$0xff]
        %v558 = vld [vmem:[%s523 + $0x110] sm:$0xff]
        %v559 = vld [vmem:[%s523 + $0x118] sm:$0xff]
        %v560 = vld [vmem:[%s523 + $0x120] sm:$0xff]
        %v561 = vld [vmem:[%s523 + $0x128] sm:$0xff]
        %v562 = vld [vmem:[%s523 + $0x130] sm:$0xff]
        %v563 = vld [vmem:[%s523 + $0x138] sm:$0xff]
        %v564 = vld [vmem:[%s523 + $0x140] sm:$0xff]
        %v565 = vld [vmem:[%s523 + $0x148] sm:$0xff]
        %v566 = vld [vmem:[%s523 + $0x150] sm:$0xff]
        %v567 = vld [vmem:[%s523 + $0x158] sm:$0xff]
        %568 = vadd.xlane.f32.xlu0 %v524
        %v569 = vpop.xlane.xlu0 %568
        %570 = vadd.xlane.f32.xlu0 %v525
        %v571 = vpop.xlane.xlu0 %570
        %572 = vadd.xlane.f32.xlu0 %v526
        %v573 = vpop.xlane.xlu0 %572
        %574 = vadd.xlane.f32.xlu0 %v527
        %v575 = vpop.xlane.xlu0 %574
        %576 = vadd.xlane.f32.xlu0 %v528
        %v577 = vpop.xlane.xlu0 %576
        %578 = vadd.xlane.f32.xlu0 %v529
        %v579 = vpop.xlane.xlu0 %578
        %580 = vadd.xlane.f32.xlu0 %v530
        %v581 = vpop.xlane.xlu0 %580
        %582 = vadd.xlane.f32.xlu0 %v531
        %v583 = vpop.xlane.xlu0 %582
        %584 = vadd.xlane.f32.xlu0 %v532
        %v585 = vpop.xlane.xlu0 %584
        %586 = vadd.xlane.f32.xlu0 %v533
        %v587 = vpop.xlane.xlu0 %586
        %588 = vadd.xlane.f32.xlu0 %v534
        %v589 = vpop.xlane.xlu0 %588
        %590 = vadd.xlane.f32.xlu0 %v535
        %v591 = vpop.xlane.xlu0 %590
        %592 = vadd.xlane.f32.xlu0 %v536
        %v593 = vpop.xlane.xlu0 %592
        %594 = vadd.xlane.f32.xlu0 %v537
        %v595 = vpop.xlane.xlu0 %594
        %596 = vadd.xlane.f32.xlu0 %v538
        %v597 = vpop.xlane.xlu0 %596
        %598 = vadd.xlane.f32.xlu0 %v539
        %v599 = vpop.xlane.xlu0 %598
        %600 = vadd.xlane.f32.xlu0 %v540
        %v601 = vpop.xlane.xlu0 %600
        %602 = vadd.xlane.f32.xlu0 %v541
        %v603 = vpop.xlane.xlu0 %602
        %604 = vadd.xlane.f32.xlu0 %v542
        %v605 = vpop.xlane.xlu0 %604
        %606 = vadd.xlane.f32.xlu0 %v543
        %v607 = vpop.xlane.xlu0 %606
        %608 = vadd.xlane.f32.xlu0 %v544
        %v609 = vpop.xlane.xlu0 %608
        %610 = vadd.xlane.f32.xlu0 %v545
        %v611 = vpop.xlane.xlu0 %610
        %612 = vadd.xlane.f32.xlu0 %v546
        %v613 = vpop.xlane.xlu0 %612
        %614 = vadd.xlane.f32.xlu0 %v547
        %v615 = vpop.xlane.xlu0 %614
        %616 = vadd.xlane.f32.xlu0 %v548
        %v617 = vpop.xlane.xlu0 %616
        %618 = vadd.xlane.f32.xlu0 %v549
        %v619 = vpop.xlane.xlu0 %618
        %620 = vadd.xlane.f32.xlu0 %v550
        %v621 = vpop.xlane.xlu0 %620
        %622 = vadd.xlane.f32.xlu0 %v551
        %v623 = vpop.xlane.xlu0 %622
        %624 = vadd.xlane.f32.xlu0 %v552
        %v625 = vpop.xlane.xlu0 %624
        %626 = vadd.xlane.f32.xlu0 %v553
        %v627 = vpop.xlane.xlu0 %626
        %628 = vadd.xlane.f32.xlu0 %v554
        %v629 = vpop.xlane.xlu0 %628
        %630 = vadd.xlane.f32.xlu0 %v555
        %v631 = vpop.xlane.xlu0 %630
        %632 = vadd.xlane.f32.xlu0 %v556
        %v633 = vpop.xlane.xlu0 %632
        %634 = vadd.xlane.f32.xlu0 %v557
        %v635 = vpop.xlane.xlu0 %634
        %636 = vadd.xlane.f32.xlu0 %v558
        %v637 = vpop.xlane.xlu0 %636
        %638 = vadd.xlane.f32.xlu0 %v559
        %v639 = vpop.xlane.xlu0 %638
        %640 = vadd.xlane.f32.xlu0 %v560
        %v641 = vpop.xlane.xlu0 %640
        %642 = vadd.xlane.f32.xlu0 %v561
        %v643 = vpop.xlane.xlu0 %642
        %644 = vadd.xlane.f32.xlu0 %v562
        %v645 = vpop.xlane.xlu0 %644
        %646 = vadd.xlane.f32.xlu0 %v563
        %v647 = vpop.xlane.xlu0 %646
        %648 = vadd.xlane.f32.xlu0 %v564
        %v649 = vpop.xlane.xlu0 %648
        %650 = vadd.xlane.f32.xlu0 %v565
        %v651 = vpop.xlane.xlu0 %650
        %652 = vadd.xlane.f32.xlu0 %v566
        %v653 = vpop.xlane.xlu0 %652
        %654 = vadd.xlane.f32.xlu0 %v567
        %v655 = vpop.xlane.xlu0 %654
        %v656 = vmul.f32 %v569, 0.25
        %v657 = vmul.f32 %v571, 0.25
        %v658 = vmul.f32 %v573, 0.25
        %v659 = vmul.f32 %v575, 0.25
        %v660 = vmul.f32 %v577, 0.25
        %v661 = vmul.f32 %v579, 0.25
        %v662 = vmul.f32 %v581, 0.25
        %v663 = vmul.f32 %v583, 0.25
        %v664 = vmul.f32 %v585, 0.25
        %v665 = vmul.f32 %v587, 0.25
        %v666 = vmul.f32 %v589, 0.25
        %v667 = vmul.f32 %v591, 0.25
        %v668 = vmul.f32 %v593, 0.25
        %v669 = vmul.f32 %v595, 0.25
        %v670 = vmul.f32 %v597, 0.25
        %v671 = vmul.f32 %v599, 0.25
        %v672 = vmul.f32 %v601, 0.25
        %v673 = vmul.f32 %v603, 0.25
        %v674 = vmul.f32 %v605, 0.25
        %v675 = vmul.f32 %v607, 0.25
        %v676 = vmul.f32 %v609, 0.25
        %v677 = vmul.f32 %v611, 0.25
        %v678 = vmul.f32 %v613, 0.25
        %v679 = vmul.f32 %v615, 0.25
        %v680 = vmul.f32 %v617, 0.25
        %v681 = vmul.f32 %v619, 0.25
        %v682 = vmul.f32 %v621, 0.25
        %v683 = vmul.f32 %v623, 0.25
        %v684 = vmul.f32 %v625, 0.25
        %v685 = vmul.f32 %v627, 0.25
        %v686 = vmul.f32 %v629, 0.25
        %v687 = vmul.f32 %v631, 0.25
        %v688 = vmul.f32 %v633, 0.25
        %v689 = vmul.f32 %v635, 0.25
        %v690 = vmul.f32 %v637, 0.25
        %v691 = vmul.f32 %v639, 0.25
        %v692 = vmul.f32 %v641, 0.25
        %v693 = vmul.f32 %v643, 0.25
        %v694 = vmul.f32 %v645, 0.25
        %v695 = vmul.f32 %v647, 0.25
        %v696 = vmul.f32 %v649, 0.25
        %v697 = vmul.f32 %v651, 0.25
        %v698 = vmul.f32 %v653, 0.25
        %v699 = vmul.f32 %v655, 0.25
        %v700 = vlaneseq
        %v701 = vand.u32 %v700, 127
        %vm702 = vcmp.lt.s32.totalorder %v701, 4
        %v703 = vsub.f32 %v524, %v656
        %v704 = vsub.f32 %v525, %v657
        %v705 = vsub.f32 %v526, %v658
        %v706 = vsub.f32 %v527, %v659
        %v707 = vsub.f32 %v528, %v660
        %v708 = vsub.f32 %v529, %v661
        %v709 = vsub.f32 %v530, %v662
        %v710 = vsub.f32 %v531, %v663
        %v711 = vsub.f32 %v532, %v664
        %v712 = vsub.f32 %v533, %v665
        %v713 = vsub.f32 %v534, %v666
        %v714 = vsub.f32 %v535, %v667
        %v715 = vsub.f32 %v536, %v668
        %v716 = vsub.f32 %v537, %v669
        %v717 = vsub.f32 %v538, %v670
        %v718 = vsub.f32 %v539, %v671
        %v719 = vsub.f32 %v540, %v672
        %v720 = vsub.f32 %v541, %v673
        %v721 = vsub.f32 %v542, %v674
        %v722 = vsub.f32 %v543, %v675
        %v723 = vsub.f32 %v544, %v676
        %v724 = vsub.f32 %v545, %v677
        %v725 = vsub.f32 %v546, %v678
        %v726 = vsub.f32 %v547, %v679
        %v727 = vsub.f32 %v548, %v680
        %v728 = vsub.f32 %v549, %v681
        %v729 = vsub.f32 %v550, %v682
        %v730 = vsub.f32 %v551, %v683
        %v731 = vsub.f32 %v552, %v684
        %v732 = vsub.f32 %v553, %v685
        %v733 = vsub.f32 %v554, %v686
        %v734 = vsub.f32 %v555, %v687
        %v735 = vsub.f32 %v556, %v688
        %v736 = vsub.f32 %v557, %v689
        %v737 = vsub.f32 %v558, %v690
        %v738 = vsub.f32 %v559, %v691
        %v739 = vsub.f32 %v560, %v692
        %v740 = vsub.f32 %v561, %v693
        %v741 = vsub.f32 %v562, %v694
        %v742 = vsub.f32 %v563, %v695
        %v743 = vsub.f32 %v564, %v696
        %v744 = vsub.f32 %v565, %v697
        %v745 = vsub.f32 %v566, %v698
        %v746 = vsub.f32 %v567, %v699
        %v747 = vsel %vm702, 1, 0
        %vm748 = vcmp.eq.s32.totalorder %v747, 1
        %v749 = vsel %vm748, %v703, 0.0
        %v750 = vsel %vm748, %v704, 0.0
        %v751 = vsel %vm748, %v705, 0.0
        %v752 = vsel %vm748, %v706, 0.0
        %v753 = vsel %vm748, %v707, 0.0
        %v754 = vsel %vm748, %v708, 0.0
        %v755 = vsel %vm748, %v709, 0.0
        %v756 = vsel %vm748, %v710, 0.0
        %v757 = vsel %vm748, %v711, 0.0
        %v758 = vsel %vm748, %v712, 0.0
        %v759 = vsel %vm748, %v713, 0.0
        %v760 = vsel %vm748, %v714, 0.0
        %v761 = vsel %vm748, %v715, 0.0
        %v762 = vsel %vm748, %v716, 0.0
        %v763 = vsel %vm748, %v717, 0.0
        %v764 = vsel %vm748, %v718, 0.0
        %v765 = vsel %vm748, %v719, 0.0
        %v766 = vsel %vm748, %v720, 0.0
        %v767 = vsel %vm748, %v721, 0.0
        %v768 = vsel %vm748, %v722, 0.0
        %v769 = vsel %vm748, %v723, 0.0
        %v770 = vsel %vm748, %v724, 0.0
        %v771 = vsel %vm748, %v725, 0.0
        %v772 = vsel %vm748, %v726, 0.0
        %v773 = vsel %vm748, %v727, 0.0
        %v774 = vsel %vm748, %v728, 0.0
        %v775 = vsel %vm748, %v729, 0.0
        %v776 = vsel %vm748, %v730, 0.0
        %v777 = vsel %vm748, %v731, 0.0
        %v778 = vsel %vm748, %v732, 0.0
        %v779 = vsel %vm748, %v733, 0.0
        %v780 = vsel %vm748, %v734, 0.0
        %v781 = vsel %vm748, %v735, 0.0
        %v782 = vsel %vm748, %v736, 0.0
        %v783 = vsel %vm748, %v737, 0.0
        %v784 = vsel %vm748, %v738, 0.0
        %v785 = vsel %vm748, %v739, 0.0
        %v786 = vsel %vm748, %v740, 0.0
        %v787 = vsel %vm748, %v741, 0.0
        %v788 = vsel %vm748, %v742, 0.0
        %v789 = vsel %vm748, %v743, 0.0
        %v790 = vsel %vm748, %v744, 0.0
        %v791 = vsel %vm748, %v745, 0.0
        %v792 = vsel %vm748, %v746, 0.0
        %v793 = vmul.f32 %v749, %v749
        %v794 = vmul.f32 %v750, %v750
        %v795 = vmul.f32 %v751, %v751
        %v796 = vmul.f32 %v752, %v752
        %v797 = vmul.f32 %v753, %v753
        %v798 = vmul.f32 %v754, %v754
        %v799 = vmul.f32 %v755, %v755
        %v800 = vmul.f32 %v756, %v756
        %v801 = vmul.f32 %v757, %v757
        %v802 = vmul.f32 %v758, %v758
        %v803 = vmul.f32 %v759, %v759
        %v804 = vmul.f32 %v760, %v760
        %v805 = vmul.f32 %v761, %v761
        %v806 = vmul.f32 %v762, %v762
        %v807 = vmul.f32 %v763, %v763
        %v808 = vmul.f32 %v764, %v764
        %v809 = vmul.f32 %v765, %v765
        %v810 = vmul.f32 %v766, %v766
        %v811 = vmul.f32 %v767, %v767
        %v812 = vmul.f32 %v768, %v768
        %v813 = vmul.f32 %v769, %v769
        %v814 = vmul.f32 %v770, %v770
        %v815 = vmul.f32 %v771, %v771
        %v816 = vmul.f32 %v772, %v772
        %v817 = vmul.f32 %v773, %v773
        %v818 = vmul.f32 %v774, %v774
        %v819 = vmul.f32 %v775, %v775
        %v820 = vmul.f32 %v776, %v776
        %v821 = vmul.f32 %v777, %v777
        %v822 = vmul.f32 %v778, %v778
        %v823 = vmul.f32 %v779, %v779
        %v824 = vmul.f32 %v780, %v780
        %v825 = vmul.f32 %v781, %v781
        %v826 = vmul.f32 %v782, %v782
        %v827 = vmul.f32 %v783, %v783
        %v828 = vmul.f32 %v784, %v784
        %v829 = vmul.f32 %v785, %v785
        %v830 = vmul.f32 %v786, %v786
        %v831 = vmul.f32 %v787, %v787
        %v832 = vmul.f32 %v788, %v788
        %v833 = vmul.f32 %v789, %v789
        %v834 = vmul.f32 %v790, %v790
        %v835 = vmul.f32 %v791, %v791
        %v836 = vmul.f32 %v792, %v792
        %837 = vadd.xlane.f32.xlu0 %v793
        %v838 = vpop.xlane.xlu0 %837
        %839 = vadd.xlane.f32.xlu0 %v794
        %v840 = vpop.xlane.xlu0 %839
        %841 = vadd.xlane.f32.xlu0 %v795
        %v842 = vpop.xlane.xlu0 %841
        %843 = vadd.xlane.f32.xlu0 %v796
        %v844 = vpop.xlane.xlu0 %843
        %845 = vadd.xlane.f32.xlu0 %v797
        %v846 = vpop.xlane.xlu0 %845
        %847 = vadd.xlane.f32.xlu0 %v798
        %v848 = vpop.xlane.xlu0 %847
        %849 = vadd.xlane.f32.xlu0 %v799
        %v850 = vpop.xlane.xlu0 %849
        %851 = vadd.xlane.f32.xlu0 %v800
        %v852 = vpop.xlane.xlu0 %851
        %853 = vadd.xlane.f32.xlu0 %v801
        %v854 = vpop.xlane.xlu0 %853
        %855 = vadd.xlane.f32.xlu0 %v802
        %v856 = vpop.xlane.xlu0 %855
        %857 = vadd.xlane.f32.xlu0 %v803
        %v858 = vpop.xlane.xlu0 %857
        %859 = vadd.xlane.f32.xlu0 %v804
        %v860 = vpop.xlane.xlu0 %859
        %861 = vadd.xlane.f32.xlu0 %v805
        %v862 = vpop.xlane.xlu0 %861
        %863 = vadd.xlane.f32.xlu0 %v806
        %v864 = vpop.xlane.xlu0 %863
        %865 = vadd.xlane.f32.xlu0 %v807
        %v866 = vpop.xlane.xlu0 %865
        %867 = vadd.xlane.f32.xlu0 %v808
        %v868 = vpop.xlane.xlu0 %867
        %869 = vadd.xlane.f32.xlu0 %v809
        %v870 = vpop.xlane.xlu0 %869
        %871 = vadd.xlane.f32.xlu0 %v810
        %v872 = vpop.xlane.xlu0 %871
        %873 = vadd.xlane.f32.xlu0 %v811
        %v874 = vpop.xlane.xlu0 %873
        %875 = vadd.xlane.f32.xlu0 %v812
        %v876 = vpop.xlane.xlu0 %875
        %877 = vadd.xlane.f32.xlu0 %v813
        %v878 = vpop.xlane.xlu0 %877
        %879 = vadd.xlane.f32.xlu0 %v814
        %v880 = vpop.xlane.xlu0 %879
        %881 = vadd.xlane.f32.xlu0 %v815
        %v882 = vpop.xlane.xlu0 %881
        %883 = vadd.xlane.f32.xlu0 %v816
        %v884 = vpop.xlane.xlu0 %883
        %885 = vadd.xlane.f32.xlu0 %v817
        %v886 = vpop.xlane.xlu0 %885
        %887 = vadd.xlane.f32.xlu0 %v818
        %v888 = vpop.xlane.xlu0 %887
        %889 = vadd.xlane.f32.xlu0 %v819
        %v890 = vpop.xlane.xlu0 %889
        %891 = vadd.xlane.f32.xlu0 %v820
        %v892 = vpop.xlane.xlu0 %891
        %893 = vadd.xlane.f32.xlu0 %v821
        %v894 = vpop.xlane.xlu0 %893
        %895 = vadd.xlane.f32.xlu0 %v822
        %v896 = vpop.xlane.xlu0 %895
        %897 = vadd.xlane.f32.xlu0 %v823
        %v898 = vpop.xlane.xlu0 %897
        %899 = vadd.xlane.f32.xlu0 %v824
        %v900 = vpop.xlane.xlu0 %899
        %901 = vadd.xlane.f32.xlu0 %v825
        %v902 = vpop.xlane.xlu0 %901
        %903 = vadd.xlane.f32.xlu0 %v826
        %v904 = vpop.xlane.xlu0 %903
        %905 = vadd.xlane.f32.xlu0 %v827
        %v906 = vpop.xlane.xlu0 %905
        %907 = vadd.xlane.f32.xlu0 %v828
        %v908 = vpop.xlane.xlu0 %907
        %909 = vadd.xlane.f32.xlu0 %v829
        %v910 = vpop.xlane.xlu0 %909
        %911 = vadd.xlane.f32.xlu0 %v830
        %v912 = vpop.xlane.xlu0 %911
        %913 = vadd.xlane.f32.xlu0 %v831
        %v914 = vpop.xlane.xlu0 %913
        %915 = vadd.xlane.f32.xlu0 %v832
        %v916 = vpop.xlane.xlu0 %915
        %917 = vadd.xlane.f32.xlu0 %v833
        %v918 = vpop.xlane.xlu0 %917
        %919 = vadd.xlane.f32.xlu0 %v834
        %v920 = vpop.xlane.xlu0 %919
        %921 = vadd.xlane.f32.xlu0 %v835
        %v922 = vpop.xlane.xlu0 %921
        %923 = vadd.xlane.f32.xlu0 %v836
        %v924 = vpop.xlane.xlu0 %923
        %v925 = vmul.f32 %v838, 0.25
        %v926 = vmul.f32 %v840, 0.25
        %v927 = vmul.f32 %v842, 0.25
        %v928 = vmul.f32 %v844, 0.25
        %v929 = vmul.f32 %v846, 0.25
        %v930 = vmul.f32 %v848, 0.25
        %v931 = vmul.f32 %v850, 0.25
        %v932 = vmul.f32 %v852, 0.25
        %v933 = vmul.f32 %v854, 0.25
        %v934 = vmul.f32 %v856, 0.25
        %v935 = vmul.f32 %v858, 0.25
        %v936 = vmul.f32 %v860, 0.25
        %v937 = vmul.f32 %v862, 0.25
        %v938 = vmul.f32 %v864, 0.25
        %v939 = vmul.f32 %v866, 0.25
        %v940 = vmul.f32 %v868, 0.25
        %v941 = vmul.f32 %v870, 0.25
        %v942 = vmul.f32 %v872, 0.25
        %v943 = vmul.f32 %v874, 0.25
        %v944 = vmul.f32 %v876, 0.25
        %v945 = vmul.f32 %v878, 0.25
        %v946 = vmul.f32 %v880, 0.25
        %v947 = vmul.f32 %v882, 0.25
        %v948 = vmul.f32 %v884, 0.25
        %v949 = vmul.f32 %v886, 0.25
        %v950 = vmul.f32 %v888, 0.25
        %v951 = vmul.f32 %v890, 0.25
        %v952 = vmul.f32 %v892, 0.25
        %v953 = vmul.f32 %v894, 0.25
        %v954 = vmul.f32 %v896, 0.25
        %v955 = vmul.f32 %v898, 0.25
        %v956 = vmul.f32 %v900, 0.25
        %v957 = vmul.f32 %v902, 0.25
        %v958 = vmul.f32 %v904, 0.25
        %v959 = vmul.f32 %v906, 0.25
        %v960 = vmul.f32 %v908, 0.25
        %v961 = vmul.f32 %v910, 0.25
        %v962 = vmul.f32 %v912, 0.25
        %v963 = vmul.f32 %v914, 0.25
        %v964 = vmul.f32 %v916, 0.25
        %v965 = vmul.f32 %v918, 0.25
        %v966 = vmul.f32 %v920, 0.25
        %v967 = vmul.f32 %v922, 0.25
        %v968 = vmul.f32 %v924, 0.25
        %v969 = vadd.f32 %v925, 1e-06
        %v970 = vadd.f32 %v926, 1e-06
        %v971 = vadd.f32 %v927, 1e-06
        %v972 = vadd.f32 %v928, 1e-06
        %v973 = vadd.f32 %v929, 1e-06
        %v974 = vadd.f32 %v930, 1e-06
        %v975 = vadd.f32 %v931, 1e-06
        %v976 = vadd.f32 %v932, 1e-06
        %v977 = vadd.f32 %v933, 1e-06
        %v978 = vadd.f32 %v934, 1e-06
        %v979 = vadd.f32 %v935, 1e-06
        %v980 = vadd.f32 %v936, 1e-06
        %v981 = vadd.f32 %v937, 1e-06
        %v982 = vadd.f32 %v938, 1e-06
        %v983 = vadd.f32 %v939, 1e-06
        %v984 = vadd.f32 %v940, 1e-06
        %v985 = vadd.f32 %v941, 1e-06
        %v986 = vadd.f32 %v942, 1e-06
        %v987 = vadd.f32 %v943, 1e-06
        %v988 = vadd.f32 %v944, 1e-06
        %v989 = vadd.f32 %v945, 1e-06
        %v990 = vadd.f32 %v946, 1e-06
        %v991 = vadd.f32 %v947, 1e-06
        %v992 = vadd.f32 %v948, 1e-06
        %v993 = vadd.f32 %v949, 1e-06
        %v994 = vadd.f32 %v950, 1e-06
        %v995 = vadd.f32 %v951, 1e-06
        %v996 = vadd.f32 %v952, 1e-06
        %v997 = vadd.f32 %v953, 1e-06
        %v998 = vadd.f32 %v954, 1e-06
        %v999 = vadd.f32 %v955, 1e-06
        %v1000 = vadd.f32 %v956, 1e-06
        %v1001 = vadd.f32 %v957, 1e-06
        %v1002 = vadd.f32 %v958, 1e-06
        %v1003 = vadd.f32 %v959, 1e-06
        %v1004 = vadd.f32 %v960, 1e-06
        %v1005 = vadd.f32 %v961, 1e-06
        %v1006 = vadd.f32 %v962, 1e-06
        %v1007 = vadd.f32 %v963, 1e-06
        %v1008 = vadd.f32 %v964, 1e-06
        %v1009 = vadd.f32 %v965, 1e-06
        %v1010 = vadd.f32 %v966, 1e-06
        %v1011 = vadd.f32 %v967, 1e-06
        %v1012 = vadd.f32 %v968, 1e-06
        %v1013 = vrsqrt.pop %v969
        %v1014 = vrsqrt.pop %v970
        %v1015 = vrsqrt.pop %v971
        %v1016 = vrsqrt.pop %v972
        %v1017 = vrsqrt.pop %v973
        %v1018 = vrsqrt.pop %v974
        %v1019 = vrsqrt.pop %v975
        %v1020 = vrsqrt.pop %v976
        %v1021 = vrsqrt.pop %v977
        %v1022 = vrsqrt.pop %v978
        %v1023 = vrsqrt.pop %v979
        %v1024 = vrsqrt.pop %v980
        %v1025 = vrsqrt.pop %v981
        %v1026 = vrsqrt.pop %v982
        %v1027 = vrsqrt.pop %v983
        %v1028 = vrsqrt.pop %v984
        %v1029 = vrsqrt.pop %v985
        %v1030 = vrsqrt.pop %v986
        %v1031 = vrsqrt.pop %v987
        %v1032 = vrsqrt.pop %v988
        %v1033 = vrsqrt.pop %v989
        %v1034 = vrsqrt.pop %v990
        %v1035 = vrsqrt.pop %v991
        %v1036 = vrsqrt.pop %v992
        %v1037 = vrsqrt.pop %v993
        %v1038 = vrsqrt.pop %v994
        %v1039 = vrsqrt.pop %v995
        %v1040 = vrsqrt.pop %v996
        %v1041 = vrsqrt.pop %v997
        %v1042 = vrsqrt.pop %v998
        %v1043 = vrsqrt.pop %v999
        %v1044 = vrsqrt.pop %v1000
        %v1045 = vrsqrt.pop %v1001
        %v1046 = vrsqrt.pop %v1002
        %v1047 = vrsqrt.pop %v1003
        %v1048 = vrsqrt.pop %v1004
        %v1049 = vrsqrt.pop %v1005
        %v1050 = vrsqrt.pop %v1006
        %v1051 = vrsqrt.pop %v1007
        %v1052 = vrsqrt.pop %v1008
        %v1053 = vrsqrt.pop %v1009
        %v1054 = vrsqrt.pop %v1010
        %v1055 = vrsqrt.pop %v1011
        %v1056 = vrsqrt.pop %v1012
        %v1057 = vmul.f32 %v749, %v1013
        %v1058 = vmul.f32 %v750, %v1014
        %v1059 = vmul.f32 %v751, %v1015
        %v1060 = vmul.f32 %v752, %v1016
        %v1061 = vmul.f32 %v753, %v1017
        %v1062 = vmul.f32 %v754, %v1018
        %v1063 = vmul.f32 %v755, %v1019
        %v1064 = vmul.f32 %v756, %v1020
        %v1065 = vmul.f32 %v757, %v1021
        %v1066 = vmul.f32 %v758, %v1022
        %v1067 = vmul.f32 %v759, %v1023
        %v1068 = vmul.f32 %v760, %v1024
        %v1069 = vmul.f32 %v761, %v1025
        %v1070 = vmul.f32 %v762, %v1026
        %v1071 = vmul.f32 %v763, %v1027
        %v1072 = vmul.f32 %v764, %v1028
        %v1073 = vmul.f32 %v765, %v1029
        %v1074 = vmul.f32 %v766, %v1030
        %v1075 = vmul.f32 %v767, %v1031
        %v1076 = vmul.f32 %v768, %v1032
        %v1077 = vmul.f32 %v769, %v1033
        %v1078 = vmul.f32 %v770, %v1034
        %v1079 = vmul.f32 %v771, %v1035
        %v1080 = vmul.f32 %v772, %v1036
        %v1081 = vmul.f32 %v773, %v1037
        %v1082 = vmul.f32 %v774, %v1038
        %v1083 = vmul.f32 %v775, %v1039
        %v1084 = vmul.f32 %v776, %v1040
        %v1085 = vmul.f32 %v777, %v1041
        %v1086 = vmul.f32 %v778, %v1042
        %v1087 = vmul.f32 %v779, %v1043
        %v1088 = vmul.f32 %v780, %v1044
        %v1089 = vmul.f32 %v781, %v1045
        %v1090 = vmul.f32 %v782, %v1046
        %v1091 = vmul.f32 %v783, %v1047
        %v1092 = vmul.f32 %v784, %v1048
        %v1093 = vmul.f32 %v785, %v1049
        %v1094 = vmul.f32 %v786, %v1050
        %v1095 = vmul.f32 %v787, %v1051
        %v1096 = vmul.f32 %v788, %v1052
        %v1097 = vmul.f32 %v789, %v1053
        %v1098 = vmul.f32 %v790, %v1054
        %v1099 = vmul.f32 %v791, %v1055
        %v1100 = vmul.f32 %v792, %v1056
        %v1101 = vld [vmem:[%s1] sm:$0x1]
        %v1103 = vlaneseq
        %v1104 = vshrl.u32 %v1103, 7
        %v1105 = vsub.s32 0, %v1104
        %v1106 = vrot.slane %v1101, %v1105
        %v1108 = vmul.f32 %v1057, %v1106
        %v1109 = vmul.f32 %v1058, %v1106
        %v1110 = vmul.f32 %v1059, %v1106
        %v1111 = vmul.f32 %v1060, %v1106
        %v1112 = vmul.f32 %v1061, %v1106
        %v1113 = vmul.f32 %v1062, %v1106
        %v1114 = vmul.f32 %v1063, %v1106
        %v1115 = vmul.f32 %v1064, %v1106
        %v1116 = vmul.f32 %v1065, %v1106
        %v1117 = vmul.f32 %v1066, %v1106
        %v1118 = vmul.f32 %v1067, %v1106
        %v1119 = vmul.f32 %v1068, %v1106
        %v1120 = vmul.f32 %v1069, %v1106
        %v1121 = vmul.f32 %v1070, %v1106
        %v1122 = vmul.f32 %v1071, %v1106
        %v1123 = vmul.f32 %v1072, %v1106
        %v1124 = vmul.f32 %v1073, %v1106
        %v1125 = vmul.f32 %v1074, %v1106
        %v1126 = vmul.f32 %v1075, %v1106
        %v1127 = vmul.f32 %v1076, %v1106
        %v1128 = vmul.f32 %v1077, %v1106
        %v1129 = vmul.f32 %v1078, %v1106
        %v1130 = vmul.f32 %v1079, %v1106
        %v1131 = vmul.f32 %v1080, %v1106
        %v1132 = vmul.f32 %v1081, %v1106
        %v1133 = vmul.f32 %v1082, %v1106
        %v1134 = vmul.f32 %v1083, %v1106
        %v1135 = vmul.f32 %v1084, %v1106
        %v1136 = vmul.f32 %v1085, %v1106
        %v1137 = vmul.f32 %v1086, %v1106
        %v1138 = vmul.f32 %v1087, %v1106
        %v1139 = vmul.f32 %v1088, %v1106
        %v1140 = vmul.f32 %v1089, %v1106
        %v1141 = vmul.f32 %v1090, %v1106
        %v1142 = vmul.f32 %v1091, %v1106
        %v1143 = vmul.f32 %v1092, %v1106
        %v1144 = vmul.f32 %v1093, %v1106
        %v1145 = vmul.f32 %v1094, %v1106
        %v1146 = vmul.f32 %v1095, %v1106
        %v1147 = vmul.f32 %v1096, %v1106
        %v1148 = vmul.f32 %v1097, %v1106
        %v1149 = vmul.f32 %v1098, %v1106
        %v1150 = vmul.f32 %v1099, %v1106
        %v1151 = vmul.f32 %v1100, %v1106
        %v1152 = vld [vmem:[%s2] sm:$0x1]
        %v1154 = vlaneseq
        %v1155 = vshrl.u32 %v1154, 7
        %v1156 = vsub.s32 0, %v1155
        %v1157 = vrot.slane %v1152, %v1156
        %v1159 = vadd.f32 %v1108, %v1157
        %v1160 = vadd.f32 %v1109, %v1157
        %v1161 = vadd.f32 %v1110, %v1157
        %v1162 = vadd.f32 %v1111, %v1157
        %v1163 = vadd.f32 %v1112, %v1157
        %v1164 = vadd.f32 %v1113, %v1157
        %v1165 = vadd.f32 %v1114, %v1157
        %v1166 = vadd.f32 %v1115, %v1157
        %v1167 = vadd.f32 %v1116, %v1157
        %v1168 = vadd.f32 %v1117, %v1157
        %v1169 = vadd.f32 %v1118, %v1157
        %v1170 = vadd.f32 %v1119, %v1157
        %v1171 = vadd.f32 %v1120, %v1157
        %v1172 = vadd.f32 %v1121, %v1157
        %v1173 = vadd.f32 %v1122, %v1157
        %v1174 = vadd.f32 %v1123, %v1157
        %v1175 = vadd.f32 %v1124, %v1157
        %v1176 = vadd.f32 %v1125, %v1157
        %v1177 = vadd.f32 %v1126, %v1157
        %v1178 = vadd.f32 %v1127, %v1157
        %v1179 = vadd.f32 %v1128, %v1157
        %v1180 = vadd.f32 %v1129, %v1157
        %v1181 = vadd.f32 %v1130, %v1157
        %v1182 = vadd.f32 %v1131, %v1157
        %v1183 = vadd.f32 %v1132, %v1157
        %v1184 = vadd.f32 %v1133, %v1157
        %v1185 = vadd.f32 %v1134, %v1157
        %v1186 = vadd.f32 %v1135, %v1157
        %v1187 = vadd.f32 %v1136, %v1157
        %v1188 = vadd.f32 %v1137, %v1157
        %v1189 = vadd.f32 %v1138, %v1157
        %v1190 = vadd.f32 %v1139, %v1157
        %v1191 = vadd.f32 %v1140, %v1157
        %v1192 = vadd.f32 %v1141, %v1157
        %v1193 = vadd.f32 %v1142, %v1157
        %v1194 = vadd.f32 %v1143, %v1157
        %v1195 = vadd.f32 %v1144, %v1157
        %v1196 = vadd.f32 %v1145, %v1157
        %v1197 = vadd.f32 %v1146, %v1157
        %v1198 = vadd.f32 %v1147, %v1157
        %v1199 = vadd.f32 %v1148, %v1157
        %v1200 = vadd.f32 %v1149, %v1157
        %v1201 = vadd.f32 %v1150, %v1157
        %v1202 = vadd.f32 %v1151, %v1157
        %v1203 = vpack.c.bf16 %v1160, %v1159
        %v1204 = vpack.c.bf16 %v1162, %v1161
        %v1205 = vpack.c.bf16 %v1164, %v1163
        %v1206 = vpack.c.bf16 %v1166, %v1165
        %v1207 = vpack.c.bf16 %v1168, %v1167
        %v1208 = vpack.c.bf16 %v1170, %v1169
        %v1209 = vpack.c.bf16 %v1172, %v1171
        %v1210 = vpack.c.bf16 %v1174, %v1173
        %v1211 = vpack.c.bf16 %v1176, %v1175
        %v1212 = vpack.c.bf16 %v1178, %v1177
        %v1213 = vpack.c.bf16 %v1180, %v1179
        %v1214 = vpack.c.bf16 %v1182, %v1181
        %v1215 = vpack.c.bf16 %v1184, %v1183
        %v1216 = vpack.c.bf16 %v1186, %v1185
        %v1217 = vpack.c.bf16 %v1188, %v1187
        %v1218 = vpack.c.bf16 %v1190, %v1189
        %v1219 = vpack.c.bf16 %v1192, %v1191
        %v1220 = vpack.c.bf16 %v1194, %v1193
        %v1221 = vpack.c.bf16 %v1196, %v1195
        %v1222 = vpack.c.bf16 %v1198, %v1197
        %v1223 = vpack.c.bf16 %v1200, %v1199
        %v1224 = vpack.c.bf16 %v1202, %v1201
        %v1225 = vld [vmem:[#allocation9] sm:$0xf]
        %v1226 = vld [vmem:[#allocation9 + $0x4] sm:$0xf]
        %v1227 = vld [vmem:[#allocation9 + $0x8] sm:$0xf]
        %v1228 = vld [vmem:[#allocation9 + $0xc] sm:$0xf]
        %v1229 = vld [vmem:[#allocation9 + $0x10] sm:$0xf]
        %v1230 = vld [vmem:[#allocation9 + $0x14] sm:$0xf]
        %v1231 = vld [vmem:[#allocation9 + $0x18] sm:$0xf]
        %v1232 = vld [vmem:[#allocation9 + $0x1c] sm:$0xf]
        %v1233 = vld [vmem:[#allocation9 + $0x20] sm:$0xf]
        %v1234 = vld [vmem:[#allocation9 + $0x24] sm:$0xf]
        %v1235 = vld [vmem:[#allocation9 + $0x28] sm:$0xf]
        %v1236 = vld [vmem:[#allocation9 + $0x2c] sm:$0xf]
        %v1237 = vld [vmem:[#allocation9 + $0x30] sm:$0xf]
        %v1238 = vld [vmem:[#allocation9 + $0x34] sm:$0xf]
        %v1239 = vld [vmem:[#allocation9 + $0x38] sm:$0xf]
        %v1240 = vld [vmem:[#allocation9 + $0x3c] sm:$0xf]
        %v1241 = vld [vmem:[%s6] sm:$0x1]
        %v1243 = vlaneseq
        %v1244 = vshrl.u32 %v1243, 7
        %v1245 = vsub.s32 0, %v1244
        %v1246 = vrot.slane %v1241, %v1245
        %v1264 = vunpack.c.l.b16 %v1225
        %v1265 = vunpack.c.l.b16 %v1226
        %v1266 = vunpack.c.l.b16 %v1227
        %v1267 = vunpack.c.l.b16 %v1228
        %v1268 = vunpack.c.l.b16 %v1229
        %v1269 = vunpack.c.l.b16 %v1230
        %v1270 = vunpack.c.l.b16 %v1231
        %v1271 = vunpack.c.l.b16 %v1232
        %v1272 = vunpack.c.l.b16 %v1233
        %v1273 = vunpack.c.l.b16 %v1234
        %v1274 = vunpack.c.l.b16 %v1235
        %v1275 = vunpack.c.l.b16 %v1236
        %v1276 = vunpack.c.l.b16 %v1237
        %v1277 = vunpack.c.l.b16 %v1238
        %v1278 = vunpack.c.l.b16 %v1239
        %v1279 = vunpack.c.l.b16 %v1240
        %v1280 = vpack.c.b16 %v1265, %v1264
        %v1281 = vpack.c.b16 %v1267, %v1266
        %v1282 = vpack.c.b16 %v1269, %v1268
        %v1283 = vpack.c.b16 %v1271, %v1270
        %v1284 = vpack.c.b16 %v1273, %v1272
        %v1285 = vpack.c.b16 %v1275, %v1274
        %v1286 = vpack.c.b16 %v1277, %v1276
        %v1287 = vpack.c.b16 %v1279, %v1278
        %1296 = vmatprep.subr.bf16.mxu0 0
        %1297 = vmatpush1.bf16.msra.mxu0 %v1280
        %1298 = vmatprep.subr.bf16.mxu0 0
        %1299 = vmatpush1.bf16.msra.mxu0 %v1281
        %1300 = vmatprep.subr.bf16.mxu0 0
        %1301 = vmatpush1.bf16.msra.mxu0 %v1282
        %1302 = vmatprep.subr.bf16.mxu0 0
        %1303 = vmatpush1.bf16.msra.mxu0 %v1283
        %1304 = vmatprep.subr.bf16.mxu0 0
        %1305 = vmatpush1.bf16.msra.mxu0 %v1284
        %1306 = vmatprep.subr.bf16.mxu0 0
        %1307 = vmatpush1.bf16.msra.mxu0 %v1285
        %1308 = vmatprep.subr.bf16.mxu0 0
        %1309 = vmatpush1.bf16.msra.mxu0 %v1286
        %1310 = vmatprep.subr.bf16.mxu0 0
        %1311 = vmatpush1.bf16.msra.mxu0 %v1287
        %1312 = vmatprep.subr.bf16.mxu0 0
        %1313 = vmatpush1.bf16.msra.mxu0 0
        %1314 = vmatprep.subr.bf16.mxu0 0
        %1315 = vmatpush1.bf16.msra.mxu0 0
        %1316 = vmatprep.subr.bf16.mxu0 0
        %1317 = vmatpush1.bf16.msra.mxu0 0
        %1318 = vmatprep.subr.bf16.mxu0 0
        %1319 = vmatpush1.bf16.msra.mxu0 0
        %1320 = vmatprep.subr.bf16.mxu0 0
        %1321 = vmatpush1.bf16.msra.mxu0 0
        %1322 = vmatprep.subr.bf16.mxu0 0
        %1323 = vmatpush1.bf16.msra.mxu0 0
        %1324 = vmatprep.subr.bf16.mxu0 0
        %1325 = vmatpush1.bf16.msra.mxu0 0
        %1326 = vmatprep.subr.bf16.mxu0 0
        %1327 = vmatpush1.bf16.msra.mxu0 0
        %1328 = vmatprep.mubr.bf16.mxu0 0
        %1329 = vmatmul.mubr.bf16.gmra.mrb[0].mxu0 %v1203
        %v1330 = vpop.f32.mrb[0].mxu0
        %v1331 = vadd.f32 %v1246, %v1330
        %v1332 = vpop.f32.mrb[0].mxu0
        %v1333 = vpop.f32.mrb[0].mxu0
        %v1334 = vadd.f32 %v1246, %v1333
        %v1335 = vpop.f32.mrb[0].mxu0
        %1336 = vmatprep.mubr.bf16.mxu0 0
        %1337 = vmatmul.mubr.bf16.gmra.mrb[0].mxu0 %v1204
        %v1338 = vpop.f32.mrb[0].mxu0
        %v1339 = vadd.f32 %v1246, %v1338
        %v1340 = vpop.f32.mrb[0].mxu0
        %v1341 = vpop.f32.mrb[0].mxu0
        %v1342 = vadd.f32 %v1246, %v1341
        %v1343 = vpop.f32.mrb[0].mxu0
        %1344 = vmatprep.mubr.bf16.mxu0 0
        %1345 = vmatmul.mubr.bf16.gmra.mrb[0].mxu0 %v1205
        %v1346 = vpop.f32.mrb[0].mxu0
        %v1347 = vadd.f32 %v1246, %v1346
        %v1348 = vpop.f32.mrb[0].mxu0
        %v1349 = vpop.f32.mrb[0].mxu0
        %v1350 = vadd.f32 %v1246, %v1349
        %v1351 = vpop.f32.mrb[0].mxu0
        %1352 = vmatprep.mubr.bf16.mxu0 0
        %1353 = vmatmul.mubr.bf16.gmra.mrb[0].mxu0 %v1206
        %v1354 = vpop.f32.mrb[0].mxu0
        %v1355 = vadd.f32 %v1246, %v1354
        %v1356 = vpop.f32.mrb[0].mxu0
        %v1357 = vpop.f32.mrb[0].mxu0
        %v1358 = vadd.f32 %v1246, %v1357
        %v1359 = vpop.f32.mrb[0].mxu0
        %1360 = vmatprep.mubr.bf16.mxu0 0
        %1361 = vmatmul.mubr.bf16.gmra.mrb[0].mxu0 %v1207
        %v1362 = vpop.f32.mrb[0].mxu0
        %v1363 = vadd.f32 %v1246, %v1362
        %v1364 = vpop.f32.mrb[0].mxu0
        %v1365 = vpop.f32.mrb[0].mxu0
        %v1366 = vadd.f32 %v1246, %v1365
        %v1367 = vpop.f32.mrb[0].mxu0
        %1368 = vmatprep.mubr.bf16.mxu0 0
        %1369 = vmatmul.mubr.bf16.gmra.mrb[0].mxu0 %v1208
        %v1370 = vpop.f32.mrb[0].mxu0
        %v1371 = vadd.f32 %v1246, %v1370
        %v1372 = vpop.f32.mrb[0].mxu0
        %v1373 = vpop.f32.mrb[0].mxu0
        %v1374 = vadd.f32 %v1246, %v1373
        %v1375 = vpop.f32.mrb[0].mxu0
        %1376 = vmatprep.mubr.bf16.mxu0 0
        %1377 = vmatmul.mubr.bf16.gmra.mrb[0].mxu0 %v1209
        %v1378 = vpop.f32.mrb[0].mxu0
        %v1379 = vadd.f32 %v1246, %v1378
        %v1380 = vpop.f32.mrb[0].mxu0
        %v1381 = vpop.f32.mrb[0].mxu0
        %v1382 = vadd.f32 %v1246, %v1381
        %v1383 = vpop.f32.mrb[0].mxu0
        %1384 = vmatprep.mubr.bf16.mxu0 0
        %1385 = vmatmul.mubr.bf16.gmra.mrb[0].mxu0 %v1210
        %v1386 = vpop.f32.mrb[0].mxu0
        %v1387 = vadd.f32 %v1246, %v1386
        %v1388 = vpop.f32.mrb[0].mxu0
        %v1389 = vpop.f32.mrb[0].mxu0
        %v1390 = vadd.f32 %v1246, %v1389
        %v1391 = vpop.f32.mrb[0].mxu0
        %1392 = vmatprep.mubr.bf16.mxu0 0
        %1393 = vmatmul.mubr.bf16.gmra.mrb[0].mxu0 %v1211
        %v1394 = vpop.f32.mrb[0].mxu0
        %v1395 = vadd.f32 %v1246, %v1394
        %v1396 = vpop.f32.mrb[0].mxu0
        %v1397 = vpop.f32.mrb[0].mxu0
        %v1398 = vadd.f32 %v1246, %v1397
        %v1399 = vpop.f32.mrb[0].mxu0
        %1400 = vmatprep.mubr.bf16.mxu0 0
        %1401 = vmatmul.mubr.bf16.gmra.mrb[0].mxu0 %v1212
        %v1402 = vpop.f32.mrb[0].mxu0
        %v1403 = vadd.f32 %v1246, %v1402
        %v1404 = vpop.f32.mrb[0].mxu0
        %v1405 = vpop.f32.mrb[0].mxu0
        %v1406 = vadd.f32 %v1246, %v1405
        %v1407 = vpop.f32.mrb[0].mxu0
        %1408 = vmatprep.mubr.bf16.mxu0 0
        %1409 = vmatmul.mubr.bf16.gmra.mrb[0].mxu0 %v1213
        %v1410 = vpop.f32.mrb[0].mxu0
        %v1411 = vadd.f32 %v1246, %v1410
        %v1412 = vpop.f32.mrb[0].mxu0
        %v1413 = vpop.f32.mrb[0].mxu0
        %v1414 = vadd.f32 %v1246, %v1413
        %v1415 = vpop.f32.mrb[0].mxu0
        %1416 = vmatprep.mubr.bf16.mxu0 0
        %1417 = vmatmul.mubr.bf16.gmra.mrb[0].mxu0 %v1214
        %v1418 = vpop.f32.mrb[0].mxu0
        %v1419 = vadd.f32 %v1246, %v1418
        %v1420 = vpop.f32.mrb[0].mxu0
        %v1421 = vpop.f32.mrb[0].mxu0
        %v1422 = vadd.f32 %v1246, %v1421
        %v1423 = vpop.f32.mrb[0].mxu0
        %1424 = vmatprep.mubr.bf16.mxu0 0
        %1425 = vmatmul.mubr.bf16.gmra.mrb[0].mxu0 %v1215
        %v1426 = vpop.f32.mrb[0].mxu0
        %v1427 = vadd.f32 %v1246, %v1426
        %v1428 = vpop.f32.mrb[0].mxu0
        %v1429 = vpop.f32.mrb[0].mxu0
        %v1430 = vadd.f32 %v1246, %v1429
        %v1431 = vpop.f32.mrb[0].mxu0
        %1432 = vmatprep.mubr.bf16.mxu0 0
        %1433 = vmatmul.mubr.bf16.gmra.mrb[0].mxu0 %v1216
        %v1434 = vpop.f32.mrb[0].mxu0
        %v1435 = vadd.f32 %v1246, %v1434
        %v1436 = vpop.f32.mrb[0].mxu0
        %v1437 = vpop.f32.mrb[0].mxu0
        %v1438 = vadd.f32 %v1246, %v1437
        %v1439 = vpop.f32.mrb[0].mxu0
        %1440 = vmatprep.mubr.bf16.mxu0 0
        %1441 = vmatmul.mubr.bf16.gmra.mrb[0].mxu0 %v1217
        %v1442 = vpop.f32.mrb[0].mxu0
        %v1443 = vadd.f32 %v1246, %v1442
        %v1444 = vpop.f32.mrb[0].mxu0
        %v1445 = vpop.f32.mrb[0].mxu0
        %v1446 = vadd.f32 %v1246, %v1445
        %v1447 = vpop.f32.mrb[0].mxu0
        %1448 = vmatprep.mubr.bf16.mxu0 0
        %1449 = vmatmul.mubr.bf16.gmra.mrb[0].mxu0 %v1218
        %v1450 = vpop.f32.mrb[0].mxu0
        %v1451 = vadd.f32 %v1246, %v1450
        %v1452 = vpop.f32.mrb[0].mxu0
        %v1453 = vpop.f32.mrb[0].mxu0
        %v1454 = vadd.f32 %v1246, %v1453
        %v1455 = vpop.f32.mrb[0].mxu0
        %1456 = vmatprep.mubr.bf16.mxu0 0
        %1457 = vmatmul.mubr.bf16.gmra.mrb[0].mxu0 %v1219
        %v1458 = vpop.f32.mrb[0].mxu0
        %v1459 = vadd.f32 %v1246, %v1458
        %v1460 = vpop.f32.mrb[0].mxu0
        %v1461 = vpop.f32.mrb[0].mxu0
        %v1462 = vadd.f32 %v1246, %v1461
        %v1463 = vpop.f32.mrb[0].mxu0
        %1464 = vmatprep.mubr.bf16.mxu0 0
        %1465 = vmatmul.mubr.bf16.gmra.mrb[0].mxu0 %v1220
        %v1466 = vpop.f32.mrb[0].mxu0
        %v1467 = vadd.f32 %v1246, %v1466
        %v1468 = vpop.f32.mrb[0].mxu0
        %v1469 = vpop.f32.mrb[0].mxu0
        %v1470 = vadd.f32 %v1246, %v1469
        %v1471 = vpop.f32.mrb[0].mxu0
        %1472 = vmatprep.mubr.bf16.mxu0 0
        %1473 = vmatmul.mubr.bf16.gmra.mrb[0].mxu0 %v1221
        %v1474 = vpop.f32.mrb[0].mxu0
        %v1475 = vadd.f32 %v1246, %v1474
        %v1476 = vpop.f32.mrb[0].mxu0
        %v1477 = vpop.f32.mrb[0].mxu0
        %v1478 = vadd.f32 %v1246, %v1477
        %v1479 = vpop.f32.mrb[0].mxu0
        %1480 = vmatprep.mubr.bf16.mxu0 0
        %1481 = vmatmul.mubr.bf16.gmra.mrb[0].mxu0 %v1222
        %v1482 = vpop.f32.mrb[0].mxu0
        %v1483 = vadd.f32 %v1246, %v1482
        %v1484 = vpop.f32.mrb[0].mxu0
        %v1485 = vpop.f32.mrb[0].mxu0
        %v1486 = vadd.f32 %v1246, %v1485
        %v1487 = vpop.f32.mrb[0].mxu0
        %1488 = vmatprep.mubr.bf16.mxu0 0
        %1489 = vmatmul.mubr.bf16.gmra.mrb[0].mxu0 %v1223
        %v1490 = vpop.f32.mrb[0].mxu0
        %v1491 = vadd.f32 %v1246, %v1490
        %v1492 = vpop.f32.mrb[0].mxu0
        %v1493 = vpop.f32.mrb[0].mxu0
        %v1494 = vadd.f32 %v1246, %v1493
        %v1495 = vpop.f32.mrb[0].mxu0
        %1496 = vmatprep.mubr.bf16.mxu0 0
        %1497 = vmatmul.mubr.bf16.gmra.mrb[0].mxu0 %v1224
        %v1498 = vpop.f32.mrb[0].mxu0
        %v1499 = vadd.f32 %v1246, %v1498
        %v1500 = vpop.f32.mrb[0].mxu0
        %v1501 = vpop.f32.mrb[0].mxu0
        %v1502 = vadd.f32 %v1246, %v1501
        %v1503 = vpop.f32.mrb[0].mxu0
        %1504 = vdwg.mxu0
        %v1505 = vld [vmem:[#allocation7] sm:$0xff]
        %v1506 = vld [vmem:[#allocation7 + $0x8] sm:$0xf]
        %v1507 = vld [vmem:[#allocation7 + $0xc] sm:$0xff]
        %v1508 = vld [vmem:[#allocation7 + $0x14] sm:$0xf]
        %v1509 = vld [vmem:[#allocation7 + $0x18] sm:$0xff]
        %v1510 = vld [vmem:[#allocation7 + $0x20] sm:$0xf]
        %v1511 = vld [vmem:[#allocation7 + $0x24] sm:$0xff]
        %v1512 = vld [vmem:[#allocation7 + $0x2c] sm:$0xf]
        %v1513 = vld [vmem:[#allocation7 + $0x30] sm:$0xff]
        %v1514 = vld [vmem:[#allocation7 + $0x38] sm:$0xf]
        %v1515 = vld [vmem:[#allocation7 + $0x3c] sm:$0xff]
        %v1516 = vld [vmem:[#allocation7 + $0x44] sm:$0xf]
        %v1517 = vld [vmem:[#allocation7 + $0x48] sm:$0xff]
        %v1518 = vld [vmem:[#allocation7 + $0x50] sm:$0xf]
        %v1519 = vld [vmem:[#allocation7 + $0x54] sm:$0xff]
        %v1520 = vld [vmem:[#allocation7 + $0x5c] sm:$0xf]
        %v1521 = vld [vmem:[#allocation7 + $0x60] sm:$0xff]
        %v1522 = vld [vmem:[#allocation7 + $0x68] sm:$0xf]
        %v1523 = vld [vmem:[#allocation7 + $0x6c] sm:$0xff]
        %v1524 = vld [vmem:[#allocation7 + $0x74] sm:$0xf]
        %v1525 = vld [vmem:[#allocation7 + $0x78] sm:$0xff]
        %v1526 = vld [vmem:[#allocation7 + $0x80] sm:$0xf]
        %v1527 = vld [vmem:[#allocation7 + $0x84] sm:$0xff]
        %v1528 = vld [vmem:[#allocation7 + $0x8c] sm:$0xf]
        %v1529 = vld [vmem:[#allocation7 + $0x90] sm:$0xff]
        %v1530 = vld [vmem:[#allocation7 + $0x98] sm:$0xf]
        %v1531 = vld [vmem:[#allocation7 + $0x9c] sm:$0xff]
        %v1532 = vld [vmem:[#allocation7 + $0xa4] sm:$0xf]
        %v1533 = vld [vmem:[#allocation7 + $0xa8] sm:$0xff]
        %v1534 = vld [vmem:[#allocation7 + $0xb0] sm:$0xf]
        %v1535 = vld [vmem:[#allocation7 + $0xb4] sm:$0xff]
        %v1536 = vld [vmem:[#allocation7 + $0xbc] sm:$0xf]
        %v1537 = vld [vmem:[%s4] sm:$0x7]
        %v1539 = vlaneseq
        %v1540 = vshrl.u32 %v1539, 7
        %v1541 = vsub.s32 0, %v1540
        %v1542 = vrot.slane %v1537, %v1541
        %v1543 = vlaneseq
        %v1544 = vshrl.u32 %v1543, 7
        %v1545 = vsub.s32 1, %v1544
        %v1546 = vrot.slane %v1537, %v1545
        %v1547 = vlaneseq
        %v1548 = vshrl.u32 %v1547, 7
        %v1549 = vsub.s32 2, %v1548
        %v1550 = vrot.slane %v1537, %v1549
        %v1586 = vunpack.c.l.b16 %v1505
        %v1587 = vunpack.c.h.b16 %v1505
        %v1588 = vunpack.c.l.b16 %v1506
        %v1589 = vunpack.c.l.b16 %v1507
        %v1590 = vunpack.c.h.b16 %v1507
        %v1591 = vunpack.c.l.b16 %v1508
        %v1592 = vunpack.c.l.b16 %v1509
        %v1593 = vunpack.c.h.b16 %v1509
        %v1594 = vunpack.c.l.b16 %v1510
        %v1595 = vunpack.c.l.b16 %v1511
        %v1596 = vunpack.c.h.b16 %v1511
        %v1597 = vunpack.c.l.b16 %v1512
        %v1598 = vunpack.c.l.b16 %v1513
        %v1599 = vunpack.c.h.b16 %v1513
        %v1600 = vunpack.c.l.b16 %v1514
        %v1601 = vunpack.c.l.b16 %v1515
        %v1602 = vunpack.c.h.b16 %v1515
        %v1603 = vunpack.c.l.b16 %v1516
        %v1604 = vunpack.c.l.b16 %v1517
        %v1605 = vunpack.c.h.b16 %v1517
        %v1606 = vunpack.c.l.b16 %v1518
        %v1607 = vunpack.c.l.b16 %v1519
        %v1608 = vunpack.c.h.b16 %v1519
        %v1609 = vunpack.c.l.b16 %v1520
        %v1610 = vunpack.c.l.b16 %v1521
        %v1611 = vunpack.c.h.b16 %v1521
        %v1612 = vunpack.c.l.b16 %v1522
        %v1613 = vunpack.c.l.b16 %v1523
        %v1614 = vunpack.c.h.b16 %v1523
        %v1615 = vunpack.c.l.b16 %v1524
        %v1616 = vunpack.c.l.b16 %v1525
        %v1617 = vunpack.c.h.b16 %v1525
        %v1618 = vunpack.c.l.b16 %v1526
        %v1619 = vunpack.c.l.b16 %v1527
        %v1620 = vunpack.c.h.b16 %v1527
        %v1621 = vunpack.c.l.b16 %v1528
        %v1622 = vunpack.c.l.b16 %v1529
        %v1623 = vunpack.c.h.b16 %v1529
        %v1624 = vunpack.c.l.b16 %v1530
        %v1625 = vunpack.c.l.b16 %v1531
        %v1626 = vunpack.c.h.b16 %v1531
        %v1627 = vunpack.c.l.b16 %v1532
        %v1628 = vunpack.c.l.b16 %v1533
        %v1629 = vunpack.c.h.b16 %v1533
        %v1630 = vunpack.c.l.b16 %v1534
        %v1631 = vunpack.c.l.b16 %v1535
        %v1632 = vunpack.c.h.b16 %v1535
        %v1633 = vunpack.c.l.b16 %v1536
        %v1634 = vpack.c.b16 %v1589, %v1586
        %v1635 = vpack.c.b16 %v1590, %v1587
        %v1636 = vpack.c.b16 %v1591, %v1588
        %v1637 = vpack.c.b16 %v1595, %v1592
        %v1638 = vpack.c.b16 %v1596, %v1593
        %v1639 = vpack.c.b16 %v1597, %v1594
        %v1640 = vpack.c.b16 %v1601, %v1598
        %v1641 = vpack.c.b16 %v1602, %v1599
        %v1642 = vpack.c.b16 %v1603, %v1600
        %v1643 = vpack.c.b16 %v1607, %v1604
        %v1644 = vpack.c.b16 %v1608, %v1605
        %v1645 = vpack.c.b16 %v1609, %v1606
        %v1646 = vpack.c.b16 %v1613, %v1610
        %v1647 = vpack.c.b16 %v1614, %v1611
        %v1648 = vpack.c.b16 %v1615, %v1612
        %v1649 = vpack.c.b16 %v1619, %v1616
        %v1650 = vpack.c.b16 %v1620, %v1617
        %v1651 = vpack.c.b16 %v1621, %v1618
        %v1652 = vpack.c.b16 %v1625, %v1622
        %v1653 = vpack.c.b16 %v1626, %v1623
        %v1654 = vpack.c.b16 %v1627, %v1624
        %v1655 = vpack.c.b16 %v1631, %v1628
        %v1656 = vpack.c.b16 %v1632, %v1629
        %v1657 = vpack.c.b16 %v1633, %v1630
        %1682 = vmatprep.subr.bf16.mxu0 %v1635
        %1683 = vmatpush1.bf16.msra.mxu0 %v1634
        %1684 = vmatprep.subr.bf16.mxu0 %v1638
        %1685 = vmatpush1.bf16.msra.mxu0 %v1637
        %1686 = vmatprep.subr.bf16.mxu0 %v1641
        %1687 = vmatpush1.bf16.msra.mxu0 %v1640
        %1688 = vmatprep.subr.bf16.mxu0 %v1644
        %1689 = vmatpush1.bf16.msra.mxu0 %v1643
        %1690 = vmatprep.subr.bf16.mxu0 %v1647
        %1691 = vmatpush1.bf16.msra.mxu0 %v1646
        %1692 = vmatprep.subr.bf16.mxu0 %v1650
        %1693 = vmatpush1.bf16.msra.mxu0 %v1649
        %1694 = vmatprep.subr.bf16.mxu0 %v1653
        %1695 = vmatpush1.bf16.msra.mxu0 %v1652
        %1696 = vmatprep.subr.bf16.mxu0 %v1656
        %1697 = vmatpush1.bf16.msra.mxu0 %v1655
        %1698 = vmatprep.subr.bf16.mxu0 0
        %1699 = vmatpush1.bf16.msra.mxu0 0
        %1700 = vmatprep.subr.bf16.mxu0 0
        %1701 = vmatpush1.bf16.msra.mxu0 0
        %1702 = vmatprep.subr.bf16.mxu0 0
        %1703 = vmatpush1.bf16.msra.mxu0 0
        %1704 = vmatprep.subr.bf16.mxu0 0
        %1705 = vmatpush1.bf16.msra.mxu0 0
        %1706 = vmatprep.subr.bf16.mxu0 0
        %1707 = vmatpush1.bf16.msra.mxu0 0
        %1708 = vmatprep.subr.bf16.mxu0 0
        %1709 = vmatpush1.bf16.msra.mxu0 0
        %1710 = vmatprep.subr.bf16.mxu0 0
        %1711 = vmatpush1.bf16.msra.mxu0 0
        %1712 = vmatprep.subr.bf16.mxu0 0
        %1713 = vmatpush1.bf16.msra.mxu0 0
        %1714 = vmatprep.mubr.bf16.mxu0 0
        %1715 = vmatmul.mubr.bf16.gmra.mrb[0].mxu0 %v1206
        %v1716 = vpop.f32.mrb[0].mxu0
        %v1717 = vadd.f32 %v1542, %v1716
        %v1718 = vpop.f32.mrb[0].mxu0
        %v1719 = vadd.f32 %v1546, %v1718
        %v1720 = vpop.f32.mrb[0].mxu0
        %v1721 = vadd.f32 %v1542, %v1720
        %v1722 = vpop.f32.mrb[0].mxu0
        %v1723 = vadd.f32 %v1546, %v1722
        %1724 = vmatprep.mubr.bf16.mxu0 0
        %1725 = vmatmul.mubr.bf16.gmra.mrb[0].mxu0 %v1207
        %v1726 = vpop.f32.mrb[0].mxu0
        %v1727 = vadd.f32 %v1542, %v1726
        %v1728 = vpop.f32.mrb[0].mxu0
        %v1729 = vadd.f32 %v1546, %v1728
        %v1730 = vpop.f32.mrb[0].mxu0
        %v1731 = vadd.f32 %v1542, %v1730
        %v1732 = vpop.f32.mrb[0].mxu0
        %v1733 = vadd.f32 %v1546, %v1732
        %1734 = vmatprep.mubr.bf16.mxu0 0
        %1735 = vmatmul.mubr.bf16.gmra.mrb[0].mxu0 %v1208
        %v1736 = vpop.f32.mrb[0].mxu0
        %v1737 = vadd.f32 %v1542, %v1736
        %v1738 = vpop.f32.mrb[0].mxu0
        %v1739 = vadd.f32 %v1546, %v1738
        %v1740 = vpop.f32.mrb[0].mxu0
        %v1741 = vadd.f32 %v1542, %v1740
        %v1742 = vpop.f32.mrb[0].mxu0
        %v1743 = vadd.f32 %v1546, %v1742
        %1744 = vmatprep.mubr.bf16.mxu0 0
        %1745 = vmatmul.mubr.bf16.gmra.mrb[0].mxu0 %v1209
        %v1746 = vpop.f32.mrb[0].mxu0
        %v1747 = vadd.f32 %v1542, %v1746
        %v1748 = vpop.f32.mrb[0].mxu0
        %v1749 = vadd.f32 %v1546, %v1748
        %v1750 = vpop.f32.mrb[0].mxu0
        %v1751 = vadd.f32 %v1542, %v1750
        %v1752 = vpop.f32.mrb[0].mxu0
        %v1753 = vadd.f32 %v1546, %v1752
        %1754 = vmatprep.mubr.bf16.mxu0 0
        %1755 = vmatmul.mubr.bf16.gmra.mrb[0].mxu0 %v1210
        %v1756 = vpop.f32.mrb[0].mxu0
        %v1757 = vadd.f32 %v1542, %v1756
        %v1758 = vpop.f32.mrb[0].mxu0
        %v1759 = vadd.f32 %v1546, %v1758
        %v1760 = vpop.f32.mrb[0].mxu0
        %v1761 = vadd.f32 %v1542, %v1760
        %v1762 = vpop.f32.mrb[0].mxu0
        %v1763 = vadd.f32 %v1546, %v1762
        %1764 = vmatprep.mubr.bf16.mxu0 0
        %1765 = vmatmul.mubr.bf16.gmra.mrb[0].mxu0 %v1211
        %v1766 = vpop.f32.mrb[0].mxu0
        %v1767 = vadd.f32 %v1542, %v1766
        %v1768 = vpop.f32.mrb[0].mxu0
        %v1769 = vadd.f32 %v1546, %v1768
        %v1770 = vpop.f32.mrb[0].mxu0
        %v1771 = vadd.f32 %v1542, %v1770
        %v1772 = vpop.f32.mrb[0].mxu0
        %v1773 = vadd.f32 %v1546, %v1772
        %1774 = vmatprep.mubr.bf16.mxu0 0
        %1775 = vmatmul.mubr.bf16.gmra.mrb[0].mxu0 %v1212
        %v1776 = vpop.f32.mrb[0].mxu0
        %v1777 = vadd.f32 %v1542, %v1776
        %v1778 = vpop.f32.mrb[0].mxu0
        %v1779 = vadd.f32 %v1546, %v1778
        %v1780 = vpop.f32.mrb[0].mxu0
        %v1781 = vadd.f32 %v1542, %v1780
        %v1782 = vpop.f32.mrb[0].mxu0
        %v1783 = vadd.f32 %v1546, %v1782
        %1784 = vmatprep.mubr.bf16.mxu0 0
        %1785 = vmatmul.mubr.bf16.gmra.mrb[0].mxu0 %v1213
        %v1786 = vpop.f32.mrb[0].mxu0
        %v1787 = vadd.f32 %v1542, %v1786
        %v1788 = vpop.f32.mrb[0].mxu0
        %v1789 = vadd.f32 %v1546, %v1788
        %v1790 = vpop.f32.mrb[0].mxu0
        %v1791 = vadd.f32 %v1542, %v1790
        %v1792 = vpop.f32.mrb[0].mxu0
        %v1793 = vadd.f32 %v1546, %v1792
        %1794 = vmatprep.mubr.bf16.mxu0 0
        %1795 = vmatmul.mubr.bf16.gmra.mrb[0].mxu0 %v1214
        %v1796 = vpop.f32.mrb[0].mxu0
        %v1797 = vadd.f32 %v1542, %v1796
        %v1798 = vpop.f32.mrb[0].mxu0
        %v1799 = vadd.f32 %v1546, %v1798
        %v1800 = vpop.f32.mrb[0].mxu0
        %v1801 = vadd.f32 %v1542, %v1800
        %v1802 = vpop.f32.mrb[0].mxu0
        %v1803 = vadd.f32 %v1546, %v1802
        %1804 = vmatprep.mubr.bf16.mxu0 0
        %1805 = vmatmul.mubr.bf16.gmra.mrb[0].mxu0 %v1215
        %v1806 = vpop.f32.mrb[0].mxu0
        %v1807 = vadd.f32 %v1542, %v1806
        %v1808 = vpop.f32.mrb[0].mxu0
        %v1809 = vadd.f32 %v1546, %v1808
        %v1810 = vpop.f32.mrb[0].mxu0
        %v1811 = vadd.f32 %v1542, %v1810
        %v1812 = vpop.f32.mrb[0].mxu0
        %v1813 = vadd.f32 %v1546, %v1812
        %1814 = vmatprep.mubr.bf16.mxu0 0
        %1815 = vmatmul.mubr.bf16.gmra.mrb[0].mxu0 %v1216
        %v1816 = vpop.f32.mrb[0].mxu0
        %v1817 = vadd.f32 %v1542, %v1816
        %v1818 = vpop.f32.mrb[0].mxu0
        %v1819 = vadd.f32 %v1546, %v1818
        %v1820 = vpop.f32.mrb[0].mxu0
        %v1821 = vadd.f32 %v1542, %v1820
        %v1822 = vpop.f32.mrb[0].mxu0
        %v1823 = vadd.f32 %v1546, %v1822
        %1824 = vmatprep.mubr.bf16.mxu0 0
        %1825 = vmatmul.mubr.bf16.gmra.mrb[0].mxu0 %v1217
        %v1826 = vpop.f32.mrb[0].mxu0
        %v1827 = vadd.f32 %v1542, %v1826
        %v1828 = vpop.f32.mrb[0].mxu0
        %v1829 = vadd.f32 %v1546, %v1828
        %v1830 = vpop.f32.mrb[0].mxu0
        %v1831 = vadd.f32 %v1542, %v1830
        %v1832 = vpop.f32.mrb[0].mxu0
        %v1833 = vadd.f32 %v1546, %v1832
        %1834 = vmatprep.mubr.bf16.mxu0 0
        %1835 = vmatmul.mubr.bf16.gmra.mrb[0].mxu0 %v1218
        %v1836 = vpop.f32.mrb[0].mxu0
        %v1837 = vadd.f32 %v1542, %v1836
        %v1838 = vpop.f32.mrb[0].mxu0
        %v1839 = vadd.f32 %v1546, %v1838
        %v1840 = vpop.f32.mrb[0].mxu0
        %v1841 = vadd.f32 %v1542, %v1840
        %v1842 = vpop.f32.mrb[0].mxu0
        %v1843 = vadd.f32 %v1546, %v1842
        %1844 = vmatprep.mubr.bf16.mxu0 0
        %1845 = vmatmul.mubr.bf16.gmra.mrb[0].mxu0 %v1219
        %v1846 = vpop.f32.mrb[0].mxu0
        %v1847 = vadd.f32 %v1542, %v1846
        %v1848 = vpop.f32.mrb[0].mxu0
        %v1849 = vadd.f32 %v1546, %v1848
        %v1850 = vpop.f32.mrb[0].mxu0
        %v1851 = vadd.f32 %v1542, %v1850
        %v1852 = vpop.f32.mrb[0].mxu0
        %v1853 = vadd.f32 %v1546, %v1852
        %1854 = vmatprep.mubr.bf16.mxu0 0
        %1855 = vmatmul.mubr.bf16.gmra.mrb[0].mxu0 %v1220
        %v1856 = vpop.f32.mrb[0].mxu0
        %v1857 = vadd.f32 %v1542, %v1856
        %v1858 = vpop.f32.mrb[0].mxu0
        %v1859 = vadd.f32 %v1546, %v1858
        %v1860 = vpop.f32.mrb[0].mxu0
        %v1861 = vadd.f32 %v1542, %v1860
        %v1862 = vpop.f32.mrb[0].mxu0
        %v1863 = vadd.f32 %v1546, %v1862
        %1864 = vmatprep.mubr.bf16.mxu0 0
        %1865 = vmatmul.mubr.bf16.gmra.mrb[0].mxu0 %v1221
        %v1866 = vpop.f32.mrb[0].mxu0
        %v1867 = vadd.f32 %v1542, %v1866
        %v1868 = vpop.f32.mrb[0].mxu0
        %v1869 = vadd.f32 %v1546, %v1868
        %v1870 = vpop.f32.mrb[0].mxu0
        %v1871 = vadd.f32 %v1542, %v1870
        %v1872 = vpop.f32.mrb[0].mxu0
        %v1873 = vadd.f32 %v1546, %v1872
        %1874 = vdwg.mxu0
        %1875 = vmatprep.subr.bf16.mxu0 0
        %1876 = vmatpush1.bf16.msra.mxu0 %v1636
        %1877 = vmatprep.subr.bf16.mxu0 0
        %1878 = vmatpush1.bf16.msra.mxu0 %v1639
        %1879 = vmatprep.subr.bf16.mxu0 0
        %1880 = vmatpush1.bf16.msra.mxu0 %v1642
        %1881 = vmatprep.subr.bf16.mxu0 0
        %1882 = vmatpush1.bf16.msra.mxu0 %v1645
        %1883 = vmatprep.subr.bf16.mxu0 0
        %1884 = vmatpush1.bf16.msra.mxu0 %v1648
        %1885 = vmatprep.subr.bf16.mxu0 0
        %1886 = vmatpush1.bf16.msra.mxu0 %v1651
        %1887 = vmatprep.subr.bf16.mxu0 0
        %1888 = vmatpush1.bf16.msra.mxu0 %v1654
        %1889 = vmatprep.subr.bf16.mxu0 0
        %1890 = vmatpush1.bf16.msra.mxu0 %v1657
        %1891 = vmatprep.subr.bf16.mxu0 0
        %1892 = vmatpush1.bf16.msra.mxu0 0
        %1893 = vmatprep.subr.bf16.mxu0 0
        %1894 = vmatpush1.bf16.msra.mxu0 0
        %1895 = vmatprep.subr.bf16.mxu0 0
        %1896 = vmatpush1.bf16.msra.mxu0 0
        %1897 = vmatprep.subr.bf16.mxu0 0
        %1898 = vmatpush1.bf16.msra.mxu0 0
        %1899 = vmatprep.subr.bf16.mxu0 0
        %1900 = vmatpush1.bf16.msra.mxu0 0
        %1901 = vmatprep.subr.bf16.mxu0 0
        %1902 = vmatpush1.bf16.msra.mxu0 0
        %1903 = vmatprep.subr.bf16.mxu0 0
        %1904 = vmatpush1.bf16.msra.mxu0 0
        %1905 = vmatprep.subr.bf16.mxu0 0
        %1906 = vmatpush1.bf16.msra.mxu0 0
        %1907 = vmatprep.mubr.bf16.mxu0 0
        %1908 = vmatmul.mubr.bf16.gmra.mrb[0].mxu0 %v1206
        %v1909 = vpop.f32.mrb[0].mxu0
        %v1910 = vadd.f32 %v1550, %v1909
        %v1911 = vpop.f32.mrb[0].mxu0
        %v1912 = vpop.f32.mrb[0].mxu0
        %v1913 = vadd.f32 %v1550, %v1912
        %v1914 = vpop.f32.mrb[0].mxu0
        %1915 = vmatprep.mubr.bf16.mxu0 0
        %1916 = vmatmul.mubr.bf16.gmra.mrb[0].mxu0 %v1207
        %v1917 = vpop.f32.mrb[0].mxu0
        %v1918 = vadd.f32 %v1550, %v1917
        %v1919 = vpop.f32.mrb[0].mxu0
        %v1920 = vpop.f32.mrb[0].mxu0
        %v1921 = vadd.f32 %v1550, %v1920
        %v1922 = vpop.f32.mrb[0].mxu0
        %1923 = vmatprep.mubr.bf16.mxu0 0
        %1924 = vmatmul.mubr.bf16.gmra.mrb[0].mxu0 %v1208
        %v1925 = vpop.f32.mrb[0].mxu0
        %v1926 = vadd.f32 %v1550, %v1925
        %v1927 = vpop.f32.mrb[0].mxu0
        %v1928 = vpop.f32.mrb[0].mxu0
        %v1929 = vadd.f32 %v1550, %v1928
        %v1930 = vpop.f32.mrb[0].mxu0
        %1931 = vmatprep.mubr.bf16.mxu0 0
        %1932 = vmatmul.mubr.bf16.gmra.mrb[0].mxu0 %v1209
        %v1933 = vpop.f32.mrb[0].mxu0
        %v1934 = vadd.f32 %v1550, %v1933
        %v1935 = vpop.f32.mrb[0].mxu0
        %v1936 = vpop.f32.mrb[0].mxu0
        %v1937 = vadd.f32 %v1550, %v1936
        %v1938 = vpop.f32.mrb[0].mxu0
        %1939 = vmatprep.mubr.bf16.mxu0 0
        %1940 = vmatmul.mubr.bf16.gmra.mrb[0].mxu0 %v1210
        %v1941 = vpop.f32.mrb[0].mxu0
        %v1942 = vadd.f32 %v1550, %v1941
        %v1943 = vpop.f32.mrb[0].mxu0
        %v1944 = vpop.f32.mrb[0].mxu0
        %v1945 = vadd.f32 %v1550, %v1944
        %v1946 = vpop.f32.mrb[0].mxu0
        %1947 = vmatprep.mubr.bf16.mxu0 0
        %1948 = vmatmul.mubr.bf16.gmra.mrb[0].mxu0 %v1211
        %v1949 = vpop.f32.mrb[0].mxu0
        %v1950 = vadd.f32 %v1550, %v1949
        %v1951 = vpop.f32.mrb[0].mxu0
        %v1952 = vpop.f32.mrb[0].mxu0
        %v1953 = vadd.f32 %v1550, %v1952
        %v1954 = vpop.f32.mrb[0].mxu0
        %1955 = vmatprep.mubr.bf16.mxu0 0
        %1956 = vmatmul.mubr.bf16.gmra.mrb[0].mxu0 %v1212
        %v1957 = vpop.f32.mrb[0].mxu0
        %v1958 = vadd.f32 %v1550, %v1957
        %v1959 = vpop.f32.mrb[0].mxu0
        %v1960 = vpop.f32.mrb[0].mxu0
        %v1961 = vadd.f32 %v1550, %v1960
        %v1962 = vpop.f32.mrb[0].mxu0
        %1963 = vmatprep.mubr.bf16.mxu0 0
        %1964 = vmatmul.mubr.bf16.gmra.mrb[0].mxu0 %v1213
        %v1965 = vpop.f32.mrb[0].mxu0
        %v1966 = vadd.f32 %v1550, %v1965
        %v1967 = vpop.f32.mrb[0].mxu0
        %v1968 = vpop.f32.mrb[0].mxu0
        %v1969 = vadd.f32 %v1550, %v1968
        %v1970 = vpop.f32.mrb[0].mxu0
        %1971 = vmatprep.mubr.bf16.mxu0 0
        %1972 = vmatmul.mubr.bf16.gmra.mrb[0].mxu0 %v1214
        %v1973 = vpop.f32.mrb[0].mxu0
        %v1974 = vadd.f32 %v1550, %v1973
        %v1975 = vpop.f32.mrb[0].mxu0
        %v1976 = vpop.f32.mrb[0].mxu0
        %v1977 = vadd.f32 %v1550, %v1976
        %v1978 = vpop.f32.mrb[0].mxu0
        %1979 = vmatprep.mubr.bf16.mxu0 0
        %1980 = vmatmul.mubr.bf16.gmra.mrb[0].mxu0 %v1215
        %v1981 = vpop.f32.mrb[0].mxu0
        %v1982 = vadd.f32 %v1550, %v1981
        %v1983 = vpop.f32.mrb[0].mxu0
        %v1984 = vpop.f32.mrb[0].mxu0
        %v1985 = vadd.f32 %v1550, %v1984
        %v1986 = vpop.f32.mrb[0].mxu0
        %1987 = vmatprep.mubr.bf16.mxu0 0
        %1988 = vmatmul.mubr.bf16.gmra.mrb[0].mxu0 %v1216
        %v1989 = vpop.f32.mrb[0].mxu0
        %v1990 = vadd.f32 %v1550, %v1989
        %v1991 = vpop.f32.mrb[0].mxu0
        %v1992 = vpop.f32.mrb[0].mxu0
        %v1993 = vadd.f32 %v1550, %v1992
        %v1994 = vpop.f32.mrb[0].mxu0
        %1995 = vmatprep.mubr.bf16.mxu0 0
        %1996 = vmatmul.mubr.bf16.gmra.mrb[0].mxu0 %v1217
        %v1997 = vpop.f32.mrb[0].mxu0
        %v1998 = vadd.f32 %v1550, %v1997
        %v1999 = vpop.f32.mrb[0].mxu0
        %v2000 = vpop.f32.mrb[0].mxu0
        %v2001 = vadd.f32 %v1550, %v2000
        %v2002 = vpop.f32.mrb[0].mxu0
        %2003 = vmatprep.mubr.bf16.mxu0 0
        %2004 = vmatmul.mubr.bf16.gmra.mrb[0].mxu0 %v1218
        %v2005 = vpop.f32.mrb[0].mxu0
        %v2006 = vadd.f32 %v1550, %v2005
        %v2007 = vpop.f32.mrb[0].mxu0
        %v2008 = vpop.f32.mrb[0].mxu0
        %v2009 = vadd.f32 %v1550, %v2008
        %v2010 = vpop.f32.mrb[0].mxu0
        %2011 = vmatprep.mubr.bf16.mxu0 0
        %2012 = vmatmul.mubr.bf16.gmra.mrb[0].mxu0 %v1219
        %v2013 = vpop.f32.mrb[0].mxu0
        %v2014 = vadd.f32 %v1550, %v2013
        %v2015 = vpop.f32.mrb[0].mxu0
        %v2016 = vpop.f32.mrb[0].mxu0
        %v2017 = vadd.f32 %v1550, %v2016
        %v2018 = vpop.f32.mrb[0].mxu0
        %2019 = vmatprep.mubr.bf16.mxu0 0
        %2020 = vmatmul.mubr.bf16.gmra.mrb[0].mxu0 %v1220
        %v2021 = vpop.f32.mrb[0].mxu0
        %v2022 = vadd.f32 %v1550, %v2021
        %v2023 = vpop.f32.mrb[0].mxu0
        %v2024 = vpop.f32.mrb[0].mxu0
        %v2025 = vadd.f32 %v1550, %v2024
        %v2026 = vpop.f32.mrb[0].mxu0
        %2027 = vmatprep.mubr.bf16.mxu0 0
        %2028 = vmatmul.mubr.bf16.gmra.mrb[0].mxu0 %v1221
        %v2029 = vpop.f32.mrb[0].mxu0
        %v2030 = vadd.f32 %v1550, %v2029
        %v2031 = vpop.f32.mrb[0].mxu0
        %v2032 = vpop.f32.mrb[0].mxu0
        %v2033 = vadd.f32 %v1550, %v2032
        %v2034 = vpop.f32.mrb[0].mxu0
        %2035 = vdwg.mxu0
        %2036 = vst [vmem:[#allocation2] sm:$0xff] 0.0
        %2037 = vst [vmem:[#allocation2 + $0x20] sm:$0xff] 0.0
        %2038 = vst [vmem:[#allocation2 + $0x40] sm:$0xff] 0.0
        %2039 = vst [vmem:[#allocation2 + $0x60] sm:$0xff] 0.0
        %2040 = vst [vmem:[#allocation2 + $0x80] sm:$0xff] 0.0
        %2041 = vst [vmem:[#allocation2 + $0xa0] sm:$0xff] 0.0
        %2042 = vst [vmem:[#allocation2 + $0xc0] sm:$0xff] 0.0
        %2043 = vst [vmem:[#allocation2 + $0xe0] sm:$0xff] 0.0
        %2044 = vst [vmem:[#allocation2 + $0x100] sm:$0xff] 0.0
        %2045 = vst [vmem:[#allocation2 + $0x120] sm:$0xff] 0.0
        %2046 = vst [vmem:[#allocation2 + $0x140] sm:$0xff] 0.0
        %2047 = vst [vmem:[#allocation2 + $0x160] sm:$0xff] 0.0
        %2048 = vst [vmem:[#allocation2 + $0x180] sm:$0xff] 0.0
        %2049 = vst [vmem:[#allocation2 + $0x1a0] sm:$0xff] 0.0
        %2050 = vst [vmem:[#allocation2 + $0x1c0] sm:$0xff] 0.0
        %2051 = vst [vmem:[#allocation2 + $0x1e0] sm:$0xff] 0.0
        %2052 = vst [vmem:[#allocation2 + $0x200] sm:$0xff] 0.0
        %2053 = vst [vmem:[#allocation2 + $0x220] sm:$0xff] 0.0
        %2054 = vst [vmem:[#allocation2 + $0x240] sm:$0xff] 0.0
        %2055 = vst [vmem:[#allocation2 + $0x260] sm:$0xff] 0.0
        %2056 = vst [vmem:[#allocation2 + $0x280] sm:$0xff] 0.0
        %2057 = vst [vmem:[#allocation2 + $0x2a0] sm:$0xff] 0.0
        %2058 = vst [vmem:[#allocation2 + $0x18] sm:$0xff] 0.0
        %2059 = vst [vmem:[#allocation2 + $0x38] sm:$0xff] 0.0
        %2060 = vst [vmem:[#allocation2 + $0x58] sm:$0xff] 0.0
        %2061 = vst [vmem:[#allocation2 + $0x78] sm:$0xff] 0.0
        %2062 = vst [vmem:[#allocation2 + $0x98] sm:$0xff] 0.0
        %2063 = vst [vmem:[#allocation2 + $0xb8] sm:$0xff] 0.0
        %2064 = vst [vmem:[#allocation2 + $0xd8] sm:$0xff] 0.0
        %2065 = vst [vmem:[#allocation2 + $0xf8] sm:$0xff] 0.0
        %2066 = vst [vmem:[#allocation2 + $0x118] sm:$0xff] 0.0
        %2067 = vst [vmem:[#allocation2 + $0x138] sm:$0xff] 0.0
        %2068 = vst [vmem:[#allocation2 + $0x158] sm:$0xff] 0.0
        %2069 = vst [vmem:[#allocation2 + $0x178] sm:$0xff] 0.0
        %2070 = vst [vmem:[#allocation2 + $0x198] sm:$0xff] 0.0
        %2071 = vst [vmem:[#allocation2 + $0x1b8] sm:$0xff] 0.0
        %2072 = vst [vmem:[#allocation2 + $0x1d8] sm:$0xff] 0.0
        %2073 = vst [vmem:[#allocation2 + $0x1f8] sm:$0xff] 0.0
        %2074 = vst [vmem:[#allocation2 + $0x218] sm:$0xff] 0.0
        %2075 = vst [vmem:[#allocation2 + $0x238] sm:$0xff] 0.0
        %2076 = vst [vmem:[#allocation2 + $0x258] sm:$0xff] 0.0
        %2077 = vst [vmem:[#allocation2 + $0x278] sm:$0xff] 0.0
        %2078 = vst [vmem:[#allocation2 + $0x298] sm:$0xff] 0.0
        %2079 = vst [vmem:[#allocation2 + $0x2b8] sm:$0xff] 0.0
        %v2080 = vlaneseq
        %v2081 = vshrl.u32 %v2080, 7
        %v2082 = vadd.s32 %v2081, 8
        %v2083 = vadd.s32 %v2081, 16
        %v2084 = vadd.s32 %v2081, 24
        %v2085 = vadd.s32 %v2081, 32
        %v2086 = vadd.s32 %v2081, 40
        %v2087 = vadd.s32 %v2081, 48
        %v2088 = vadd.s32 %v2081, 56
        %v2089 = vadd.s32 %v2081, 64
        %v2090 = vadd.s32 %v2081, 72
        %v2091 = vadd.s32 %v2081, 80
        %v2092 = vadd.s32 %v2081, 88
        %v2093 = vadd.s32 %v2081, 96
        %v2094 = vadd.s32 %v2081, 104
        %v2095 = vadd.s32 %v2081, 112
        %v2096 = vadd.s32 %v2081, 120
        %v2097 = vadd.s32 %v2081, 128
        %v2098 = vadd.s32 %v2081, 136
        %v2099 = vadd.s32 %v2081, 144
        %v2100 = vadd.s32 %v2081, 152
        %v2101 = vadd.s32 %v2081, 160
        %v2102 = vadd.s32 %v2081, 168
        %v2103 = vadd.s32 %v2081, 176
        %v2104 = vadd.s32 %v2081, 184
        %v2105 = vadd.s32 %v2081, 192
        %v2106 = vadd.s32 %v2081, 200
        %v2107 = vadd.s32 %v2081, 208
        %v2108 = vadd.s32 %v2081, 216
        %v2109 = vadd.s32 %v2081, 224
        %v2110 = vadd.s32 %v2081, 232
        %v2111 = vadd.s32 %v2081, 240
        %v2112 = vadd.s32 %v2081, 248
        %v2113 = vadd.s32 %v2081, 256
        %v2114 = vadd.s32 %v2081, 264
        %v2115 = vadd.s32 %v2081, 272
        %v2116 = vadd.s32 %v2081, 280
        %v2117 = vadd.s32 %v2081, 288
        %v2118 = vadd.s32 %v2081, 296
        %v2119 = vadd.s32 %v2081, 304
        %v2120 = vadd.s32 %v2081, 312
        %v2121 = vadd.s32 %v2081, 320
        %v2122 = vadd.s32 %v2081, 328
        %v2123 = vadd.s32 %v2081, 336
        %v2124 = vadd.s32 %v2081, 344
        %s2125 = ssub.s32 3, %s521
        %s2126 = smul.u32 %s2125, 16
        %s2127 = ssub.s32 19, %s521
        %s2128 = smul.u32 %s2127, 16
        %v2129 = vstv %s2126
        %vm2130 = vcmp.ge.s32.totalorder %v2081, %v2129
        %vm2131 = vcmp.ge.s32.totalorder %v2082, %v2129
        %vm2132 = vcmp.ge.s32.totalorder %v2083, %v2129
        %vm2133 = vcmp.ge.s32.totalorder %v2084, %v2129
        %vm2134 = vcmp.ge.s32.totalorder %v2085, %v2129
        %vm2135 = vcmp.ge.s32.totalorder %v2086, %v2129
        %vm2136 = vcmp.ge.s32.totalorder %v2087, %v2129
        %vm2137 = vcmp.ge.s32.totalorder %v2088, %v2129
        %vm2138 = vcmp.ge.s32.totalorder %v2089, %v2129
        %vm2139 = vcmp.ge.s32.totalorder %v2090, %v2129
        %vm2140 = vcmp.ge.s32.totalorder %v2091, %v2129
        %vm2141 = vcmp.ge.s32.totalorder %v2092, %v2129
        %vm2142 = vcmp.ge.s32.totalorder %v2093, %v2129
        %vm2143 = vcmp.ge.s32.totalorder %v2094, %v2129
        %vm2144 = vcmp.ge.s32.totalorder %v2095, %v2129
        %vm2145 = vcmp.ge.s32.totalorder %v2096, %v2129
        %vm2146 = vcmp.ge.s32.totalorder %v2097, %v2129
        %vm2147 = vcmp.ge.s32.totalorder %v2098, %v2129
        %vm2148 = vcmp.ge.s32.totalorder %v2099, %v2129
        %vm2149 = vcmp.ge.s32.totalorder %v2100, %v2129
        %vm2150 = vcmp.ge.s32.totalorder %v2101, %v2129
        %vm2151 = vcmp.ge.s32.totalorder %v2102, %v2129
        %vm2152 = vcmp.ge.s32.totalorder %v2103, %v2129
        %vm2153 = vcmp.ge.s32.totalorder %v2104, %v2129
        %vm2154 = vcmp.ge.s32.totalorder %v2105, %v2129
        %vm2155 = vcmp.ge.s32.totalorder %v2106, %v2129
        %vm2156 = vcmp.ge.s32.totalorder %v2107, %v2129
        %vm2157 = vcmp.ge.s32.totalorder %v2108, %v2129
        %vm2158 = vcmp.ge.s32.totalorder %v2109, %v2129
        %vm2159 = vcmp.ge.s32.totalorder %v2110, %v2129
        %vm2160 = vcmp.ge.s32.totalorder %v2111, %v2129
        %vm2161 = vcmp.ge.s32.totalorder %v2112, %v2129
        %vm2162 = vcmp.ge.s32.totalorder %v2113, %v2129
        %vm2163 = vcmp.ge.s32.totalorder %v2114, %v2129
        %vm2164 = vcmp.ge.s32.totalorder %v2115, %v2129
        %vm2165 = vcmp.ge.s32.totalorder %v2116, %v2129
        %vm2166 = vcmp.ge.s32.totalorder %v2117, %v2129
        %vm2167 = vcmp.ge.s32.totalorder %v2118, %v2129
        %vm2168 = vcmp.ge.s32.totalorder %v2119, %v2129
        %vm2169 = vcmp.ge.s32.totalorder %v2120, %v2129
        %vm2170 = vcmp.ge.s32.totalorder %v2121, %v2129
        %vm2171 = vcmp.ge.s32.totalorder %v2122, %v2129
        %vm2172 = vcmp.ge.s32.totalorder %v2123, %v2129
        %vm2173 = vcmp.ge.s32.totalorder %v2124, %v2129
        %v2174 = vstv %s2128
        %vm2175 = vcmp.lt.s32.totalorder %v2081, %v2174
        %vm2176 = vcmp.lt.s32.totalorder %v2082, %v2174
        %vm2177 = vcmp.lt.s32.totalorder %v2083, %v2174
        %vm2178 = vcmp.lt.s32.totalorder %v2084, %v2174
        %vm2179 = vcmp.lt.s32.totalorder %v2085, %v2174
        %vm2180 = vcmp.lt.s32.totalorder %v2086, %v2174
        %vm2181 = vcmp.lt.s32.totalorder %v2087, %v2174
        %vm2182 = vcmp.lt.s32.totalorder %v2088, %v2174
        %vm2183 = vcmp.lt.s32.totalorder %v2089, %v2174
        %vm2184 = vcmp.lt.s32.totalorder %v2090, %v2174
        %vm2185 = vcmp.lt.s32.totalorder %v2091, %v2174
        %vm2186 = vcmp.lt.s32.totalorder %v2092, %v2174
        %vm2187 = vcmp.lt.s32.totalorder %v2093, %v2174
        %vm2188 = vcmp.lt.s32.totalorder %v2094, %v2174
        %vm2189 = vcmp.lt.s32.totalorder %v2095, %v2174
        %vm2190 = vcmp.lt.s32.totalorder %v2096, %v2174
        %vm2191 = vcmp.lt.s32.totalorder %v2097, %v2174
        %vm2192 = vcmp.lt.s32.totalorder %v2098, %v2174
        %vm2193 = vcmp.lt.s32.totalorder %v2099, %v2174
        %vm2194 = vcmp.lt.s32.totalorder %v2100, %v2174
        %vm2195 = vcmp.lt.s32.totalorder %v2101, %v2174
        %vm2196 = vcmp.lt.s32.totalorder %v2102, %v2174
        %vm2197 = vcmp.lt.s32.totalorder %v2103, %v2174
        %vm2198 = vcmp.lt.s32.totalorder %v2104, %v2174
        %vm2199 = vcmp.lt.s32.totalorder %v2105, %v2174
        %vm2200 = vcmp.lt.s32.totalorder %v2106, %v2174
        %vm2201 = vcmp.lt.s32.totalorder %v2107, %v2174
        %vm2202 = vcmp.lt.s32.totalorder %v2108, %v2174
        %vm2203 = vcmp.lt.s32.totalorder %v2109, %v2174
        %vm2204 = vcmp.lt.s32.totalorder %v2110, %v2174
        %vm2205 = vcmp.lt.s32.totalorder %v2111, %v2174
        %vm2206 = vcmp.lt.s32.totalorder %v2112, %v2174
        %vm2207 = vcmp.lt.s32.totalorder %v2113, %v2174
        %vm2208 = vcmp.lt.s32.totalorder %v2114, %v2174
        %vm2209 = vcmp.lt.s32.totalorder %v2115, %v2174
        %vm2210 = vcmp.lt.s32.totalorder %v2116, %v2174
        %vm2211 = vcmp.lt.s32.totalorder %v2117, %v2174
        %vm2212 = vcmp.lt.s32.totalorder %v2118, %v2174
        %vm2213 = vcmp.lt.s32.totalorder %v2119, %v2174
        %vm2214 = vcmp.lt.s32.totalorder %v2120, %v2174
        %vm2215 = vcmp.lt.s32.totalorder %v2121, %v2174
        %vm2216 = vcmp.lt.s32.totalorder %v2122, %v2174
        %vm2217 = vcmp.lt.s32.totalorder %v2123, %v2174
        %vm2218 = vcmp.lt.s32.totalorder %v2124, %v2174
        %vm2219 = vmand %vm2130, %vm2175
        %vm2220 = vmand %vm2131, %vm2176
        %vm2221 = vmand %vm2132, %vm2177
        %vm2222 = vmand %vm2133, %vm2178
        %vm2223 = vmand %vm2134, %vm2179
        %vm2224 = vmand %vm2135, %vm2180
        %vm2225 = vmand %vm2136, %vm2181
        %vm2226 = vmand %vm2137, %vm2182
        %vm2227 = vmand %vm2138, %vm2183
        %vm2228 = vmand %vm2139, %vm2184
        %vm2229 = vmand %vm2140, %vm2185
        %vm2230 = vmand %vm2141, %vm2186
        %vm2231 = vmand %vm2142, %vm2187
        %vm2232 = vmand %vm2143, %vm2188
        %vm2233 = vmand %vm2144, %vm2189
        %vm2234 = vmand %vm2145, %vm2190
        %vm2235 = vmand %vm2146, %vm2191
        %vm2236 = vmand %vm2147, %vm2192
        %vm2237 = vmand %vm2148, %vm2193
        %vm2238 = vmand %vm2149, %vm2194
        %vm2239 = vmand %vm2150, %vm2195
        %vm2240 = vmand %vm2151, %vm2196
        %vm2241 = vmand %vm2152, %vm2197
        %vm2242 = vmand %vm2153, %vm2198
        %vm2243 = vmand %vm2154, %vm2199
        %vm2244 = vmand %vm2155, %vm2200
        %vm2245 = vmand %vm2156, %vm2201
        %vm2246 = vmand %vm2157, %vm2202
        %vm2247 = vmand %vm2158, %vm2203
        %vm2248 = vmand %vm2159, %vm2204
        %vm2249 = vmand %vm2160, %vm2205
        %vm2250 = vmand %vm2161, %vm2206
        %vm2251 = vmand %vm2162, %vm2207
        %vm2252 = vmand %vm2163, %vm2208
        %vm2253 = vmand %vm2164, %vm2209
        %vm2254 = vmand %vm2165, %vm2210
        %vm2255 = vmand %vm2166, %vm2211
        %vm2256 = vmand %vm2167, %vm2212
        %vm2257 = vmand %vm2168, %vm2213
        %vm2258 = vmand %vm2169, %vm2214
        %vm2259 = vmand %vm2170, %vm2215
        %vm2260 = vmand %vm2171, %vm2216
        %vm2261 = vmand %vm2172, %vm2217
        %vm2262 = vmand %vm2173, %vm2218
        %v2263 = vsel %vm2219, 1, 0
        %v2264 = vsel %vm2220, 1, 0
        %v2265 = vsel %vm2221, 1, 0
        %v2266 = vsel %vm2222, 1, 0
        %v2267 = vsel %vm2223, 1, 0
        %v2268 = vsel %vm2224, 1, 0
        %v2269 = vsel %vm2225, 1, 0
        %v2270 = vsel %vm2226, 1, 0
        %v2271 = vsel %vm2227, 1, 0
        %v2272 = vsel %vm2228, 1, 0
        %v2273 = vsel %vm2229, 1, 0
        %v2274 = vsel %vm2230, 1, 0
        %v2275 = vsel %vm2231, 1, 0
        %v2276 = vsel %vm2232, 1, 0
        %v2277 = vsel %vm2233, 1, 0
        %v2278 = vsel %vm2234, 1, 0
        %v2279 = vsel %vm2235, 1, 0
        %v2280 = vsel %vm2236, 1, 0
        %v2281 = vsel %vm2237, 1, 0
        %v2282 = vsel %vm2238, 1, 0
        %v2283 = vsel %vm2239, 1, 0
        %v2284 = vsel %vm2240, 1, 0
        %v2285 = vsel %vm2241, 1, 0
        %v2286 = vsel %vm2242, 1, 0
        %v2287 = vsel %vm2243, 1, 0
        %v2288 = vsel %vm2244, 1, 0
        %v2289 = vsel %vm2245, 1, 0
        %v2290 = vsel %vm2246, 1, 0
        %v2291 = vsel %vm2247, 1, 0
        %v2292 = vsel %vm2248, 1, 0
        %v2293 = vsel %vm2249, 1, 0
        %v2294 = vsel %vm2250, 1, 0
        %v2295 = vsel %vm2251, 1, 0
        %v2296 = vsel %vm2252, 1, 0
        %v2297 = vsel %vm2253, 1, 0
        %v2298 = vsel %vm2254, 1, 0
        %v2299 = vsel %vm2255, 1, 0
        %v2300 = vsel %vm2256, 1, 0
        %v2301 = vsel %vm2257, 1, 0
        %v2302 = vsel %vm2258, 1, 0
        %v2303 = vsel %vm2259, 1, 0
        %v2304 = vsel %vm2260, 1, 0
        %v2305 = vsel %vm2261, 1, 0
        %v2306 = vsel %vm2262, 1, 0
        %vm2307 = vcmp.eq.s32.totalorder %v2263, 1
        %vm2308 = vcmp.eq.s32.totalorder %v2264, 1
        %vm2309 = vcmp.eq.s32.totalorder %v2265, 1
        %vm2310 = vcmp.eq.s32.totalorder %v2266, 1
        %vm2311 = vcmp.eq.s32.totalorder %v2267, 1
        %vm2312 = vcmp.eq.s32.totalorder %v2268, 1
        %vm2313 = vcmp.eq.s32.totalorder %v2269, 1
        %vm2314 = vcmp.eq.s32.totalorder %v2270, 1
        %vm2315 = vcmp.eq.s32.totalorder %v2271, 1
        %vm2316 = vcmp.eq.s32.totalorder %v2272, 1
        %vm2317 = vcmp.eq.s32.totalorder %v2273, 1
        %vm2318 = vcmp.eq.s32.totalorder %v2274, 1
        %vm2319 = vcmp.eq.s32.totalorder %v2275, 1
        %vm2320 = vcmp.eq.s32.totalorder %v2276, 1
        %vm2321 = vcmp.eq.s32.totalorder %v2277, 1
        %vm2322 = vcmp.eq.s32.totalorder %v2278, 1
        %vm2323 = vcmp.eq.s32.totalorder %v2279, 1
        %vm2324 = vcmp.eq.s32.totalorder %v2280, 1
        %vm2325 = vcmp.eq.s32.totalorder %v2281, 1
        %vm2326 = vcmp.eq.s32.totalorder %v2282, 1
        %vm2327 = vcmp.eq.s32.totalorder %v2283, 1
        %vm2328 = vcmp.eq.s32.totalorder %v2284, 1
        %vm2329 = vcmp.eq.s32.totalorder %v2285, 1
        %vm2330 = vcmp.eq.s32.totalorder %v2286, 1
        %vm2331 = vcmp.eq.s32.totalorder %v2287, 1
        %vm2332 = vcmp.eq.s32.totalorder %v2288, 1
        %vm2333 = vcmp.eq.s32.totalorder %v2289, 1
        %vm2334 = vcmp.eq.s32.totalorder %v2290, 1
        %vm2335 = vcmp.eq.s32.totalorder %v2291, 1
        %vm2336 = vcmp.eq.s32.totalorder %v2292, 1
        %vm2337 = vcmp.eq.s32.totalorder %v2293, 1
        %vm2338 = vcmp.eq.s32.totalorder %v2294, 1
        %vm2339 = vcmp.eq.s32.totalorder %v2295, 1
        %vm2340 = vcmp.eq.s32.totalorder %v2296, 1
        %vm2341 = vcmp.eq.s32.totalorder %v2297, 1
        %vm2342 = vcmp.eq.s32.totalorder %v2298, 1
        %vm2343 = vcmp.eq.s32.totalorder %v2299, 1
        %vm2344 = vcmp.eq.s32.totalorder %v2300, 1
        %vm2345 = vcmp.eq.s32.totalorder %v2301, 1
        %vm2346 = vcmp.eq.s32.totalorder %v2302, 1
        %vm2347 = vcmp.eq.s32.totalorder %v2303, 1
        %vm2348 = vcmp.eq.s32.totalorder %v2304, 1
        %vm2349 = vcmp.eq.s32.totalorder %v2305, 1
        %vm2350 = vcmp.eq.s32.totalorder %v2306, 1
        %v2351 = vsel %vm2307, %v1331, 0.0
        %v2352 = vsel %vm2308, %v1334, 0.0
        %v2353 = vsel %vm2309, %v1339, 0.0
        %v2354 = vsel %vm2310, %v1342, 0.0
        %v2355 = vsel %vm2311, %v1347, 0.0
        %v2356 = vsel %vm2312, %v1350, 0.0
        %v2357 = vsel %vm2313, %v1355, 0.0
        %v2358 = vsel %vm2314, %v1358, 0.0
        %v2359 = vsel %vm2315, %v1363, 0.0
        %v2360 = vsel %vm2316, %v1366, 0.0
        %v2361 = vsel %vm2317, %v1371, 0.0
        %v2362 = vsel %vm2318, %v1374, 0.0
        %v2363 = vsel %vm2319, %v1379, 0.0
        %v2364 = vsel %vm2320, %v1382, 0.0
        %v2365 = vsel %vm2321, %v1387, 0.0
        %v2366 = vsel %vm2322, %v1390, 0.0
        %v2367 = vsel %vm2323, %v1395, 0.0
        %v2368 = vsel %vm2324, %v1398, 0.0
        %v2369 = vsel %vm2325, %v1403, 0.0
        %v2370 = vsel %vm2326, %v1406, 0.0
        %v2371 = vsel %vm2327, %v1411, 0.0
        %v2372 = vsel %vm2328, %v1414, 0.0
        %v2373 = vsel %vm2329, %v1419, 0.0
        %v2374 = vsel %vm2330, %v1422, 0.0
        %v2375 = vsel %vm2331, %v1427, 0.0
        %v2376 = vsel %vm2332, %v1430, 0.0
        %v2377 = vsel %vm2333, %v1435, 0.0
        %v2378 = vsel %vm2334, %v1438, 0.0
        %v2379 = vsel %vm2335, %v1443, 0.0
        %v2380 = vsel %vm2336, %v1446, 0.0
        %v2381 = vsel %vm2337, %v1451, 0.0
        %v2382 = vsel %vm2338, %v1454, 0.0
        %v2383 = vsel %vm2339, %v1459, 0.0
        %v2384 = vsel %vm2340, %v1462, 0.0
        %v2385 = vsel %vm2341, %v1467, 0.0
        %v2386 = vsel %vm2342, %v1470, 0.0
        %v2387 = vsel %vm2343, %v1475, 0.0
        %v2388 = vsel %vm2344, %v1478, 0.0
        %v2389 = vsel %vm2345, %v1483, 0.0
        %v2390 = vsel %vm2346, %v1486, 0.0
        %v2391 = vsel %vm2347, %v1491, 0.0
        %v2392 = vsel %vm2348, %v1494, 0.0
        %v2393 = vsel %vm2349, %v1499, 0.0
        %v2394 = vsel %vm2350, %v1502, 0.0
        %2395 = vst [vmem:[#allocation2 + $0x8] sm:$0xff] %v2351
        %2396 = vst [vmem:[#allocation2 + $0x10] sm:$0xff] %v2352
        %2397 = vst [vmem:[#allocation2 + $0x28] sm:$0xff] %v2353
        %2398 = vst [vmem:[#allocation2 + $0x30] sm:$0xff] %v2354
        %2399 = vst [vmem:[#allocation2 + $0x48] sm:$0xff] %v2355
        %2400 = vst [vmem:[#allocation2 + $0x50] sm:$0xff] %v2356
        %2401 = vst [vmem:[#allocation2 + $0x68] sm:$0xff] %v2357
        %2402 = vst [vmem:[#allocation2 + $0x70] sm:$0xff] %v2358
        %2403 = vst [vmem:[#allocation2 + $0x88] sm:$0xff] %v2359
        %2404 = vst [vmem:[#allocation2 + $0x90] sm:$0xff] %v2360
        %2405 = vst [vmem:[#allocation2 + $0xa8] sm:$0xff] %v2361
        %2406 = vst [vmem:[#allocation2 + $0xb0] sm:$0xff] %v2362
        %2407 = vst [vmem:[#allocation2 + $0xc8] sm:$0xff] %v2363
        %2408 = vst [vmem:[#allocation2 + $0xd0] sm:$0xff] %v2364
        %2409 = vst [vmem:[#allocation2 + $0xe8] sm:$0xff] %v2365
        %2410 = vst [vmem:[#allocation2 + $0xf0] sm:$0xff] %v2366
        %2411 = vst [vmem:[#allocation2 + $0x108] sm:$0xff] %v2367
        %2412 = vst [vmem:[#allocation2 + $0x110] sm:$0xff] %v2368
        %2413 = vst [vmem:[#allocation2 + $0x128] sm:$0xff] %v2369
        %2414 = vst [vmem:[#allocation2 + $0x130] sm:$0xff] %v2370
        %2415 = vst [vmem:[#allocation2 + $0x148] sm:$0xff] %v2371
        %2416 = vst [vmem:[#allocation2 + $0x150] sm:$0xff] %v2372
        %2417 = vst [vmem:[#allocation2 + $0x168] sm:$0xff] %v2373
        %2418 = vst [vmem:[#allocation2 + $0x170] sm:$0xff] %v2374
        %2419 = vst [vmem:[#allocation2 + $0x188] sm:$0xff] %v2375
        %2420 = vst [vmem:[#allocation2 + $0x190] sm:$0xff] %v2376
        %2421 = vst [vmem:[#allocation2 + $0x1a8] sm:$0xff] %v2377
        %2422 = vst [vmem:[#allocation2 + $0x1b0] sm:$0xff] %v2378
        %2423 = vst [vmem:[#allocation2 + $0x1c8] sm:$0xff] %v2379
        %2424 = vst [vmem:[#allocation2 + $0x1d0] sm:$0xff] %v2380
        %2425 = vst [vmem:[#allocation2 + $0x1e8] sm:$0xff] %v2381
        %2426 = vst [vmem:[#allocation2 + $0x1f0] sm:$0xff] %v2382
        %2427 = vst [vmem:[#allocation2 + $0x208] sm:$0xff] %v2383
        %2428 = vst [vmem:[#allocation2 + $0x210] sm:$0xff] %v2384
        %2429 = vst [vmem:[#allocation2 + $0x228] sm:$0xff] %v2385
        %2430 = vst [vmem:[#allocation2 + $0x230] sm:$0xff] %v2386
        %2431 = vst [vmem:[#allocation2 + $0x248] sm:$0xff] %v2387
        %2432 = vst [vmem:[#allocation2 + $0x250] sm:$0xff] %v2388
        %2433 = vst [vmem:[#allocation2 + $0x268] sm:$0xff] %v2389
        %2434 = vst [vmem:[#allocation2 + $0x270] sm:$0xff] %v2390
        %2435 = vst [vmem:[#allocation2 + $0x288] sm:$0xff] %v2391
        %2436 = vst [vmem:[#allocation2 + $0x290] sm:$0xff] %v2392
        %2437 = vst [vmem:[#allocation2 + $0x2a8] sm:$0xff] %v2393
        %2438 = vst [vmem:[#allocation2 + $0x2b0] sm:$0xff] %v2394
        %v2439 = vld [vmem:[#allocation10] sm:$0x7f]
        %v2440 = vld [vmem:[#allocation10 + $0x8] sm:$0x7f]
        %v2441 = vld [vmem:[#allocation10 + $0x10] sm:$0x7f]
        %v2442 = vld [vmem:[#allocation10 + $0x18] sm:$0x7f]
        %v2443 = vld [vmem:[#allocation10 + $0x20] sm:$0x7f]
        %v2444 = vld [vmem:[#allocation10 + $0x28] sm:$0x7f]
        %v2445 = vld [vmem:[#allocation10 + $0x30] sm:$0x7f]
        loop: start=0, step=1, limit=16
        $region93: #{tpu_custom_call.1} parent=67 // loop_pre_header
          _
        $region94: #{tpu_custom_call.1} parent=67 // loop_header
          %s2447 = sphi 0, %s2451
          %p2448 = scmp.ge.s32.totalorder %s2447, 16
        $region95: #{tpu_custom_call.1} parent=67 // loop_header_branch
          %2450 = sbr.rel (%p2448) target = $region99
        $region96: #{tpu_custom_call.1} parent=67 // loop_body
          %s2452 = smul.u32 %s2447, 32
          %s2453 = scalar_lea.vmem [#allocation2], %s2452
          %v2454 = vld [vmem:[%s2453] sm:$0xff]
          %v2455 = vld [vmem:[%s2453 + $0x8] sm:$0xff]
          %v2456 = vld [vmem:[%s2453 + $0x10] sm:$0xff]
          %v2457 = vld [vmem:[%s2453 + $0x18] sm:$0xff]
          %v2458 = vlaneseq
          %v2459 = vshrl.u32 %v2458, 7
          %v2460 = vsub.s32 0, %v2459
          %v2461 = vrot.slane %v2439, %v2460
          %v2462 = vmul.f32 %v2454, %v2461
          %v2463 = vmul.f32 %v2455, %v2461
          %v2464 = vmul.f32 %v2456, %v2461
          %v2465 = vadd.f32 %v2462, 0.0
          %v2466 = vadd.f32 %v2463, 0.0
          %v2467 = vadd.f32 %v2464, 0.0
          %v2468 = vlaneseq
          %v2469 = vshrl.u32 %v2468, 7
          %v2470 = vsub.s32 1, %v2469
          %v2471 = vrot.slane %v2439, %v2470
          %v2472 = vmul.f32 %v2454, %v2471
          %v2473 = vmul.f32 %v2455, %v2471
          %v2474 = vmul.f32 %v2456, %v2471
          %vm2478 = vcmask 1046528
          %v2479 = vrot.slane %v2472, 1
          %v2480 = vrot.slane %v2473, 1
          %v2481 = vsel %vm2478, %v2479, %v2480
          %v2482 = vrot.slane %v2474, 1
          %v2483 = vsel %vm2478, %v2480, %v2482
          %v2487 = vadd.f32 %v2465, %v2481
          %v2488 = vadd.f32 %v2466, %v2483
          %v2489 = vadd.f32 %v2467, %v2482
          %v2490 = vlaneseq
          %v2491 = vshrl.u32 %v2490, 7
          %v2492 = vsub.s32 2, %v2491
          %v2493 = vrot.slane %v2439, %v2492
          %v2494 = vmul.f32 %v2454, %v2493
          %v2495 = vmul.f32 %v2455, %v2493
          %v2496 = vmul.f32 %v2456, %v2493
          %vm2500 = vcmask 1045504
          %v2501 = vrot.slane %v2494, 2
          %v2502 = vrot.slane %v2495, 2
          %v2503 = vsel %vm2500, %v2501, %v2502
          %v2504 = vrot.slane %v2496, 2
          %v2505 = vsel %vm2500, %v2502, %v2504
          %v2509 = vadd.f32 %v2487, %v2503
          %v2510 = vadd.f32 %v2488, %v2505
          %v2511 = vadd.f32 %v2489, %v2504
          %v2512 = vlaneseq
          %v2513 = vshrl.u32 %v2512, 7
          %v2514 = vsub.s32 3, %v2513
          %v2515 = vrot.slane %v2439, %v2514
          %v2516 = vmul.f32 %v2455, %v2515
          %v2517 = vmul.f32 %v2456, %v2515
          %vm2520 = vcmask 1044480
          %v2521 = vrot.slane %v2516, 3
          %v2522 = vrot.slane %v2517, 3
          %v2523 = vsel %vm2520, %v2521, %v2522
          %v2527 = vadd.f32 %v2509, %v2521
          %v2528 = vadd.f32 %v2510, %v2523
          %v2529 = vadd.f32 %v2511, %v2522
          %v2530 = vlaneseq
          %v2531 = vshrl.u32 %v2530, 7
          %v2532 = vsub.s32 4, %v2531
          %v2533 = vrot.slane %v2439, %v2532
          %v2534 = vmul.f32 %v2455, %v2533
          %v2535 = vmul.f32 %v2456, %v2533
          %v2536 = vmul.f32 %v2457, %v2533
          %vm2540 = vcmask 1043456
          %v2541 = vrot.slane %v2534, 4
          %v2542 = vrot.slane %v2535, 4
          %v2543 = vsel %vm2540, %v2541, %v2542
          %v2544 = vrot.slane %v2536, 4
          %v2545 = vsel %vm2540, %v2542, %v2544
          %v2549 = vadd.f32 %v2527, %v2541
          %v2550 = vadd.f32 %v2528, %v2543
          %v2551 = vadd.f32 %v2529, %v2545
          %v2552 = vlaneseq
          %v2553 = vshrl.u32 %v2552, 7
          %v2554 = vsub.s32 5, %v2553
          %v2555 = vrot.slane %v2439, %v2554
          %v2556 = vmul.f32 %v2455, %v2555
          %v2557 = vmul.f32 %v2456, %v2555
          %v2558 = vmul.f32 %v2457, %v2555
          %vm2562 = vcmask 1042432
          %v2563 = vrot.slane %v2556, 5
          %v2564 = vrot.slane %v2557, 5
          %v2565 = vsel %vm2562, %v2563, %v2564
          %v2566 = vrot.slane %v2558, 5
          %v2567 = vsel %vm2562, %v2564, %v2566
          %v2571 = vadd.f32 %v2549, %v2563
          %v2572 = vadd.f32 %v2550, %v2565
          %v2573 = vadd.f32 %v2551, %v2567
          %v2574 = vlaneseq
          %v2575 = vshrl.u32 %v2574, 7
          %v2576 = vsub.s32 6, %v2575
          %v2577 = vrot.slane %v2439, %v2576
          %v2578 = vmul.f32 %v2455, %v2577
          %v2579 = vmul.f32 %v2456, %v2577
          %v2580 = vmul.f32 %v2457, %v2577
          %vm2584 = vcmask 1041408
          %v2585 = vrot.slane %v2578, 6
          %v2586 = vrot.slane %v2579, 6
          %v2587 = vsel %vm2584, %v2585, %v2586
          %v2588 = vrot.slane %v2580, 6
          %v2589 = vsel %vm2584, %v2586, %v2588
          %v2593 = vadd.f32 %v2571, %v2585
          %v2594 = vadd.f32 %v2572, %v2587
          %v2595 = vadd.f32 %v2573, %v2589
          %s2596 = sadd.s32 %s2447, 1
          %s2597 = smul.u32 %s2596, 32
          %s2598 = scalar_lea.vmem [#allocation2], %s2597
          %v2599 = vld [vmem:[%s2598] sm:$0xff]
          %v2600 = vld [vmem:[%s2598 + $0x8] sm:$0xff]
          %v2601 = vld [vmem:[%s2598 + $0x10] sm:$0xff]
          %v2602 = vld [vmem:[%s2598 + $0x18] sm:$0xff]
          %v2603 = vlaneseq
          %v2604 = vshrl.u32 %v2603, 7
          %v2605 = vsub.s32 0, %v2604
          %v2606 = vrot.slane %v2440, %v2605
          %v2607 = vmul.f32 %v2599, %v2606
          %v2608 = vmul.f32 %v2600, %v2606
          %v2609 = vmul.f32 %v2601, %v2606
          %v2610 = vadd.f32 %v2593, %v2607
          %v2611 = vadd.f32 %v2594, %v2608
          %v2612 = vadd.f32 %v2595, %v2609
          %v2613 = vlaneseq
          %v2614 = vshrl.u32 %v2613, 7
          %v2615 = vsub.s32 1, %v2614
          %v2616 = vrot.slane %v2440, %v2615
          %v2617 = vmul.f32 %v2599, %v2616
          %v2618 = vmul.f32 %v2600, %v2616
          %v2619 = vmul.f32 %v2601, %v2616
          %v2623 = vrot.slane %v2617, 1
          %v2624 = vrot.slane %v2618, 1
          %v2625 = vsel %vm2478, %v2623, %v2624
          %v2626 = vrot.slane %v2619, 1
          %v2627 = vsel %vm2478, %v2624, %v2626
          %v2631 = vadd.f32 %v2610, %v2625
          %v2632 = vadd.f32 %v2611, %v2627
          %v2633 = vadd.f32 %v2612, %v2626
          %v2634 = vlaneseq
          %v2635 = vshrl.u32 %v2634, 7
          %v2636 = vsub.s32 2, %v2635
          %v2637 = vrot.slane %v2440, %v2636
          %v2638 = vmul.f32 %v2599, %v2637
          %v2639 = vmul.f32 %v2600, %v2637
          %v2640 = vmul.f32 %v2601, %v2637
          %v2644 = vrot.slane %v2638, 2
          %v2645 = vrot.slane %v2639, 2
          %v2646 = vsel %vm2500, %v2644, %v2645
          %v2647 = vrot.slane %v2640, 2
          %v2648 = vsel %vm2500, %v2645, %v2647
          %v2652 = vadd.f32 %v2631, %v2646
          %v2653 = vadd.f32 %v2632, %v2648
          %v2654 = vadd.f32 %v2633, %v2647
          %v2655 = vlaneseq
          %v2656 = vshrl.u32 %v2655, 7
          %v2657 = vsub.s32 3, %v2656
          %v2658 = vrot.slane %v2440, %v2657
          %v2659 = vmul.f32 %v2600, %v2658
          %v2660 = vmul.f32 %v2601, %v2658
          %v2663 = vrot.slane %v2659, 3
          %v2664 = vrot.slane %v2660, 3
          %v2665 = vsel %vm2520, %v2663, %v2664
          %v2669 = vadd.f32 %v2652, %v2663
          %v2670 = vadd.f32 %v2653, %v2665
          %v2671 = vadd.f32 %v2654, %v2664
          %v2672 = vlaneseq
          %v2673 = vshrl.u32 %v2672, 7
          %v2674 = vsub.s32 4, %v2673
          %v2675 = vrot.slane %v2440, %v2674
          %v2676 = vmul.f32 %v2600, %v2675
          %v2677 = vmul.f32 %v2601, %v2675
          %v2678 = vmul.f32 %v2602, %v2675
          %v2682 = vrot.slane %v2676, 4
          %v2683 = vrot.slane %v2677, 4
          %v2684 = vsel %vm2540, %v2682, %v2683
          %v2685 = vrot.slane %v2678, 4
          %v2686 = vsel %vm2540, %v2683, %v2685
          %v2690 = vadd.f32 %v2669, %v2682
          %v2691 = vadd.f32 %v2670, %v2684
          %v2692 = vadd.f32 %v2671, %v2686
          %v2693 = vlaneseq
          %v2694 = vshrl.u32 %v2693, 7
          %v2695 = vsub.s32 5, %v2694
          %v2696 = vrot.slane %v2440, %v2695
          %v2697 = vmul.f32 %v2600, %v2696
          %v2698 = vmul.f32 %v2601, %v2696
          %v2699 = vmul.f32 %v2602, %v2696
          %v2703 = vrot.slane %v2697, 5
          %v2704 = vrot.slane %v2698, 5
          %v2705 = vsel %vm2562, %v2703, %v2704
          %v2706 = vrot.slane %v2699, 5
          %v2707 = vsel %vm2562, %v2704, %v2706
          %v2711 = vadd.f32 %v2690, %v2703
          %v2712 = vadd.f32 %v2691, %v2705
          %v2713 = vadd.f32 %v2692, %v2707
          %v2714 = vlaneseq
          %v2715 = vshrl.u32 %v2714, 7
          %v2716 = vsub.s32 6, %v2715
          %v2717 = vrot.slane %v2440, %v2716
          %v2718 = vmul.f32 %v2600, %v2717
          %v2719 = vmul.f32 %v2601, %v2717
          %v2720 = vmul.f32 %v2602, %v2717
          %v2724 = vrot.slane %v2718, 6
          %v2725 = vrot.slane %v2719, 6
          %v2726 = vsel %vm2584, %v2724, %v2725
          %v2727 = vrot.slane %v2720, 6
          %v2728 = vsel %vm2584, %v2725, %v2727
          %v2732 = vadd.f32 %v2711, %v2724
          %v2733 = vadd.f32 %v2712, %v2726
          %v2734 = vadd.f32 %v2713, %v2728
          %s2735 = sadd.s32 %s2447, 2
          %s2736 = smul.u32 %s2735, 32
          %s2737 = scalar_lea.vmem [#allocation2], %s2736
          %v2738 = vld [vmem:[%s2737] sm:$0xff]
          %v2739 = vld [vmem:[%s2737 + $0x8] sm:$0xff]
          %v2740 = vld [vmem:[%s2737 + $0x10] sm:$0xff]
          %v2741 = vld [vmem:[%s2737 + $0x18] sm:$0xff]
          %v2742 = vlaneseq
          %v2743 = vshrl.u32 %v2742, 7
          %v2744 = vsub.s32 0, %v2743
          %v2745 = vrot.slane %v2441, %v2744
          %v2746 = vmul.f32 %v2738, %v2745
          %v2747 = vmul.f32 %v2739, %v2745
          %v2748 = vmul.f32 %v2740, %v2745
          %v2749 = vadd.f32 %v2732, %v2746
          %v2750 = vadd.f32 %v2733, %v2747
          %v2751 = vadd.f32 %v2734, %v2748
          %v2752 = vlaneseq
          %v2753 = vshrl.u32 %v2752, 7
          %v2754 = vsub.s32 1, %v2753
          %v2755 = vrot.slane %v2441, %v2754
          %v2756 = vmul.f32 %v2738, %v2755
          %v2757 = vmul.f32 %v2739, %v2755
          %v2758 = vmul.f32 %v2740, %v2755
          %v2762 = vrot.slane %v2756, 1
          %v2763 = vrot.slane %v2757, 1
          %v2764 = vsel %vm2478, %v2762, %v2763
          %v2765 = vrot.slane %v2758, 1
          %v2766 = vsel %vm2478, %v2763, %v2765
          %v2770 = vadd.f32 %v2749, %v2764
          %v2771 = vadd.f32 %v2750, %v2766
          %v2772 = vadd.f32 %v2751, %v2765
          %v2773 = vlaneseq
          %v2774 = vshrl.u32 %v2773, 7
          %v2775 = vsub.s32 2, %v2774
          %v2776 = vrot.slane %v2441, %v2775
          %v2777 = vmul.f32 %v2738, %v2776
          %v2778 = vmul.f32 %v2739, %v2776
          %v2779 = vmul.f32 %v2740, %v2776
          %v2783 = vrot.slane %v2777, 2
          %v2784 = vrot.slane %v2778, 2
          %v2785 = vsel %vm2500, %v2783, %v2784
          %v2786 = vrot.slane %v2779, 2
          %v2787 = vsel %vm2500, %v2784, %v2786
          %v2791 = vadd.f32 %v2770, %v2785
          %v2792 = vadd.f32 %v2771, %v2787
          %v2793 = vadd.f32 %v2772, %v2786
          %v2794 = vlaneseq
          %v2795 = vshrl.u32 %v2794, 7
          %v2796 = vsub.s32 3, %v2795
          %v2797 = vrot.slane %v2441, %v2796
          %v2798 = vmul.f32 %v2739, %v2797
          %v2799 = vmul.f32 %v2740, %v2797
          %v2802 = vrot.slane %v2798, 3
          %v2803 = vrot.slane %v2799, 3
          %v2804 = vsel %vm2520, %v2802, %v2803
          %v2808 = vadd.f32 %v2791, %v2802
          %v2809 = vadd.f32 %v2792, %v2804
          %v2810 = vadd.f32 %v2793, %v2803
          %v2811 = vlaneseq
          %v2812 = vshrl.u32 %v2811, 7
          %v2813 = vsub.s32 4, %v2812
          %v2814 = vrot.slane %v2441, %v2813
          %v2815 = vmul.f32 %v2739, %v2814
          %v2816 = vmul.f32 %v2740, %v2814
          %v2817 = vmul.f32 %v2741, %v2814
          %v2821 = vrot.slane %v2815, 4
          %v2822 = vrot.slane %v2816, 4
          %v2823 = vsel %vm2540, %v2821, %v2822
          %v2824 = vrot.slane %v2817, 4
          %v2825 = vsel %vm2540, %v2822, %v2824
          %v2829 = vadd.f32 %v2808, %v2821
          %v2830 = vadd.f32 %v2809, %v2823
          %v2831 = vadd.f32 %v2810, %v2825
          %v2832 = vlaneseq
          %v2833 = vshrl.u32 %v2832, 7
          %v2834 = vsub.s32 5, %v2833
          %v2835 = vrot.slane %v2441, %v2834
          %v2836 = vmul.f32 %v2739, %v2835
          %v2837 = vmul.f32 %v2740, %v2835
          %v2838 = vmul.f32 %v2741, %v2835
          %v2842 = vrot.slane %v2836, 5
          %v2843 = vrot.slane %v2837, 5
          %v2844 = vsel %vm2562, %v2842, %v2843
          %v2845 = vrot.slane %v2838, 5
          %v2846 = vsel %vm2562, %v2843, %v2845
          %v2850 = vadd.f32 %v2829, %v2842
          %v2851 = vadd.f32 %v2830, %v2844
          %v2852 = vadd.f32 %v2831, %v2846
          %v2853 = vlaneseq
          %v2854 = vshrl.u32 %v2853, 7
          %v2855 = vsub.s32 6, %v2854
          %v2856 = vrot.slane %v2441, %v2855
          %v2857 = vmul.f32 %v2739, %v2856
          %v2858 = vmul.f32 %v2740, %v2856
          %v2859 = vmul.f32 %v2741, %v2856
          %v2863 = vrot.slane %v2857, 6
          %v2864 = vrot.slane %v2858, 6
          %v2865 = vsel %vm2584, %v2863, %v2864
          %v2866 = vrot.slane %v2859, 6
          %v2867 = vsel %vm2584, %v2864, %v2866
          %v2871 = vadd.f32 %v2850, %v2863
          %v2872 = vadd.f32 %v2851, %v2865
          %v2873 = vadd.f32 %v2852, %v2867
          %s2874 = sadd.s32 %s2447, 3
          %s2875 = smul.u32 %s2874, 32
          %s2876 = scalar_lea.vmem [#allocation2], %s2875
          %v2877 = vld [vmem:[%s2876] sm:$0xff]
          %v2878 = vld [vmem:[%s2876 + $0x8] sm:$0xff]
          %v2879 = vld [vmem:[%s2876 + $0x10] sm:$0xff]
          %v2880 = vld [vmem:[%s2876 + $0x18] sm:$0xff]
          %v2881 = vlaneseq
          %v2882 = vshrl.u32 %v2881, 7
          %v2883 = vsub.s32 0, %v2882
          %v2884 = vrot.slane %v2442, %v2883
          %v2885 = vmul.f32 %v2877, %v2884
          %v2886 = vmul.f32 %v2878, %v2884
          %v2887 = vmul.f32 %v2879, %v2884
          %v2888 = vadd.f32 %v2871, %v2885
          %v2889 = vadd.f32 %v2872, %v2886
          %v2890 = vadd.f32 %v2873, %v2887
          %v2891 = vlaneseq
          %v2892 = vshrl.u32 %v2891, 7
          %v2893 = vsub.s32 1, %v2892
          %v2894 = vrot.slane %v2442, %v2893
          %v2895 = vmul.f32 %v2877, %v2894
          %v2896 = vmul.f32 %v2878, %v2894
          %v2897 = vmul.f32 %v2879, %v2894
          %v2901 = vrot.slane %v2895, 1
          %v2902 = vrot.slane %v2896, 1
          %v2903 = vsel %vm2478, %v2901, %v2902
          %v2904 = vrot.slane %v2897, 1
          %v2905 = vsel %vm2478, %v2902, %v2904
          %v2909 = vadd.f32 %v2888, %v2903
          %v2910 = vadd.f32 %v2889, %v2905
          %v2911 = vadd.f32 %v2890, %v2904
          %v2912 = vlaneseq
          %v2913 = vshrl.u32 %v2912, 7
          %v2914 = vsub.s32 2, %v2913
          %v2915 = vrot.slane %v2442, %v2914
          %v2916 = vmul.f32 %v2877, %v2915
          %v2917 = vmul.f32 %v2878, %v2915
          %v2918 = vmul.f32 %v2879, %v2915
          %v2922 = vrot.slane %v2916, 2
          %v2923 = vrot.slane %v2917, 2
          %v2924 = vsel %vm2500, %v2922, %v2923
          %v2925 = vrot.slane %v2918, 2
          %v2926 = vsel %vm2500, %v2923, %v2925
          %v2930 = vadd.f32 %v2909, %v2924
          %v2931 = vadd.f32 %v2910, %v2926
          %v2932 = vadd.f32 %v2911, %v2925
          %v2933 = vlaneseq
          %v2934 = vshrl.u32 %v2933, 7
          %v2935 = vsub.s32 3, %v2934
          %v2936 = vrot.slane %v2442, %v2935
          %v2937 = vmul.f32 %v2878, %v2936
          %v2938 = vmul.f32 %v2879, %v2936
          %v2941 = vrot.slane %v2937, 3
          %v2942 = vrot.slane %v2938, 3
          %v2943 = vsel %vm2520, %v2941, %v2942
          %v2947 = vadd.f32 %v2930, %v2941
          %v2948 = vadd.f32 %v2931, %v2943
          %v2949 = vadd.f32 %v2932, %v2942
          %v2950 = vlaneseq
          %v2951 = vshrl.u32 %v2950, 7
          %v2952 = vsub.s32 4, %v2951
          %v2953 = vrot.slane %v2442, %v2952
          %v2954 = vmul.f32 %v2878, %v2953
          %v2955 = vmul.f32 %v2879, %v2953
          %v2956 = vmul.f32 %v2880, %v2953
          %v2960 = vrot.slane %v2954, 4
          %v2961 = vrot.slane %v2955, 4
          %v2962 = vsel %vm2540, %v2960, %v2961
          %v2963 = vrot.slane %v2956, 4
          %v2964 = vsel %vm2540, %v2961, %v2963
          %v2968 = vadd.f32 %v2947, %v2960
          %v2969 = vadd.f32 %v2948, %v2962
          %v2970 = vadd.f32 %v2949, %v2964
          %v2971 = vlaneseq
          %v2972 = vshrl.u32 %v2971, 7
          %v2973 = vsub.s32 5, %v2972
          %v2974 = vrot.slane %v2442, %v2973
          %v2975 = vmul.f32 %v2878, %v2974
          %v2976 = vmul.f32 %v2879, %v2974
          %v2977 = vmul.f32 %v2880, %v2974
          %v2981 = vrot.slane %v2975, 5
          %v2982 = vrot.slane %v2976, 5
          %v2983 = vsel %vm2562, %v2981, %v2982
          %v2984 = vrot.slane %v2977, 5
          %v2985 = vsel %vm2562, %v2982, %v2984
          %v2989 = vadd.f32 %v2968, %v2981
          %v2990 = vadd.f32 %v2969, %v2983
          %v2991 = vadd.f32 %v2970, %v2985
          %v2992 = vlaneseq
          %v2993 = vshrl.u32 %v2992, 7
          %v2994 = vsub.s32 6, %v2993
          %v2995 = vrot.slane %v2442, %v2994
          %v2996 = vmul.f32 %v2878, %v2995
          %v2997 = vmul.f32 %v2879, %v2995
          %v2998 = vmul.f32 %v2880, %v2995
          %v3002 = vrot.slane %v2996, 6
          %v3003 = vrot.slane %v2997, 6
          %v3004 = vsel %vm2584, %v3002, %v3003
          %v3005 = vrot.slane %v2998, 6
          %v3006 = vsel %vm2584, %v3003, %v3005
          %v3010 = vadd.f32 %v2989, %v3002
          %v3011 = vadd.f32 %v2990, %v3004
          %v3012 = vadd.f32 %v2991, %v3006
          %s3013 = sadd.s32 %s2447, 4
          %s3014 = smul.u32 %s3013, 32
          %s3015 = scalar_lea.vmem [#allocation2], %s3014
          %v3016 = vld [vmem:[%s3015] sm:$0xff]
          %v3017 = vld [vmem:[%s3015 + $0x8] sm:$0xff]
          %v3018 = vld [vmem:[%s3015 + $0x10] sm:$0xff]
          %v3019 = vld [vmem:[%s3015 + $0x18] sm:$0xff]
          %v3020 = vlaneseq
          %v3021 = vshrl.u32 %v3020, 7
          %v3022 = vsub.s32 0, %v3021
          %v3023 = vrot.slane %v2443, %v3022
          %v3024 = vmul.f32 %v3016, %v3023
          %v3025 = vmul.f32 %v3017, %v3023
          %v3026 = vmul.f32 %v3018, %v3023
          %v3027 = vadd.f32 %v3010, %v3024
          %v3028 = vadd.f32 %v3011, %v3025
          %v3029 = vadd.f32 %v3012, %v3026
          %v3030 = vlaneseq
          %v3031 = vshrl.u32 %v3030, 7
          %v3032 = vsub.s32 1, %v3031
          %v3033 = vrot.slane %v2443, %v3032
          %v3034 = vmul.f32 %v3016, %v3033
          %v3035 = vmul.f32 %v3017, %v3033
          %v3036 = vmul.f32 %v3018, %v3033
          %v3040 = vrot.slane %v3034, 1
          %v3041 = vrot.slane %v3035, 1
          %v3042 = vsel %vm2478, %v3040, %v3041
          %v3043 = vrot.slane %v3036, 1
          %v3044 = vsel %vm2478, %v3041, %v3043
          %v3048 = vadd.f32 %v3027, %v3042
          %v3049 = vadd.f32 %v3028, %v3044
          %v3050 = vadd.f32 %v3029, %v3043
          %v3051 = vlaneseq
          %v3052 = vshrl.u32 %v3051, 7
          %v3053 = vsub.s32 2, %v3052
          %v3054 = vrot.slane %v2443, %v3053
          %v3055 = vmul.f32 %v3016, %v3054
          %v3056 = vmul.f32 %v3017, %v3054
          %v3057 = vmul.f32 %v3018, %v3054
          %v3061 = vrot.slane %v3055, 2
          %v3062 = vrot.slane %v3056, 2
          %v3063 = vsel %vm2500, %v3061, %v3062
          %v3064 = vrot.slane %v3057, 2
          %v3065 = vsel %vm2500, %v3062, %v3064
          %v3069 = vadd.f32 %v3048, %v3063
          %v3070 = vadd.f32 %v3049, %v3065
          %v3071 = vadd.f32 %v3050, %v3064
          %v3072 = vlaneseq
          %v3073 = vshrl.u32 %v3072, 7
          %v3074 = vsub.s32 3, %v3073
          %v3075 = vrot.slane %v2443, %v3074
          %v3076 = vmul.f32 %v3017, %v3075
          %v3077 = vmul.f32 %v3018, %v3075
          %v3080 = vrot.slane %v3076, 3
          %v3081 = vrot.slane %v3077, 3
          %v3082 = vsel %vm2520, %v3080, %v3081
          %v3086 = vadd.f32 %v3069, %v3080
          %v3087 = vadd.f32 %v3070, %v3082
          %v3088 = vadd.f32 %v3071, %v3081
          %v3089 = vlaneseq
          %v3090 = vshrl.u32 %v3089, 7
          %v3091 = vsub.s32 4, %v3090
          %v3092 = vrot.slane %v2443, %v3091
          %v3093 = vmul.f32 %v3017, %v3092
          %v3094 = vmul.f32 %v3018, %v3092
          %v3095 = vmul.f32 %v3019, %v3092
          %v3099 = vrot.slane %v3093, 4
          %v3100 = vrot.slane %v3094, 4
          %v3101 = vsel %vm2540, %v3099, %v3100
          %v3102 = vrot.slane %v3095, 4
          %v3103 = vsel %vm2540, %v3100, %v3102
          %v3107 = vadd.f32 %v3086, %v3099
          %v3108 = vadd.f32 %v3087, %v3101
          %v3109 = vadd.f32 %v3088, %v3103
          %v3110 = vlaneseq
          %v3111 = vshrl.u32 %v3110, 7
          %v3112 = vsub.s32 5, %v3111
          %v3113 = vrot.slane %v2443, %v3112
          %v3114 = vmul.f32 %v3017, %v3113
          %v3115 = vmul.f32 %v3018, %v3113
          %v3116 = vmul.f32 %v3019, %v3113
          %v3120 = vrot.slane %v3114, 5
          %v3121 = vrot.slane %v3115, 5
          %v3122 = vsel %vm2562, %v3120, %v3121
          %v3123 = vrot.slane %v3116, 5
          %v3124 = vsel %vm2562, %v3121, %v3123
          %v3128 = vadd.f32 %v3107, %v3120
          %v3129 = vadd.f32 %v3108, %v3122
          %v3130 = vadd.f32 %v3109, %v3124
          %v3131 = vlaneseq
          %v3132 = vshrl.u32 %v3131, 7
          %v3133 = vsub.s32 6, %v3132
          %v3134 = vrot.slane %v2443, %v3133
          %v3135 = vmul.f32 %v3017, %v3134
          %v3136 = vmul.f32 %v3018, %v3134
          %v3137 = vmul.f32 %v3019, %v3134
          %v3141 = vrot.slane %v3135, 6
          %v3142 = vrot.slane %v3136, 6
          %v3143 = vsel %vm2584, %v3141, %v3142
          %v3144 = vrot.slane %v3137, 6
          %v3145 = vsel %vm2584, %v3142, %v3144
          %v3149 = vadd.f32 %v3128, %v3141
          %v3150 = vadd.f32 %v3129, %v3143
          %v3151 = vadd.f32 %v3130, %v3145
          %s3152 = sadd.s32 %s2447, 5
          %s3153 = smul.u32 %s3152, 32
          %s3154 = scalar_lea.vmem [#allocation2], %s3153
          %v3155 = vld [vmem:[%s3154] sm:$0xff]
          %v3156 = vld [vmem:[%s3154 + $0x8] sm:$0xff]
          %v3157 = vld [vmem:[%s3154 + $0x10] sm:$0xff]
          %v3158 = vld [vmem:[%s3154 + $0x18] sm:$0xff]
          %v3159 = vlaneseq
          %v3160 = vshrl.u32 %v3159, 7
          %v3161 = vsub.s32 0, %v3160
          %v3162 = vrot.slane %v2444, %v3161
          %v3163 = vmul.f32 %v3155, %v3162
          %v3164 = vmul.f32 %v3156, %v3162
          %v3165 = vmul.f32 %v3157, %v3162
          %v3166 = vadd.f32 %v3149, %v3163
          %v3167 = vadd.f32 %v3150, %v3164
          %v3168 = vadd.f32 %v3151, %v3165
          %v3169 = vlaneseq
          %v3170 = vshrl.u32 %v3169, 7
          %v3171 = vsub.s32 1, %v3170
          %v3172 = vrot.slane %v2444, %v3171
          %v3173 = vmul.f32 %v3155, %v3172
          %v3174 = vmul.f32 %v3156, %v3172
          %v3175 = vmul.f32 %v3157, %v3172
          %v3179 = vrot.slane %v3173, 1
          %v3180 = vrot.slane %v3174, 1
          %v3181 = vsel %vm2478, %v3179, %v3180
          %v3182 = vrot.slane %v3175, 1
          %v3183 = vsel %vm2478, %v3180, %v3182
          %v3187 = vadd.f32 %v3166, %v3181
          %v3188 = vadd.f32 %v3167, %v3183
          %v3189 = vadd.f32 %v3168, %v3182
          %v3190 = vlaneseq
          %v3191 = vshrl.u32 %v3190, 7
          %v3192 = vsub.s32 2, %v3191
          %v3193 = vrot.slane %v2444, %v3192
          %v3194 = vmul.f32 %v3155, %v3193
          %v3195 = vmul.f32 %v3156, %v3193
          %v3196 = vmul.f32 %v3157, %v3193
          %v3200 = vrot.slane %v3194, 2
          %v3201 = vrot.slane %v3195, 2
          %v3202 = vsel %vm2500, %v3200, %v3201
          %v3203 = vrot.slane %v3196, 2
          %v3204 = vsel %vm2500, %v3201, %v3203
          %v3208 = vadd.f32 %v3187, %v3202
          %v3209 = vadd.f32 %v3188, %v3204
          %v3210 = vadd.f32 %v3189, %v3203
          %v3211 = vlaneseq
          %v3212 = vshrl.u32 %v3211, 7
          %v3213 = vsub.s32 3, %v3212
          %v3214 = vrot.slane %v2444, %v3213
          %v3215 = vmul.f32 %v3156, %v3214
          %v3216 = vmul.f32 %v3157, %v3214
          %v3219 = vrot.slane %v3215, 3
          %v3220 = vrot.slane %v3216, 3
          %v3221 = vsel %vm2520, %v3219, %v3220
          %v3225 = vadd.f32 %v3208, %v3219
          %v3226 = vadd.f32 %v3209, %v3221
          %v3227 = vadd.f32 %v3210, %v3220
          %v3228 = vlaneseq
          %v3229 = vshrl.u32 %v3228, 7
          %v3230 = vsub.s32 4, %v3229
          %v3231 = vrot.slane %v2444, %v3230
          %v3232 = vmul.f32 %v3156, %v3231
          %v3233 = vmul.f32 %v3157, %v3231
          %v3234 = vmul.f32 %v3158, %v3231
          %v3238 = vrot.slane %v3232, 4
          %v3239 = vrot.slane %v3233, 4
          %v3240 = vsel %vm2540, %v3238, %v3239
          %v3241 = vrot.slane %v3234, 4
          %v3242 = vsel %vm2540, %v3239, %v3241
          %v3246 = vadd.f32 %v3225, %v3238
          %v3247 = vadd.f32 %v3226, %v3240
          %v3248 = vadd.f32 %v3227, %v3242
          %v3249 = vlaneseq
          %v3250 = vshrl.u32 %v3249, 7
          %v3251 = vsub.s32 5, %v3250
          %v3252 = vrot.slane %v2444, %v3251
          %v3253 = vmul.f32 %v3156, %v3252
          %v3254 = vmul.f32 %v3157, %v3252
          %v3255 = vmul.f32 %v3158, %v3252
          %v3259 = vrot.slane %v3253, 5
          %v3260 = vrot.slane %v3254, 5
          %v3261 = vsel %vm2562, %v3259, %v3260
          %v3262 = vrot.slane %v3255, 5
          %v3263 = vsel %vm2562, %v3260, %v3262
          %v3267 = vadd.f32 %v3246, %v3259
          %v3268 = vadd.f32 %v3247, %v3261
          %v3269 = vadd.f32 %v3248, %v3263
          %v3270 = vlaneseq
          %v3271 = vshrl.u32 %v3270, 7
          %v3272 = vsub.s32 6, %v3271
          %v3273 = vrot.slane %v2444, %v3272
          %v3274 = vmul.f32 %v3156, %v3273
          %v3275 = vmul.f32 %v3157, %v3273
          %v3276 = vmul.f32 %v3158, %v3273
          %v3280 = vrot.slane %v3274, 6
          %v3281 = vrot.slane %v3275, 6
          %v3282 = vsel %vm2584, %v3280, %v3281
          %v3283 = vrot.slane %v3276, 6
          %v3284 = vsel %vm2584, %v3281, %v3283
          %v3288 = vadd.f32 %v3267, %v3280
          %v3289 = vadd.f32 %v3268, %v3282
          %v3290 = vadd.f32 %v3269, %v3284
          %s3291 = sadd.s32 %s2447, 6
          %s3292 = smul.u32 %s3291, 32
          %s3293 = scalar_lea.vmem [#allocation2], %s3292
          %v3294 = vld [vmem:[%s3293] sm:$0xff]
          %v3295 = vld [vmem:[%s3293 + $0x8] sm:$0xff]
          %v3296 = vld [vmem:[%s3293 + $0x10] sm:$0xff]
          %v3297 = vld [vmem:[%s3293 + $0x18] sm:$0xff]
          %v3298 = vlaneseq
          %v3299 = vshrl.u32 %v3298, 7
          %v3300 = vsub.s32 0, %v3299
          %v3301 = vrot.slane %v2445, %v3300
          %v3302 = vmul.f32 %v3294, %v3301
          %v3303 = vmul.f32 %v3295, %v3301
          %v3304 = vmul.f32 %v3296, %v3301
          %v3305 = vadd.f32 %v3288, %v3302
          %v3306 = vadd.f32 %v3289, %v3303
          %v3307 = vadd.f32 %v3290, %v3304
          %v3308 = vlaneseq
          %v3309 = vshrl.u32 %v3308, 7
          %v3310 = vsub.s32 1, %v3309
          %v3311 = vrot.slane %v2445, %v3310
          %v3312 = vmul.f32 %v3294, %v3311
          %v3313 = vmul.f32 %v3295, %v3311
          %v3314 = vmul.f32 %v3296, %v3311
          %v3318 = vrot.slane %v3312, 1
          %v3319 = vrot.slane %v3313, 1
          %v3320 = vsel %vm2478, %v3318, %v3319
          %v3321 = vrot.slane %v3314, 1
          %v3322 = vsel %vm2478, %v3319, %v3321
          %v3326 = vadd.f32 %v3305, %v3320
          %v3327 = vadd.f32 %v3306, %v3322
          %v3328 = vadd.f32 %v3307, %v3321
          %v3329 = vlaneseq
          %v3330 = vshrl.u32 %v3329, 7
          %v3331 = vsub.s32 2, %v3330
          %v3332 = vrot.slane %v2445, %v3331
          %v3333 = vmul.f32 %v3294, %v3332
          %v3334 = vmul.f32 %v3295, %v3332
          %v3335 = vmul.f32 %v3296, %v3332
          %v3339 = vrot.slane %v3333, 2
          %v3340 = vrot.slane %v3334, 2
          %v3341 = vsel %vm2500, %v3339, %v3340
          %v3342 = vrot.slane %v3335, 2
          %v3343 = vsel %vm2500, %v3340, %v3342
          %v3347 = vadd.f32 %v3326, %v3341
          %v3348 = vadd.f32 %v3327, %v3343
          %v3349 = vadd.f32 %v3328, %v3342
          %v3350 = vlaneseq
          %v3351 = vshrl.u32 %v3350, 7
          %v3352 = vsub.s32 3, %v3351
          %v3353 = vrot.slane %v2445, %v3352
          %v3354 = vmul.f32 %v3295, %v3353
          %v3355 = vmul.f32 %v3296, %v3353
          %v3358 = vrot.slane %v3354, 3
          %v3359 = vrot.slane %v3355, 3
          %v3360 = vsel %vm2520, %v3358, %v3359
          %v3364 = vadd.f32 %v3347, %v3358
          %v3365 = vadd.f32 %v3348, %v3360
          %v3366 = vadd.f32 %v3349, %v3359
          %v3367 = vlaneseq
          %v3368 = vshrl.u32 %v3367, 7
          %v3369 = vsub.s32 4, %v3368
          %v3370 = vrot.slane %v2445, %v3369
          %v3371 = vmul.f32 %v3295, %v3370
          %v3372 = vmul.f32 %v3296, %v3370
          %v3373 = vmul.f32 %v3297, %v3370
          %v3377 = vrot.slane %v3371, 4
          %v3378 = vrot.slane %v3372, 4
          %v3379 = vsel %vm2540, %v3377, %v3378
          %v3380 = vrot.slane %v3373, 4
          %v3381 = vsel %vm2540, %v3378, %v3380
          %v3385 = vadd.f32 %v3364, %v3377
          %v3386 = vadd.f32 %v3365, %v3379
          %v3387 = vadd.f32 %v3366, %v3381
          %v3388 = vlaneseq
          %v3389 = vshrl.u32 %v3388, 7
          %v3390 = vsub.s32 5, %v3389
          %v3391 = vrot.slane %v2445, %v3390
          %v3392 = vmul.f32 %v3295, %v3391
          %v3393 = vmul.f32 %v3296, %v3391
          %v3394 = vmul.f32 %v3297, %v3391
          %v3398 = vrot.slane %v3392, 5
          %v3399 = vrot.slane %v3393, 5
          %v3400 = vsel %vm2562, %v3398, %v3399
          %v3401 = vrot.slane %v3394, 5
          %v3402 = vsel %vm2562, %v3399, %v3401
          %v3406 = vadd.f32 %v3385, %v3398
          %v3407 = vadd.f32 %v3386, %v3400
          %v3408 = vadd.f32 %v3387, %v3402
          %v3409 = vlaneseq
          %v3410 = vshrl.u32 %v3409, 7
          %v3411 = vsub.s32 6, %v3410
          %v3412 = vrot.slane %v2445, %v3411
          %v3413 = vmul.f32 %v3295, %v3412
          %v3414 = vmul.f32 %v3296, %v3412
          %v3415 = vmul.f32 %v3297, %v3412
          %v3419 = vrot.slane %v3413, 6
          %v3420 = vrot.slane %v3414, 6
          %v3421 = vsel %vm2584, %v3419, %v3420
          %v3422 = vrot.slane %v3415, 6
          %v3423 = vsel %vm2584, %v3420, %v3422
          %v3427 = vadd.f32 %v3406, %v3419
          %v3428 = vadd.f32 %v3407, %v3421
          %v3429 = vadd.f32 %v3408, %v3423
          %s3430 = smul.u32 %s2447, 16
          %s3431 = scalar_lea.vmem [#allocation3], %s3430
          %3432 = vst [vmem:[%s3431 - $0x5] sm:$0xe0] %v3427
          %3433 = vst [vmem:[%s3431 + $0x3] sm:$0xff] %v3428
          %3434 = vst [vmem:[%s3431 + $0xb] sm:$0x1f] %v3429
        $region97: #{tpu_custom_call.1} parent=67 // loop_footer
          %s2451 = sadd.s32 1, %s2447
        $region98: #{tpu_custom_call.1} parent=67 // loop_footer_branch
          %2446 = sbr.rel target = $region94
        $region99: #{tpu_custom_call.1} parent=67 // loop_exit
          _
        %v3435 = vld [vmem:[#allocation3] sm:$0xff]
        %v3436 = vld [vmem:[#allocation3 + $0x8] sm:$0xff]
        %v3437 = vld [vmem:[#allocation3 + $0x10] sm:$0xff]
        %v3438 = vld [vmem:[#allocation3 + $0x18] sm:$0xff]
        %v3439 = vld [vmem:[#allocation3 + $0x20] sm:$0xff]
        %v3440 = vld [vmem:[#allocation3 + $0x28] sm:$0xff]
        %v3441 = vld [vmem:[#allocation3 + $0x30] sm:$0xff]
        %v3442 = vld [vmem:[#allocation3 + $0x38] sm:$0xff]
        %v3443 = vld [vmem:[#allocation3 + $0x40] sm:$0xff]
        %v3444 = vld [vmem:[#allocation3 + $0x48] sm:$0xff]
        %v3445 = vld [vmem:[#allocation3 + $0x50] sm:$0xff]
        %v3446 = vld [vmem:[#allocation3 + $0x58] sm:$0xff]
        %v3447 = vld [vmem:[#allocation3 + $0x60] sm:$0xff]
        %v3448 = vld [vmem:[#allocation3 + $0x68] sm:$0xff]
        %v3449 = vld [vmem:[#allocation3 + $0x70] sm:$0xff]
        %v3450 = vld [vmem:[#allocation3 + $0x78] sm:$0xff]
        %v3451 = vld [vmem:[#allocation3 + $0x80] sm:$0xff]
        %v3452 = vld [vmem:[#allocation3 + $0x88] sm:$0xff]
        %v3453 = vld [vmem:[#allocation3 + $0x90] sm:$0xff]
        %v3454 = vld [vmem:[#allocation3 + $0x98] sm:$0xff]
        %v3455 = vld [vmem:[#allocation3 + $0xa0] sm:$0xff]
        %v3456 = vld [vmem:[#allocation3 + $0xa8] sm:$0xff]
        %v3457 = vld [vmem:[#allocation3 + $0xb0] sm:$0xff]
        %v3458 = vld [vmem:[#allocation3 + $0xb8] sm:$0xff]
        %v3459 = vld [vmem:[#allocation3 + $0xc0] sm:$0xff]
        %v3460 = vld [vmem:[#allocation3 + $0xc8] sm:$0xff]
        %v3461 = vld [vmem:[#allocation3 + $0xd0] sm:$0xff]
        %v3462 = vld [vmem:[#allocation3 + $0xd8] sm:$0xff]
        %v3463 = vld [vmem:[#allocation3 + $0xe0] sm:$0xff]
        %v3464 = vld [vmem:[#allocation3 + $0xe8] sm:$0xff]
        %v3465 = vld [vmem:[#allocation3 + $0xf0] sm:$0xff]
        %v3466 = vld [vmem:[#allocation3 + $0xf8] sm:$0xff]
        %v3467 = vld [vmem:[%s8] sm:$0x1]
        %v3469 = vlaneseq
        %v3470 = vshrl.u32 %v3469, 7
        %v3471 = vsub.s32 0, %v3470
        %v3472 = vrot.slane %v3467, %v3471
        %v3474 = vadd.f32 %v3435, %v3472
        %v3475 = vadd.f32 %v3436, %v3472
        %v3476 = vadd.f32 %v3437, %v3472
        %v3477 = vadd.f32 %v3438, %v3472
        %v3478 = vadd.f32 %v3439, %v3472
        %v3479 = vadd.f32 %v3440, %v3472
        %v3480 = vadd.f32 %v3441, %v3472
        %v3481 = vadd.f32 %v3442, %v3472
        %v3482 = vadd.f32 %v3443, %v3472
        %v3483 = vadd.f32 %v3444, %v3472
        %v3484 = vadd.f32 %v3445, %v3472
        %v3485 = vadd.f32 %v3446, %v3472
        %v3486 = vadd.f32 %v3447, %v3472
        %v3487 = vadd.f32 %v3448, %v3472
        %v3488 = vadd.f32 %v3449, %v3472
        %v3489 = vadd.f32 %v3450, %v3472
        %v3490 = vadd.f32 %v3451, %v3472
        %v3491 = vadd.f32 %v3452, %v3472
        %v3492 = vadd.f32 %v3453, %v3472
        %v3493 = vadd.f32 %v3454, %v3472
        %v3494 = vadd.f32 %v3455, %v3472
        %v3495 = vadd.f32 %v3456, %v3472
        %v3496 = vadd.f32 %v3457, %v3472
        %v3497 = vadd.f32 %v3458, %v3472
        %v3498 = vadd.f32 %v3459, %v3472
        %v3499 = vadd.f32 %v3460, %v3472
        %v3500 = vadd.f32 %v3461, %v3472
        %v3501 = vadd.f32 %v3462, %v3472
        %v3502 = vadd.f32 %v3463, %v3472
        %v3503 = vadd.f32 %v3464, %v3472
        %v3504 = vadd.f32 %v3465, %v3472
        %v3505 = vadd.f32 %v3466, %v3472
        %v3506 = vmul.f32 %v1717, 0.5
        %v3507 = vmul.f32 %v1721, 0.5
        %v3508 = vmul.f32 %v1727, 0.5
        %v3509 = vmul.f32 %v1731, 0.5
        %v3510 = vmul.f32 %v1737, 0.5
        %v3511 = vmul.f32 %v1741, 0.5
        %v3512 = vmul.f32 %v1747, 0.5
        %v3513 = vmul.f32 %v1751, 0.5
        %v3514 = vmul.f32 %v1757, 0.5
        %v3515 = vmul.f32 %v1761, 0.5
        %v3516 = vmul.f32 %v1767, 0.5
        %v3517 = vmul.f32 %v1771, 0.5
        %v3518 = vmul.f32 %v1777, 0.5
        %v3519 = vmul.f32 %v1781, 0.5
        %v3520 = vmul.f32 %v1787, 0.5
        %v3521 = vmul.f32 %v1791, 0.5
        %v3522 = vmul.f32 %v1797, 0.5
        %v3523 = vmul.f32 %v1801, 0.5
        %v3524 = vmul.f32 %v1807, 0.5
        %v3525 = vmul.f32 %v1811, 0.5
        %v3526 = vmul.f32 %v1817, 0.5
        %v3527 = vmul.f32 %v1821, 0.5
        %v3528 = vmul.f32 %v1827, 0.5
        %v3529 = vmul.f32 %v1831, 0.5
        %v3530 = vmul.f32 %v1837, 0.5
        %v3531 = vmul.f32 %v1841, 0.5
        %v3532 = vmul.f32 %v1847, 0.5
        %v3533 = vmul.f32 %v1851, 0.5
        %v3534 = vmul.f32 %v1857, 0.5
        %v3535 = vmul.f32 %v1861, 0.5
        %v3536 = vmul.f32 %v1867, 0.5
        %v3537 = vmul.f32 %v1871, 0.5
        %v3538 = vmul.f32 %v1717, 0.044715
        %v3539 = vmul.f32 %v1721, 0.044715
        %v3540 = vmul.f32 %v1727, 0.044715
        %v3541 = vmul.f32 %v1731, 0.044715
        %v3542 = vmul.f32 %v1737, 0.044715
        %v3543 = vmul.f32 %v1741, 0.044715
        %v3544 = vmul.f32 %v1747, 0.044715
        %v3545 = vmul.f32 %v1751, 0.044715
        %v3546 = vmul.f32 %v1757, 0.044715
        %v3547 = vmul.f32 %v1761, 0.044715
        %v3548 = vmul.f32 %v1767, 0.044715
        %v3549 = vmul.f32 %v1771, 0.044715
        %v3550 = vmul.f32 %v1777, 0.044715
        %v3551 = vmul.f32 %v1781, 0.044715
        %v3552 = vmul.f32 %v1787, 0.044715
        %v3553 = vmul.f32 %v1791, 0.044715
        %v3554 = vmul.f32 %v1797, 0.044715
        %v3555 = vmul.f32 %v1801, 0.044715
        %v3556 = vmul.f32 %v1807, 0.044715
        %v3557 = vmul.f32 %v1811, 0.044715
        %v3558 = vmul.f32 %v1817, 0.044715
        %v3559 = vmul.f32 %v1821, 0.044715
        %v3560 = vmul.f32 %v1827, 0.044715
        %v3561 = vmul.f32 %v1831, 0.044715
        %v3562 = vmul.f32 %v1837, 0.044715
        %v3563 = vmul.f32 %v1841, 0.044715
        %v3564 = vmul.f32 %v1847, 0.044715
        %v3565 = vmul.f32 %v1851, 0.044715
        %v3566 = vmul.f32 %v1857, 0.044715
        %v3567 = vmul.f32 %v1861, 0.044715
        %v3568 = vmul.f32 %v1867, 0.044715
        %v3569 = vmul.f32 %v1871, 0.044715
        %v3570 = vmul.f32 %v3538, %v1717
        %v3571 = vmul.f32 %v3539, %v1721
        %v3572 = vmul.f32 %v3540, %v1727
        %v3573 = vmul.f32 %v3541, %v1731
        %v3574 = vmul.f32 %v3542, %v1737
        %v3575 = vmul.f32 %v3543, %v1741
        %v3576 = vmul.f32 %v3544, %v1747
        %v3577 = vmul.f32 %v3545, %v1751
        %v3578 = vmul.f32 %v3546, %v1757
        %v3579 = vmul.f32 %v3547, %v1761
        %v3580 = vmul.f32 %v3548, %v1767
        %v3581 = vmul.f32 %v3549, %v1771
        %v3582 = vmul.f32 %v3550, %v1777
        %v3583 = vmul.f32 %v3551, %v1781
        %v3584 = vmul.f32 %v3552, %v1787
        %v3585 = vmul.f32 %v3553, %v1791
        %v3586 = vmul.f32 %v3554, %v1797
        %v3587 = vmul.f32 %v3555, %v1801
        %v3588 = vmul.f32 %v3556, %v1807
        %v3589 = vmul.f32 %v3557, %v1811
        %v3590 = vmul.f32 %v3558, %v1817
        %v3591 = vmul.f32 %v3559, %v1821
        %v3592 = vmul.f32 %v3560, %v1827
        %v3593 = vmul.f32 %v3561, %v1831
        %v3594 = vmul.f32 %v3562, %v1837
        %v3595 = vmul.f32 %v3563, %v1841
        %v3596 = vmul.f32 %v3564, %v1847
        %v3597 = vmul.f32 %v3565, %v1851
        %v3598 = vmul.f32 %v3566, %v1857
        %v3599 = vmul.f32 %v3567, %v1861
        %v3600 = vmul.f32 %v3568, %v1867
        %v3601 = vmul.f32 %v3569, %v1871
        %v3602 = vmul.f32 %v3570, %v1717
        %v3603 = vmul.f32 %v3571, %v1721
        %v3604 = vmul.f32 %v3572, %v1727
        %v3605 = vmul.f32 %v3573, %v1731
        %v3606 = vmul.f32 %v3574, %v1737
        %v3607 = vmul.f32 %v3575, %v1741
        %v3608 = vmul.f32 %v3576, %v1747
        %v3609 = vmul.f32 %v3577, %v1751
        %v3610 = vmul.f32 %v3578, %v1757
        %v3611 = vmul.f32 %v3579, %v1761
        %v3612 = vmul.f32 %v3580, %v1767
        %v3613 = vmul.f32 %v3581, %v1771
        %v3614 = vmul.f32 %v3582, %v1777
        %v3615 = vmul.f32 %v3583, %v1781
        %v3616 = vmul.f32 %v3584, %v1787
        %v3617 = vmul.f32 %v3585, %v1791
        %v3618 = vmul.f32 %v3586, %v1797
        %v3619 = vmul.f32 %v3587, %v1801
        %v3620 = vmul.f32 %v3588, %v1807
        %v3621 = vmul.f32 %v3589, %v1811
        %v3622 = vmul.f32 %v3590, %v1817
        %v3623 = vmul.f32 %v3591, %v1821
        %v3624 = vmul.f32 %v3592, %v1827
        %v3625 = vmul.f32 %v3593, %v1831
        %v3626 = vmul.f32 %v3594, %v1837
        %v3627 = vmul.f32 %v3595, %v1841
        %v3628 = vmul.f32 %v3596, %v1847
        %v3629 = vmul.f32 %v3597, %v1851
        %v3630 = vmul.f32 %v3598, %v1857
        %v3631 = vmul.f32 %v3599, %v1861
        %v3632 = vmul.f32 %v3600, %v1867
        %v3633 = vmul.f32 %v3601, %v1871
        %v3634 = vadd.f32 %v1717, %v3602
        %v3635 = vadd.f32 %v1721, %v3603
        %v3636 = vadd.f32 %v1727, %v3604
        %v3637 = vadd.f32 %v1731, %v3605
        %v3638 = vadd.f32 %v1737, %v3606
        %v3639 = vadd.f32 %v1741, %v3607
        %v3640 = vadd.f32 %v1747, %v3608
        %v3641 = vadd.f32 %v1751, %v3609
        %v3642 = vadd.f32 %v1757, %v3610
        %v3643 = vadd.f32 %v1761, %v3611
        %v3644 = vadd.f32 %v1767, %v3612
        %v3645 = vadd.f32 %v1771, %v3613
        %v3646 = vadd.f32 %v1777, %v3614
        %v3647 = vadd.f32 %v1781, %v3615
        %v3648 = vadd.f32 %v1787, %v3616
        %v3649 = vadd.f32 %v1791, %v3617
        %v3650 = vadd.f32 %v1797, %v3618
        %v3651 = vadd.f32 %v1801, %v3619
        %v3652 = vadd.f32 %v1807, %v3620
        %v3653 = vadd.f32 %v1811, %v3621
        %v3654 = vadd.f32 %v1817, %v3622
        %v3655 = vadd.f32 %v1821, %v3623
        %v3656 = vadd.f32 %v1827, %v3624
        %v3657 = vadd.f32 %v1831, %v3625
        %v3658 = vadd.f32 %v1837, %v3626
        %v3659 = vadd.f32 %v1841, %v3627
        %v3660 = vadd.f32 %v1847, %v3628
        %v3661 = vadd.f32 %v1851, %v3629
        %v3662 = vadd.f32 %v1857, %v3630
        %v3663 = vadd.f32 %v1861, %v3631
        %v3664 = vadd.f32 %v1867, %v3632
        %v3665 = vadd.f32 %v1871, %v3633
        %v3666 = vmul.f32 %v3634, 0.7978846
        %v3667 = vmul.f32 %v3635, 0.7978846
        %v3668 = vmul.f32 %v3636, 0.7978846
        %v3669 = vmul.f32 %v3637, 0.7978846
        %v3670 = vmul.f32 %v3638, 0.7978846
        %v3671 = vmul.f32 %v3639, 0.7978846
        %v3672 = vmul.f32 %v3640, 0.7978846
        %v3673 = vmul.f32 %v3641, 0.7978846
        %v3674 = vmul.f32 %v3642, 0.7978846
        %v3675 = vmul.f32 %v3643, 0.7978846
        %v3676 = vmul.f32 %v3644, 0.7978846
        %v3677 = vmul.f32 %v3645, 0.7978846
        %v3678 = vmul.f32 %v3646, 0.7978846
        %v3679 = vmul.f32 %v3647, 0.7978846
        %v3680 = vmul.f32 %v3648, 0.7978846
        %v3681 = vmul.f32 %v3649, 0.7978846
        %v3682 = vmul.f32 %v3650, 0.7978846
        %v3683 = vmul.f32 %v3651, 0.7978846
        %v3684 = vmul.f32 %v3652, 0.7978846
        %v3685 = vmul.f32 %v3653, 0.7978846
        %v3686 = vmul.f32 %v3654, 0.7978846
        %v3687 = vmul.f32 %v3655, 0.7978846
        %v3688 = vmul.f32 %v3656, 0.7978846
        %v3689 = vmul.f32 %v3657, 0.7978846
        %v3690 = vmul.f32 %v3658, 0.7978846
        %v3691 = vmul.f32 %v3659, 0.7978846
        %v3692 = vmul.f32 %v3660, 0.7978846
        %v3693 = vmul.f32 %v3661, 0.7978846
        %v3694 = vmul.f32 %v3662, 0.7978846
        %v3695 = vmul.f32 %v3663, 0.7978846
        %v3696 = vmul.f32 %v3664, 0.7978846
        %v3697 = vmul.f32 %v3665, 0.7978846
        %v3698 = vtanh.pop %v3666
        %v3699 = vtanh.pop %v3667
        %v3700 = vtanh.pop %v3668
        %v3701 = vtanh.pop %v3669
        %v3702 = vtanh.pop %v3670
        %v3703 = vtanh.pop %v3671
        %v3704 = vtanh.pop %v3672
        %v3705 = vtanh.pop %v3673
        %v3706 = vtanh.pop %v3674
        %v3707 = vtanh.pop %v3675
        %v3708 = vtanh.pop %v3676
        %v3709 = vtanh.pop %v3677
        %v3710 = vtanh.pop %v3678
        %v3711 = vtanh.pop %v3679
        %v3712 = vtanh.pop %v3680
        %v3713 = vtanh.pop %v3681
        %v3714 = vtanh.pop %v3682
        %v3715 = vtanh.pop %v3683
        %v3716 = vtanh.pop %v3684
        %v3717 = vtanh.pop %v3685
        %v3718 = vtanh.pop %v3686
        %v3719 = vtanh.pop %v3687
        %v3720 = vtanh.pop %v3688
        %v3721 = vtanh.pop %v3689
        %v3722 = vtanh.pop %v3690
        %v3723 = vtanh.pop %v3691
        %v3724 = vtanh.pop %v3692
        %v3725 = vtanh.pop %v3693
        %v3726 = vtanh.pop %v3694
        %v3727 = vtanh.pop %v3695
        %v3728 = vtanh.pop %v3696
        %v3729 = vtanh.pop %v3697
        %v3730 = vadd.f32 %v3698, 1.0
        %v3731 = vadd.f32 %v3699, 1.0
        %v3732 = vadd.f32 %v3700, 1.0
        %v3733 = vadd.f32 %v3701, 1.0
        %v3734 = vadd.f32 %v3702, 1.0
        %v3735 = vadd.f32 %v3703, 1.0
        %v3736 = vadd.f32 %v3704, 1.0
        %v3737 = vadd.f32 %v3705, 1.0
        %v3738 = vadd.f32 %v3706, 1.0
        %v3739 = vadd.f32 %v3707, 1.0
        %v3740 = vadd.f32 %v3708, 1.0
        %v3741 = vadd.f32 %v3709, 1.0
        %v3742 = vadd.f32 %v3710, 1.0
        %v3743 = vadd.f32 %v3711, 1.0
        %v3744 = vadd.f32 %v3712, 1.0
        %v3745 = vadd.f32 %v3713, 1.0
        %v3746 = vadd.f32 %v3714, 1.0
        %v3747 = vadd.f32 %v3715, 1.0
        %v3748 = vadd.f32 %v3716, 1.0
        %v3749 = vadd.f32 %v3717, 1.0
        %v3750 = vadd.f32 %v3718, 1.0
        %v3751 = vadd.f32 %v3719, 1.0
        %v3752 = vadd.f32 %v3720, 1.0
        %v3753 = vadd.f32 %v3721, 1.0
        %v3754 = vadd.f32 %v3722, 1.0
        %v3755 = vadd.f32 %v3723, 1.0
        %v3756 = vadd.f32 %v3724, 1.0
        %v3757 = vadd.f32 %v3725, 1.0
        %v3758 = vadd.f32 %v3726, 1.0
        %v3759 = vadd.f32 %v3727, 1.0
        %v3760 = vadd.f32 %v3728, 1.0
        %v3761 = vadd.f32 %v3729, 1.0
        %v3762 = vmul.f32 %v3506, %v3730
        %v3763 = vmul.f32 %v3507, %v3731
        %v3764 = vmul.f32 %v3508, %v3732
        %v3765 = vmul.f32 %v3509, %v3733
        %v3766 = vmul.f32 %v3510, %v3734
        %v3767 = vmul.f32 %v3511, %v3735
        %v3768 = vmul.f32 %v3512, %v3736
        %v3769 = vmul.f32 %v3513, %v3737
        %v3770 = vmul.f32 %v3514, %v3738
        %v3771 = vmul.f32 %v3515, %v3739
        %v3772 = vmul.f32 %v3516, %v3740
        %v3773 = vmul.f32 %v3517, %v3741
        %v3774 = vmul.f32 %v3518, %v3742
        %v3775 = vmul.f32 %v3519, %v3743
        %v3776 = vmul.f32 %v3520, %v3744
        %v3777 = vmul.f32 %v3521, %v3745
        %v3778 = vmul.f32 %v3522, %v3746
        %v3779 = vmul.f32 %v3523, %v3747
        %v3780 = vmul.f32 %v3524, %v3748
        %v3781 = vmul.f32 %v3525, %v3749
        %v3782 = vmul.f32 %v3526, %v3750
        %v3783 = vmul.f32 %v3527, %v3751
        %v3784 = vmul.f32 %v3528, %v3752
        %v3785 = vmul.f32 %v3529, %v3753
        %v3786 = vmul.f32 %v3530, %v3754
        %v3787 = vmul.f32 %v3531, %v3755
        %v3788 = vmul.f32 %v3532, %v3756
        %v3789 = vmul.f32 %v3533, %v3757
        %v3790 = vmul.f32 %v3534, %v3758
        %v3791 = vmul.f32 %v3535, %v3759
        %v3792 = vmul.f32 %v3536, %v3760
        %v3793 = vmul.f32 %v3537, %v3761
        %v3794 = vmul.f32 %v3762, %v1910
        %v3795 = vmul.f32 %v3763, %v1913
        %v3796 = vmul.f32 %v3764, %v1918
        %v3797 = vmul.f32 %v3765, %v1921
        %v3798 = vmul.f32 %v3766, %v1926
        %v3799 = vmul.f32 %v3767, %v1929
        %v3800 = vmul.f32 %v3768, %v1934
        %v3801 = vmul.f32 %v3769, %v1937
        %v3802 = vmul.f32 %v3770, %v1942
        %v3803 = vmul.f32 %v3771, %v1945
        %v3804 = vmul.f32 %v3772, %v1950
        %v3805 = vmul.f32 %v3773, %v1953
        %v3806 = vmul.f32 %v3774, %v1958
        %v3807 = vmul.f32 %v3775, %v1961
        %v3808 = vmul.f32 %v3776, %v1966
        %v3809 = vmul.f32 %v3777, %v1969
        %v3810 = vmul.f32 %v3778, %v1974
        %v3811 = vmul.f32 %v3779, %v1977
        %v3812 = vmul.f32 %v3780, %v1982
        %v3813 = vmul.f32 %v3781, %v1985
        %v3814 = vmul.f32 %v3782, %v1990
        %v3815 = vmul.f32 %v3783, %v1993
        %v3816 = vmul.f32 %v3784, %v1998
        %v3817 = vmul.f32 %v3785, %v2001
        %v3818 = vmul.f32 %v3786, %v2006
        %v3819 = vmul.f32 %v3787, %v2009
        %v3820 = vmul.f32 %v3788, %v2014
        %v3821 = vmul.f32 %v3789, %v2017
        %v3822 = vmul.f32 %v3790, %v2022
        %v3823 = vmul.f32 %v3791, %v2025
        %v3824 = vmul.f32 %v3792, %v2030
        %v3825 = vmul.f32 %v3793, %v2033
        %v3826 = vmul.f32 %v1719, 0.5
        %v3827 = vmul.f32 %v1723, 0.5
        %v3828 = vmul.f32 %v1729, 0.5
        %v3829 = vmul.f32 %v1733, 0.5
        %v3830 = vmul.f32 %v1739, 0.5
        %v3831 = vmul.f32 %v1743, 0.5
        %v3832 = vmul.f32 %v1749, 0.5
        %v3833 = vmul.f32 %v1753, 0.5
        %v3834 = vmul.f32 %v1759, 0.5
        %v3835 = vmul.f32 %v1763, 0.5
        %v3836 = vmul.f32 %v1769, 0.5
        %v3837 = vmul.f32 %v1773, 0.5
        %v3838 = vmul.f32 %v1779, 0.5
        %v3839 = vmul.f32 %v1783, 0.5
        %v3840 = vmul.f32 %v1789, 0.5
        %v3841 = vmul.f32 %v1793, 0.5
        %v3842 = vmul.f32 %v1799, 0.5
        %v3843 = vmul.f32 %v1803, 0.5
        %v3844 = vmul.f32 %v1809, 0.5
        %v3845 = vmul.f32 %v1813, 0.5
        %v3846 = vmul.f32 %v1819, 0.5
        %v3847 = vmul.f32 %v1823, 0.5
        %v3848 = vmul.f32 %v1829, 0.5
        %v3849 = vmul.f32 %v1833, 0.5
        %v3850 = vmul.f32 %v1839, 0.5
        %v3851 = vmul.f32 %v1843, 0.5
        %v3852 = vmul.f32 %v1849, 0.5
        %v3853 = vmul.f32 %v1853, 0.5
        %v3854 = vmul.f32 %v1859, 0.5
        %v3855 = vmul.f32 %v1863, 0.5
        %v3856 = vmul.f32 %v1869, 0.5
        %v3857 = vmul.f32 %v1873, 0.5
        %v3858 = vmul.f32 %v1719, 0.044715
        %v3859 = vmul.f32 %v1723, 0.044715
        %v3860 = vmul.f32 %v1729, 0.044715
        %v3861 = vmul.f32 %v1733, 0.044715
        %v3862 = vmul.f32 %v1739, 0.044715
        %v3863 = vmul.f32 %v1743, 0.044715
        %v3864 = vmul.f32 %v1749, 0.044715
        %v3865 = vmul.f32 %v1753, 0.044715
        %v3866 = vmul.f32 %v1759, 0.044715
        %v3867 = vmul.f32 %v1763, 0.044715
        %v3868 = vmul.f32 %v1769, 0.044715
        %v3869 = vmul.f32 %v1773, 0.044715
        %v3870 = vmul.f32 %v1779, 0.044715
        %v3871 = vmul.f32 %v1783, 0.044715
        %v3872 = vmul.f32 %v1789, 0.044715
        %v3873 = vmul.f32 %v1793, 0.044715
        %v3874 = vmul.f32 %v1799, 0.044715
        %v3875 = vmul.f32 %v1803, 0.044715
        %v3876 = vmul.f32 %v1809, 0.044715
        %v3877 = vmul.f32 %v1813, 0.044715
        %v3878 = vmul.f32 %v1819, 0.044715
        %v3879 = vmul.f32 %v1823, 0.044715
        %v3880 = vmul.f32 %v1829, 0.044715
        %v3881 = vmul.f32 %v1833, 0.044715
        %v3882 = vmul.f32 %v1839, 0.044715
        %v3883 = vmul.f32 %v1843, 0.044715
        %v3884 = vmul.f32 %v1849, 0.044715
        %v3885 = vmul.f32 %v1853, 0.044715
        %v3886 = vmul.f32 %v1859, 0.044715
        %v3887 = vmul.f32 %v1863, 0.044715
        %v3888 = vmul.f32 %v1869, 0.044715
        %v3889 = vmul.f32 %v1873, 0.044715
        %v3890 = vmul.f32 %v3858, %v1719
        %v3891 = vmul.f32 %v3859, %v1723
        %v3892 = vmul.f32 %v3860, %v1729
        %v3893 = vmul.f32 %v3861, %v1733
        %v3894 = vmul.f32 %v3862, %v1739
        %v3895 = vmul.f32 %v3863, %v1743
        %v3896 = vmul.f32 %v3864, %v1749
        %v3897 = vmul.f32 %v3865, %v1753
        %v3898 = vmul.f32 %v3866, %v1759
        %v3899 = vmul.f32 %v3867, %v1763
        %v3900 = vmul.f32 %v3868, %v1769
        %v3901 = vmul.f32 %v3869, %v1773
        %v3902 = vmul.f32 %v3870, %v1779
        %v3903 = vmul.f32 %v3871, %v1783
        %v3904 = vmul.f32 %v3872, %v1789
        %v3905 = vmul.f32 %v3873, %v1793
        %v3906 = vmul.f32 %v3874, %v1799
        %v3907 = vmul.f32 %v3875, %v1803
        %v3908 = vmul.f32 %v3876, %v1809
        %v3909 = vmul.f32 %v3877, %v1813
        %v3910 = vmul.f32 %v3878, %v1819
        %v3911 = vmul.f32 %v3879, %v1823
        %v3912 = vmul.f32 %v3880, %v1829
        %v3913 = vmul.f32 %v3881, %v1833
        %v3914 = vmul.f32 %v3882, %v1839
        %v3915 = vmul.f32 %v3883, %v1843
        %v3916 = vmul.f32 %v3884, %v1849
        %v3917 = vmul.f32 %v3885, %v1853
        %v3918 = vmul.f32 %v3886, %v1859
        %v3919 = vmul.f32 %v3887, %v1863
        %v3920 = vmul.f32 %v3888, %v1869
        %v3921 = vmul.f32 %v3889, %v1873
        %v3922 = vmul.f32 %v3890, %v1719
        %v3923 = vmul.f32 %v3891, %v1723
        %v3924 = vmul.f32 %v3892, %v1729
        %v3925 = vmul.f32 %v3893, %v1733
        %v3926 = vmul.f32 %v3894, %v1739
        %v3927 = vmul.f32 %v3895, %v1743
        %v3928 = vmul.f32 %v3896, %v1749
        %v3929 = vmul.f32 %v3897, %v1753
        %v3930 = vmul.f32 %v3898, %v1759
        %v3931 = vmul.f32 %v3899, %v1763
        %v3932 = vmul.f32 %v3900, %v1769
        %v3933 = vmul.f32 %v3901, %v1773
        %v3934 = vmul.f32 %v3902, %v1779
        %v3935 = vmul.f32 %v3903, %v1783
        %v3936 = vmul.f32 %v3904, %v1789
        %v3937 = vmul.f32 %v3905, %v1793
        %v3938 = vmul.f32 %v3906, %v1799
        %v3939 = vmul.f32 %v3907, %v1803
        %v3940 = vmul.f32 %v3908, %v1809
        %v3941 = vmul.f32 %v3909, %v1813
        %v3942 = vmul.f32 %v3910, %v1819
        %v3943 = vmul.f32 %v3911, %v1823
        %v3944 = vmul.f32 %v3912, %v1829
        %v3945 = vmul.f32 %v3913, %v1833
        %v3946 = vmul.f32 %v3914, %v1839
        %v3947 = vmul.f32 %v3915, %v1843
        %v3948 = vmul.f32 %v3916, %v1849
        %v3949 = vmul.f32 %v3917, %v1853
        %v3950 = vmul.f32 %v3918, %v1859
        %v3951 = vmul.f32 %v3919, %v1863
        %v3952 = vmul.f32 %v3920, %v1869
        %v3953 = vmul.f32 %v3921, %v1873
        %v3954 = vadd.f32 %v1719, %v3922
        %v3955 = vadd.f32 %v1723, %v3923
        %v3956 = vadd.f32 %v1729, %v3924
        %v3957 = vadd.f32 %v1733, %v3925
        %v3958 = vadd.f32 %v1739, %v3926
        %v3959 = vadd.f32 %v1743, %v3927
        %v3960 = vadd.f32 %v1749, %v3928
        %v3961 = vadd.f32 %v1753, %v3929
        %v3962 = vadd.f32 %v1759, %v3930
        %v3963 = vadd.f32 %v1763, %v3931
        %v3964 = vadd.f32 %v1769, %v3932
        %v3965 = vadd.f32 %v1773, %v3933
        %v3966 = vadd.f32 %v1779, %v3934
        %v3967 = vadd.f32 %v1783, %v3935
        %v3968 = vadd.f32 %v1789, %v3936
        %v3969 = vadd.f32 %v1793, %v3937
        %v3970 = vadd.f32 %v1799, %v3938
        %v3971 = vadd.f32 %v1803, %v3939
        %v3972 = vadd.f32 %v1809, %v3940
        %v3973 = vadd.f32 %v1813, %v3941
        %v3974 = vadd.f32 %v1819, %v3942
        %v3975 = vadd.f32 %v1823, %v3943
        %v3976 = vadd.f32 %v1829, %v3944
        %v3977 = vadd.f32 %v1833, %v3945
        %v3978 = vadd.f32 %v1839, %v3946
        %v3979 = vadd.f32 %v1843, %v3947
        %v3980 = vadd.f32 %v1849, %v3948
        %v3981 = vadd.f32 %v1853, %v3949
        %v3982 = vadd.f32 %v1859, %v3950
        %v3983 = vadd.f32 %v1863, %v3951
        %v3984 = vadd.f32 %v1869, %v3952
        %v3985 = vadd.f32 %v1873, %v3953
        %v3986 = vmul.f32 %v3954, 0.7978846
        %v3987 = vmul.f32 %v3955, 0.7978846
        %v3988 = vmul.f32 %v3956, 0.7978846
        %v3989 = vmul.f32 %v3957, 0.7978846
        %v3990 = vmul.f32 %v3958, 0.7978846
        %v3991 = vmul.f32 %v3959, 0.7978846
        %v3992 = vmul.f32 %v3960, 0.7978846
        %v3993 = vmul.f32 %v3961, 0.7978846
        %v3994 = vmul.f32 %v3962, 0.7978846
        %v3995 = vmul.f32 %v3963, 0.7978846
        %v3996 = vmul.f32 %v3964, 0.7978846
        %v3997 = vmul.f32 %v3965, 0.7978846
        %v3998 = vmul.f32 %v3966, 0.7978846
        %v3999 = vmul.f32 %v3967, 0.7978846
        %v4000 = vmul.f32 %v3968, 0.7978846
        %v4001 = vmul.f32 %v3969, 0.7978846
        %v4002 = vmul.f32 %v3970, 0.7978846
        %v4003 = vmul.f32 %v3971, 0.7978846
        %v4004 = vmul.f32 %v3972, 0.7978846
        %v4005 = vmul.f32 %v3973, 0.7978846
        %v4006 = vmul.f32 %v3974, 0.7978846
        %v4007 = vmul.f32 %v3975, 0.7978846
        %v4008 = vmul.f32 %v3976, 0.7978846
        %v4009 = vmul.f32 %v3977, 0.7978846
        %v4010 = vmul.f32 %v3978, 0.7978846
        %v4011 = vmul.f32 %v3979, 0.7978846
        %v4012 = vmul.f32 %v3980, 0.7978846
        %v4013 = vmul.f32 %v3981, 0.7978846
        %v4014 = vmul.f32 %v3982, 0.7978846
        %v4015 = vmul.f32 %v3983, 0.7978846
        %v4016 = vmul.f32 %v3984, 0.7978846
        %v4017 = vmul.f32 %v3985, 0.7978846
        %v4018 = vtanh.pop %v3986
        %v4019 = vtanh.pop %v3987
        %v4020 = vtanh.pop %v3988
        %v4021 = vtanh.pop %v3989
        %v4022 = vtanh.pop %v3990
        %v4023 = vtanh.pop %v3991
        %v4024 = vtanh.pop %v3992
        %v4025 = vtanh.pop %v3993
        %v4026 = vtanh.pop %v3994
        %v4027 = vtanh.pop %v3995
        %v4028 = vtanh.pop %v3996
        %v4029 = vtanh.pop %v3997
        %v4030 = vtanh.pop %v3998
        %v4031 = vtanh.pop %v3999
        %v4032 = vtanh.pop %v4000
        %v4033 = vtanh.pop %v4001
        %v4034 = vtanh.pop %v4002
        %v4035 = vtanh.pop %v4003
        %v4036 = vtanh.pop %v4004
        %v4037 = vtanh.pop %v4005
        %v4038 = vtanh.pop %v4006
        %v4039 = vtanh.pop %v4007
        %v4040 = vtanh.pop %v4008
        %v4041 = vtanh.pop %v4009
        %v4042 = vtanh.pop %v4010
        %v4043 = vtanh.pop %v4011
        %v4044 = vtanh.pop %v4012
        %v4045 = vtanh.pop %v4013
        %v4046 = vtanh.pop %v4014
        %v4047 = vtanh.pop %v4015
        %v4048 = vtanh.pop %v4016
        %v4049 = vtanh.pop %v4017
        %v4050 = vadd.f32 %v4018, 1.0
        %v4051 = vadd.f32 %v4019, 1.0
        %v4052 = vadd.f32 %v4020, 1.0
        %v4053 = vadd.f32 %v4021, 1.0
        %v4054 = vadd.f32 %v4022, 1.0
        %v4055 = vadd.f32 %v4023, 1.0
        %v4056 = vadd.f32 %v4024, 1.0
        %v4057 = vadd.f32 %v4025, 1.0
        %v4058 = vadd.f32 %v4026, 1.0
        %v4059 = vadd.f32 %v4027, 1.0
        %v4060 = vadd.f32 %v4028, 1.0
        %v4061 = vadd.f32 %v4029, 1.0
        %v4062 = vadd.f32 %v4030, 1.0
        %v4063 = vadd.f32 %v4031, 1.0
        %v4064 = vadd.f32 %v4032, 1.0
        %v4065 = vadd.f32 %v4033, 1.0
        %v4066 = vadd.f32 %v4034, 1.0
        %v4067 = vadd.f32 %v4035, 1.0
        %v4068 = vadd.f32 %v4036, 1.0
        %v4069 = vadd.f32 %v4037, 1.0
        %v4070 = vadd.f32 %v4038, 1.0
        %v4071 = vadd.f32 %v4039, 1.0
        %v4072 = vadd.f32 %v4040, 1.0
        %v4073 = vadd.f32 %v4041, 1.0
        %v4074 = vadd.f32 %v4042, 1.0
        %v4075 = vadd.f32 %v4043, 1.0
        %v4076 = vadd.f32 %v4044, 1.0
        %v4077 = vadd.f32 %v4045, 1.0
        %v4078 = vadd.f32 %v4046, 1.0
        %v4079 = vadd.f32 %v4047, 1.0
        %v4080 = vadd.f32 %v4048, 1.0
        %v4081 = vadd.f32 %v4049, 1.0
        %v4082 = vmul.f32 %v3826, %v4050
        %v4083 = vmul.f32 %v3827, %v4051
        %v4084 = vmul.f32 %v3828, %v4052
        %v4085 = vmul.f32 %v3829, %v4053
        %v4086 = vmul.f32 %v3830, %v4054
        %v4087 = vmul.f32 %v3831, %v4055
        %v4088 = vmul.f32 %v3832, %v4056
        %v4089 = vmul.f32 %v3833, %v4057
        %v4090 = vmul.f32 %v3834, %v4058
        %v4091 = vmul.f32 %v3835, %v4059
        %v4092 = vmul.f32 %v3836, %v4060
        %v4093 = vmul.f32 %v3837, %v4061
        %v4094 = vmul.f32 %v3838, %v4062
        %v4095 = vmul.f32 %v3839, %v4063
        %v4096 = vmul.f32 %v3840, %v4064
        %v4097 = vmul.f32 %v3841, %v4065
        %v4098 = vmul.f32 %v3842, %v4066
        %v4099 = vmul.f32 %v3843, %v4067
        %v4100 = vmul.f32 %v3844, %v4068
        %v4101 = vmul.f32 %v3845, %v4069
        %v4102 = vmul.f32 %v3846, %v4070
        %v4103 = vmul.f32 %v3847, %v4071
        %v4104 = vmul.f32 %v3848, %v4072
        %v4105 = vmul.f32 %v3849, %v4073
        %v4106 = vmul.f32 %v3850, %v4074
        %v4107 = vmul.f32 %v3851, %v4075
        %v4108 = vmul.f32 %v3852, %v4076
        %v4109 = vmul.f32 %v3853, %v4077
        %v4110 = vmul.f32 %v3854, %v4078
        %v4111 = vmul.f32 %v3855, %v4079
        %v4112 = vmul.f32 %v3856, %v4080
        %v4113 = vmul.f32 %v3857, %v4081
        %v4114 = vmul.f32 %v4082, %v3474
        %v4115 = vmul.f32 %v4083, %v3475
        %v4116 = vmul.f32 %v4084, %v3476
        %v4117 = vmul.f32 %v4085, %v3477
        %v4118 = vmul.f32 %v4086, %v3478
        %v4119 = vmul.f32 %v4087, %v3479
        %v4120 = vmul.f32 %v4088, %v3480
        %v4121 = vmul.f32 %v4089, %v3481
        %v4122 = vmul.f32 %v4090, %v3482
        %v4123 = vmul.f32 %v4091, %v3483
        %v4124 = vmul.f32 %v4092, %v3484
        %v4125 = vmul.f32 %v4093, %v3485
        %v4126 = vmul.f32 %v4094, %v3486
        %v4127 = vmul.f32 %v4095, %v3487
        %v4128 = vmul.f32 %v4096, %v3488
        %v4129 = vmul.f32 %v4097, %v3489
        %v4130 = vmul.f32 %v4098, %v3490
        %v4131 = vmul.f32 %v4099, %v3491
        %v4132 = vmul.f32 %v4100, %v3492
        %v4133 = vmul.f32 %v4101, %v3493
        %v4134 = vmul.f32 %v4102, %v3494
        %v4135 = vmul.f32 %v4103, %v3495
        %v4136 = vmul.f32 %v4104, %v3496
        %v4137 = vmul.f32 %v4105, %v3497
        %v4138 = vmul.f32 %v4106, %v3498
        %v4139 = vmul.f32 %v4107, %v3499
        %v4140 = vmul.f32 %v4108, %v3500
        %v4141 = vmul.f32 %v4109, %v3501
        %v4142 = vmul.f32 %v4110, %v3502
        %v4143 = vmul.f32 %v4111, %v3503
        %v4144 = vmul.f32 %v4112, %v3504
        %v4145 = vmul.f32 %v4113, %v3505
        %v4146 = vpack.c.bf16 %v3795, %v3794
        %v4147 = vpack.c.bf16 %v3797, %v3796
        %v4148 = vpack.c.bf16 %v3799, %v3798
        %v4149 = vpack.c.bf16 %v3801, %v3800
        %v4150 = vpack.c.bf16 %v3803, %v3802
        %v4151 = vpack.c.bf16 %v3805, %v3804
        %v4152 = vpack.c.bf16 %v3807, %v3806
        %v4153 = vpack.c.bf16 %v3809, %v3808
        %v4154 = vpack.c.bf16 %v3811, %v3810
        %v4155 = vpack.c.bf16 %v3813, %v3812
        %v4156 = vpack.c.bf16 %v3815, %v3814
        %v4157 = vpack.c.bf16 %v3817, %v3816
        %v4158 = vpack.c.bf16 %v3819, %v3818
        %v4159 = vpack.c.bf16 %v3821, %v3820
        %v4160 = vpack.c.bf16 %v3823, %v3822
        %v4161 = vpack.c.bf16 %v3825, %v3824
        %v4162 = vld [vmem:[#allocation12] sm:$0xf]
        %v4163 = vld [vmem:[#allocation12 + $0x4] sm:$0xf]
        %v4164 = vld [vmem:[#allocation12 + $0x8] sm:$0xf]
        %v4165 = vld [vmem:[#allocation12 + $0xc] sm:$0xf]
        %v4166 = vld [vmem:[#allocation12 + $0x10] sm:$0xf]
        %v4167 = vld [vmem:[#allocation12 + $0x14] sm:$0xf]
        %v4168 = vld [vmem:[#allocation12 + $0x18] sm:$0xf]
        %v4169 = vld [vmem:[#allocation12 + $0x1c] sm:$0xf]
        %v4170 = vld [vmem:[#allocation12 + $0x20] sm:$0xf]
        %v4171 = vld [vmem:[#allocation12 + $0x24] sm:$0xf]
        %v4172 = vld [vmem:[#allocation12 + $0x28] sm:$0xf]
        %v4173 = vld [vmem:[#allocation12 + $0x2c] sm:$0xf]
        %v4174 = vld [vmem:[#allocation12 + $0x30] sm:$0xf]
        %v4175 = vld [vmem:[#allocation12 + $0x34] sm:$0xf]
        %v4176 = vld [vmem:[#allocation12 + $0x38] sm:$0xf]
        %v4177 = vld [vmem:[#allocation12 + $0x3c] sm:$0xf]
        %v4178 = vpack.c.bf16 %v4115, %v4114
        %v4179 = vpack.c.bf16 %v4117, %v4116
        %v4180 = vpack.c.bf16 %v4119, %v4118
        %v4181 = vpack.c.bf16 %v4121, %v4120
        %v4182 = vpack.c.bf16 %v4123, %v4122
        %v4183 = vpack.c.bf16 %v4125, %v4124
        %v4184 = vpack.c.bf16 %v4127, %v4126
        %v4185 = vpack.c.bf16 %v4129, %v4128
        %v4186 = vpack.c.bf16 %v4131, %v4130
        %v4187 = vpack.c.bf16 %v4133, %v4132
        %v4188 = vpack.c.bf16 %v4135, %v4134
        %v4189 = vpack.c.bf16 %v4137, %v4136
        %v4190 = vpack.c.bf16 %v4139, %v4138
        %v4191 = vpack.c.bf16 %v4141, %v4140
        %v4192 = vpack.c.bf16 %v4143, %v4142
        %v4193 = vpack.c.bf16 %v4145, %v4144
        %v4194 = vld [vmem:[#allocation13] sm:$0xf]
        %v4195 = vld [vmem:[#allocation13 + $0x4] sm:$0xf]
        %v4196 = vld [vmem:[#allocation13 + $0x8] sm:$0xf]
        %v4197 = vld [vmem:[#allocation13 + $0xc] sm:$0xf]
        %v4198 = vld [vmem:[#allocation13 + $0x10] sm:$0xf]
        %v4199 = vld [vmem:[#allocation13 + $0x14] sm:$0xf]
        %v4200 = vld [vmem:[#allocation13 + $0x18] sm:$0xf]
        %v4201 = vld [vmem:[#allocation13 + $0x1c] sm:$0xf]
        %v4202 = vld [vmem:[#allocation13 + $0x20] sm:$0xf]
        %v4203 = vld [vmem:[#allocation13 + $0x24] sm:$0xf]
        %v4204 = vld [vmem:[#allocation13 + $0x28] sm:$0xf]
        %v4205 = vld [vmem:[#allocation13 + $0x2c] sm:$0xf]
        %v4206 = vld [vmem:[#allocation13 + $0x30] sm:$0xf]
        %v4207 = vld [vmem:[#allocation13 + $0x34] sm:$0xf]
        %v4208 = vld [vmem:[#allocation13 + $0x38] sm:$0xf]
        %v4209 = vld [vmem:[#allocation13 + $0x3c] sm:$0xf]
        %v4226 = vunpack.c.l.b16 %v4194
        %v4227 = vunpack.c.l.b16 %v4195
        %v4228 = vunpack.c.l.b16 %v4196
        %v4229 = vunpack.c.l.b16 %v4197
        %v4230 = vunpack.c.l.b16 %v4198
        %v4231 = vunpack.c.l.b16 %v4199
        %v4232 = vunpack.c.l.b16 %v4200
        %v4233 = vunpack.c.l.b16 %v4201
        %v4234 = vunpack.c.l.b16 %v4202
        %v4235 = vunpack.c.l.b16 %v4203
        %v4236 = vunpack.c.l.b16 %v4204
        %v4237 = vunpack.c.l.b16 %v4205
        %v4238 = vunpack.c.l.b16 %v4206
        %v4239 = vunpack.c.l.b16 %v4207
        %v4240 = vunpack.c.l.b16 %v4208
        %v4241 = vunpack.c.l.b16 %v4209
        %v4242 = vpack.c.b16 %v4227, %v4226
        %v4243 = vpack.c.b16 %v4229, %v4228
        %v4244 = vpack.c.b16 %v4231, %v4230
        %v4245 = vpack.c.b16 %v4233, %v4232
        %v4246 = vpack.c.b16 %v4235, %v4234
        %v4247 = vpack.c.b16 %v4237, %v4236
        %v4248 = vpack.c.b16 %v4239, %v4238
        %v4249 = vpack.c.b16 %v4241, %v4240
        %4258 = vmatprep.subr.bf16.mxu0 0
        %4259 = vmatpush1.bf16.msra.mxu0 %v4242
        %4260 = vmatprep.subr.bf16.mxu0 0
        %4261 = vmatpush1.bf16.msra.mxu0 %v4243
        %4262 = vmatprep.subr.bf16.mxu0 0
        %4263 = vmatpush1.bf16.msra.mxu0 %v4244
        %4264 = vmatprep.subr.bf16.mxu0 0
        %4265 = vmatpush1.bf16.msra.mxu0 %v4245
        %4266 = vmatprep.subr.bf16.mxu0 0
        %4267 = vmatpush1.bf16.msra.mxu0 %v4246
        %4268 = vmatprep.subr.bf16.mxu0 0
        %4269 = vmatpush1.bf16.msra.mxu0 %v4247
        %4270 = vmatprep.subr.bf16.mxu0 0
        %4271 = vmatpush1.bf16.msra.mxu0 %v4248
        %4272 = vmatprep.subr.bf16.mxu0 0
        %4273 = vmatpush1.bf16.msra.mxu0 %v4249
        %4274 = vmatprep.subr.bf16.mxu0 0
        %4275 = vmatpush1.bf16.msra.mxu0 0
        %4276 = vmatprep.subr.bf16.mxu0 0
        %4277 = vmatpush1.bf16.msra.mxu0 0
        %4278 = vmatprep.subr.bf16.mxu0 0
        %4279 = vmatpush1.bf16.msra.mxu0 0
        %4280 = vmatprep.subr.bf16.mxu0 0
        %4281 = vmatpush1.bf16.msra.mxu0 0
        %4282 = vmatprep.subr.bf16.mxu0 0
        %4283 = vmatpush1.bf16.msra.mxu0 0
        %4284 = vmatprep.subr.bf16.mxu0 0
        %4285 = vmatpush1.bf16.msra.mxu0 0
        %4286 = vmatprep.subr.bf16.mxu0 0
        %4287 = vmatpush1.bf16.msra.mxu0 0
        %4288 = vmatprep.subr.bf16.mxu0 0
        %4289 = vmatpush1.bf16.msra.mxu0 0
        %4290 = vmatprep.mubr.bf16.mxu0 0
        %4291 = vmatmul.mubr.bf16.gmra.mrb[0].mxu0 %v4178
        %v4292 = vpop.f32.mrb[0].mxu0
        %v4293 = vadd.f32 0.0, %v4292
        %v4294 = vpop.f32.mrb[0].mxu0
        %v4295 = vpop.f32.mrb[0].mxu0
        %v4296 = vadd.f32 0.0, %v4295
        %v4297 = vpop.f32.mrb[0].mxu0
        %4298 = vmatprep.mubr.bf16.mxu0 0
        %4299 = vmatmul.mubr.bf16.gmra.mrb[0].mxu0 %v4179
        %v4300 = vpop.f32.mrb[0].mxu0
        %v4301 = vadd.f32 0.0, %v4300
        %v4302 = vpop.f32.mrb[0].mxu0
        %v4303 = vpop.f32.mrb[0].mxu0
        %v4304 = vadd.f32 0.0, %v4303
        %v4305 = vpop.f32.mrb[0].mxu0
        %4306 = vmatprep.mubr.bf16.mxu0 0
        %4307 = vmatmul.mubr.bf16.gmra.mrb[0].mxu0 %v4180
        %v4308 = vpop.f32.mrb[0].mxu0
        %v4309 = vadd.f32 0.0, %v4308
        %v4310 = vpop.f32.mrb[0].mxu0
        %v4311 = vpop.f32.mrb[0].mxu0
        %v4312 = vadd.f32 0.0, %v4311
        %v4313 = vpop.f32.mrb[0].mxu0
        %4314 = vmatprep.mubr.bf16.mxu0 0
        %4315 = vmatmul.mubr.bf16.gmra.mrb[0].mxu0 %v4181
        %v4316 = vpop.f32.mrb[0].mxu0
        %v4317 = vadd.f32 0.0, %v4316
        %v4318 = vpop.f32.mrb[0].mxu0
        %v4319 = vpop.f32.mrb[0].mxu0
        %v4320 = vadd.f32 0.0, %v4319
        %v4321 = vpop.f32.mrb[0].mxu0
        %4322 = vmatprep.mubr.bf16.mxu0 0
        %4323 = vmatmul.mubr.bf16.gmra.mrb[0].mxu0 %v4182
        %v4324 = vpop.f32.mrb[0].mxu0
        %v4325 = vadd.f32 0.0, %v4324
        %v4326 = vpop.f32.mrb[0].mxu0
        %v4327 = vpop.f32.mrb[0].mxu0
        %v4328 = vadd.f32 0.0, %v4327
        %v4329 = vpop.f32.mrb[0].mxu0
        %4330 = vmatprep.mubr.bf16.mxu0 0
        %4331 = vmatmul.mubr.bf16.gmra.mrb[0].mxu0 %v4183
        %v4332 = vpop.f32.mrb[0].mxu0
        %v4333 = vadd.f32 0.0, %v4332
        %v4334 = vpop.f32.mrb[0].mxu0
        %v4335 = vpop.f32.mrb[0].mxu0
        %v4336 = vadd.f32 0.0, %v4335
        %v4337 = vpop.f32.mrb[0].mxu0
        %4338 = vmatprep.mubr.bf16.mxu0 0
        %4339 = vmatmul.mubr.bf16.gmra.mrb[0].mxu0 %v4184
        %v4340 = vpop.f32.mrb[0].mxu0
        %v4341 = vadd.f32 0.0, %v4340
        %v4342 = vpop.f32.mrb[0].mxu0
        %v4343 = vpop.f32.mrb[0].mxu0
        %v4344 = vadd.f32 0.0, %v4343
        %v4345 = vpop.f32.mrb[0].mxu0
        %4346 = vmatprep.mubr.bf16.mxu0 0
        %4347 = vmatmul.mubr.bf16.gmra.mrb[0].mxu0 %v4185
        %v4348 = vpop.f32.mrb[0].mxu0
        %v4349 = vadd.f32 0.0, %v4348
        %v4350 = vpop.f32.mrb[0].mxu0
        %v4351 = vpop.f32.mrb[0].mxu0
        %v4352 = vadd.f32 0.0, %v4351
        %v4353 = vpop.f32.mrb[0].mxu0
        %4354 = vmatprep.mubr.bf16.mxu0 0
        %4355 = vmatmul.mubr.bf16.gmra.mrb[0].mxu0 %v4186
        %v4356 = vpop.f32.mrb[0].mxu0
        %v4357 = vadd.f32 0.0, %v4356
        %v4358 = vpop.f32.mrb[0].mxu0
        %v4359 = vpop.f32.mrb[0].mxu0
        %v4360 = vadd.f32 0.0, %v4359
        %v4361 = vpop.f32.mrb[0].mxu0
        %4362 = vmatprep.mubr.bf16.mxu0 0
        %4363 = vmatmul.mubr.bf16.gmra.mrb[0].mxu0 %v4187
        %v4364 = vpop.f32.mrb[0].mxu0
        %v4365 = vadd.f32 0.0, %v4364
        %v4366 = vpop.f32.mrb[0].mxu0
        %v4367 = vpop.f32.mrb[0].mxu0
        %v4368 = vadd.f32 0.0, %v4367
        %v4369 = vpop.f32.mrb[0].mxu0
        %4370 = vmatprep.mubr.bf16.mxu0 0
        %4371 = vmatmul.mubr.bf16.gmra.mrb[0].mxu0 %v4188
        %v4372 = vpop.f32.mrb[0].mxu0
        %v4373 = vadd.f32 0.0, %v4372
        %v4374 = vpop.f32.mrb[0].mxu0
        %v4375 = vpop.f32.mrb[0].mxu0
        %v4376 = vadd.f32 0.0, %v4375
        %v4377 = vpop.f32.mrb[0].mxu0
        %4378 = vmatprep.mubr.bf16.mxu0 0
        %4379 = vmatmul.mubr.bf16.gmra.mrb[0].mxu0 %v4189
        %v4380 = vpop.f32.mrb[0].mxu0
        %v4381 = vadd.f32 0.0, %v4380
        %v4382 = vpop.f32.mrb[0].mxu0
        %v4383 = vpop.f32.mrb[0].mxu0
        %v4384 = vadd.f32 0.0, %v4383
        %v4385 = vpop.f32.mrb[0].mxu0
        %4386 = vmatprep.mubr.bf16.mxu0 0
        %4387 = vmatmul.mubr.bf16.gmra.mrb[0].mxu0 %v4190
        %v4388 = vpop.f32.mrb[0].mxu0
        %v4389 = vadd.f32 0.0, %v4388
        %v4390 = vpop.f32.mrb[0].mxu0
        %v4391 = vpop.f32.mrb[0].mxu0
        %v4392 = vadd.f32 0.0, %v4391
        %v4393 = vpop.f32.mrb[0].mxu0
        %4394 = vmatprep.mubr.bf16.mxu0 0
        %4395 = vmatmul.mubr.bf16.gmra.mrb[0].mxu0 %v4191
        %v4396 = vpop.f32.mrb[0].mxu0
        %v4397 = vadd.f32 0.0, %v4396
        %v4398 = vpop.f32.mrb[0].mxu0
        %v4399 = vpop.f32.mrb[0].mxu0
        %v4400 = vadd.f32 0.0, %v4399
        %v4401 = vpop.f32.mrb[0].mxu0
        %4402 = vmatprep.mubr.bf16.mxu0 0
        %4403 = vmatmul.mubr.bf16.gmra.mrb[0].mxu0 %v4192
        %v4404 = vpop.f32.mrb[0].mxu0
        %v4405 = vadd.f32 0.0, %v4404
        %v4406 = vpop.f32.mrb[0].mxu0
        %v4407 = vpop.f32.mrb[0].mxu0
        %v4408 = vadd.f32 0.0, %v4407
        %v4409 = vpop.f32.mrb[0].mxu0
        %4410 = vmatprep.mubr.bf16.mxu0 0
        %4411 = vmatmul.mubr.bf16.gmra.mrb[0].mxu0 %v4193
        %v4412 = vpop.f32.mrb[0].mxu0
        %v4413 = vadd.f32 0.0, %v4412
        %v4414 = vpop.f32.mrb[0].mxu0
        %v4415 = vpop.f32.mrb[0].mxu0
        %v4416 = vadd.f32 0.0, %v4415
        %v4417 = vpop.f32.mrb[0].mxu0
        %4418 = vdwg.mxu0
        %v4435 = vunpack.c.l.b16 %v4162
        %v4436 = vunpack.c.l.b16 %v4163
        %v4437 = vunpack.c.l.b16 %v4164
        %v4438 = vunpack.c.l.b16 %v4165
        %v4439 = vunpack.c.l.b16 %v4166
        %v4440 = vunpack.c.l.b16 %v4167
        %v4441 = vunpack.c.l.b16 %v4168
        %v4442 = vunpack.c.l.b16 %v4169
        %v4443 = vunpack.c.l.b16 %v4170
        %v4444 = vunpack.c.l.b16 %v4171
        %v4445 = vunpack.c.l.b16 %v4172
        %v4446 = vunpack.c.l.b16 %v4173
        %v4447 = vunpack.c.l.b16 %v4174
        %v4448 = vunpack.c.l.b16 %v4175
        %v4449 = vunpack.c.l.b16 %v4176
        %v4450 = vunpack.c.l.b16 %v4177
        %v4451 = vpack.c.b16 %v4436, %v4435
        %v4452 = vpack.c.b16 %v4438, %v4437
        %v4453 = vpack.c.b16 %v4440, %v4439
        %v4454 = vpack.c.b16 %v4442, %v4441
        %v4455 = vpack.c.b16 %v4444, %v4443
        %v4456 = vpack.c.b16 %v4446, %v4445
        %v4457 = vpack.c.b16 %v4448, %v4447
        %v4458 = vpack.c.b16 %v4450, %v4449
        %4467 = vmatprep.subr.bf16.mxu0 0
        %4468 = vmatpush1.bf16.msra.mxu0 %v4451
        %4469 = vmatprep.subr.bf16.mxu0 0
        %4470 = vmatpush1.bf16.msra.mxu0 %v4452
        %4471 = vmatprep.subr.bf16.mxu0 0
        %4472 = vmatpush1.bf16.msra.mxu0 %v4453
        %4473 = vmatprep.subr.bf16.mxu0 0
        %4474 = vmatpush1.bf16.msra.mxu0 %v4454
        %4475 = vmatprep.subr.bf16.mxu0 0
        %4476 = vmatpush1.bf16.msra.mxu0 %v4455
        %4477 = vmatprep.subr.bf16.mxu0 0
        %4478 = vmatpush1.bf16.msra.mxu0 %v4456
        %4479 = vmatprep.subr.bf16.mxu0 0
        %4480 = vmatpush1.bf16.msra.mxu0 %v4457
        %4481 = vmatprep.subr.bf16.mxu0 0
        %4482 = vmatpush1.bf16.msra.mxu0 %v4458
        %4483 = vmatprep.subr.bf16.mxu0 0
        %4484 = vmatpush1.bf16.msra.mxu0 0
        %4485 = vmatprep.subr.bf16.mxu0 0
        %4486 = vmatpush1.bf16.msra.mxu0 0
        %4487 = vmatprep.subr.bf16.mxu0 0
        %4488 = vmatpush1.bf16.msra.mxu0 0
        %4489 = vmatprep.subr.bf16.mxu0 0
        %4490 = vmatpush1.bf16.msra.mxu0 0
        %4491 = vmatprep.subr.bf16.mxu0 0
        %4492 = vmatpush1.bf16.msra.mxu0 0
        %4493 = vmatprep.subr.bf16.mxu0 0
        %4494 = vmatpush1.bf16.msra.mxu0 0
        %4495 = vmatprep.subr.bf16.mxu0 0
        %4496 = vmatpush1.bf16.msra.mxu0 0
        %4497 = vmatprep.subr.bf16.mxu0 0
        %4498 = vmatpush1.bf16.msra.mxu0 0
        %4499 = vmatprep.mubr.bf16.mxu0 0
        %4500 = vmatmul.mubr.bf16.gmra.mrb[0].mxu0 %v4146
        %v4501 = vpop.f32.mrb[0].mxu0
        %v4502 = vadd.f32 %v4293, %v4501
        %v4503 = vpop.f32.mrb[0].mxu0
        %v4504 = vpop.f32.mrb[0].mxu0
        %v4505 = vadd.f32 %v4296, %v4504
        %v4506 = vpop.f32.mrb[0].mxu0
        %4507 = vmatprep.mubr.bf16.mxu0 0
        %4508 = vmatmul.mubr.bf16.gmra.mrb[0].mxu0 %v4147
        %v4509 = vpop.f32.mrb[0].mxu0
        %v4510 = vadd.f32 %v4301, %v4509
        %v4511 = vpop.f32.mrb[0].mxu0
        %v4512 = vpop.f32.mrb[0].mxu0
        %v4513 = vadd.f32 %v4304, %v4512
        %v4514 = vpop.f32.mrb[0].mxu0
        %4515 = vmatprep.mubr.bf16.mxu0 0
        %4516 = vmatmul.mubr.bf16.gmra.mrb[0].mxu0 %v4148
        %v4517 = vpop.f32.mrb[0].mxu0
        %v4518 = vadd.f32 %v4309, %v4517
        %v4519 = vpop.f32.mrb[0].mxu0
        %v4520 = vpop.f32.mrb[0].mxu0
        %v4521 = vadd.f32 %v4312, %v4520
        %v4522 = vpop.f32.mrb[0].mxu0
        %4523 = vmatprep.mubr.bf16.mxu0 0
        %4524 = vmatmul.mubr.bf16.gmra.mrb[0].mxu0 %v4149
        %v4525 = vpop.f32.mrb[0].mxu0
        %v4526 = vadd.f32 %v4317, %v4525
        %v4527 = vpop.f32.mrb[0].mxu0
        %v4528 = vpop.f32.mrb[0].mxu0
        %v4529 = vadd.f32 %v4320, %v4528
        %v4530 = vpop.f32.mrb[0].mxu0
        %4531 = vmatprep.mubr.bf16.mxu0 0
        %4532 = vmatmul.mubr.bf16.gmra.mrb[0].mxu0 %v4150
        %v4533 = vpop.f32.mrb[0].mxu0
        %v4534 = vadd.f32 %v4325, %v4533
        %v4535 = vpop.f32.mrb[0].mxu0
        %v4536 = vpop.f32.mrb[0].mxu0
        %v4537 = vadd.f32 %v4328, %v4536
        %v4538 = vpop.f32.mrb[0].mxu0
        %4539 = vmatprep.mubr.bf16.mxu0 0
        %4540 = vmatmul.mubr.bf16.gmra.mrb[0].mxu0 %v4151
        %v4541 = vpop.f32.mrb[0].mxu0
        %v4542 = vadd.f32 %v4333, %v4541
        %v4543 = vpop.f32.mrb[0].mxu0
        %v4544 = vpop.f32.mrb[0].mxu0
        %v4545 = vadd.f32 %v4336, %v4544
        %v4546 = vpop.f32.mrb[0].mxu0
        %4547 = vmatprep.mubr.bf16.mxu0 0
        %4548 = vmatmul.mubr.bf16.gmra.mrb[0].mxu0 %v4152
        %v4549 = vpop.f32.mrb[0].mxu0
        %v4550 = vadd.f32 %v4341, %v4549
        %v4551 = vpop.f32.mrb[0].mxu0
        %v4552 = vpop.f32.mrb[0].mxu0
        %v4553 = vadd.f32 %v4344, %v4552
        %v4554 = vpop.f32.mrb[0].mxu0
        %4555 = vmatprep.mubr.bf16.mxu0 0
        %4556 = vmatmul.mubr.bf16.gmra.mrb[0].mxu0 %v4153
        %v4557 = vpop.f32.mrb[0].mxu0
        %v4558 = vadd.f32 %v4349, %v4557
        %v4559 = vpop.f32.mrb[0].mxu0
        %v4560 = vpop.f32.mrb[0].mxu0
        %v4561 = vadd.f32 %v4352, %v4560
        %v4562 = vpop.f32.mrb[0].mxu0
        %4563 = vmatprep.mubr.bf16.mxu0 0
        %4564 = vmatmul.mubr.bf16.gmra.mrb[0].mxu0 %v4154
        %v4565 = vpop.f32.mrb[0].mxu0
        %v4566 = vadd.f32 %v4357, %v4565
        %v4567 = vpop.f32.mrb[0].mxu0
        %v4568 = vpop.f32.mrb[0].mxu0
        %v4569 = vadd.f32 %v4360, %v4568
        %v4570 = vpop.f32.mrb[0].mxu0
        %4571 = vmatprep.mubr.bf16.mxu0 0
        %4572 = vmatmul.mubr.bf16.gmra.mrb[0].mxu0 %v4155
        %v4573 = vpop.f32.mrb[0].mxu0
        %v4574 = vadd.f32 %v4365, %v4573
        %v4575 = vpop.f32.mrb[0].mxu0
        %v4576 = vpop.f32.mrb[0].mxu0
        %v4577 = vadd.f32 %v4368, %v4576
        %v4578 = vpop.f32.mrb[0].mxu0
        %4579 = vmatprep.mubr.bf16.mxu0 0
        %4580 = vmatmul.mubr.bf16.gmra.mrb[0].mxu0 %v4156
        %v4581 = vpop.f32.mrb[0].mxu0
        %v4582 = vadd.f32 %v4373, %v4581
        %v4583 = vpop.f32.mrb[0].mxu0
        %v4584 = vpop.f32.mrb[0].mxu0
        %v4585 = vadd.f32 %v4376, %v4584
        %v4586 = vpop.f32.mrb[0].mxu0
        %4587 = vmatprep.mubr.bf16.mxu0 0
        %4588 = vmatmul.mubr.bf16.gmra.mrb[0].mxu0 %v4157
        %v4589 = vpop.f32.mrb[0].mxu0
        %v4590 = vadd.f32 %v4381, %v4589
        %v4591 = vpop.f32.mrb[0].mxu0
        %v4592 = vpop.f32.mrb[0].mxu0
        %v4593 = vadd.f32 %v4384, %v4592
        %v4594 = vpop.f32.mrb[0].mxu0
        %4595 = vmatprep.mubr.bf16.mxu0 0
        %4596 = vmatmul.mubr.bf16.gmra.mrb[0].mxu0 %v4158
        %v4597 = vpop.f32.mrb[0].mxu0
        %v4598 = vadd.f32 %v4389, %v4597
        %v4599 = vpop.f32.mrb[0].mxu0
        %v4600 = vpop.f32.mrb[0].mxu0
        %v4601 = vadd.f32 %v4392, %v4600
        %v4602 = vpop.f32.mrb[0].mxu0
        %4603 = vmatprep.mubr.bf16.mxu0 0
        %4604 = vmatmul.mubr.bf16.gmra.mrb[0].mxu0 %v4159
        %v4605 = vpop.f32.mrb[0].mxu0
        %v4606 = vadd.f32 %v4397, %v4605
        %v4607 = vpop.f32.mrb[0].mxu0
        %v4608 = vpop.f32.mrb[0].mxu0
        %v4609 = vadd.f32 %v4400, %v4608
        %v4610 = vpop.f32.mrb[0].mxu0
        %4611 = vmatprep.mubr.bf16.mxu0 0
        %4612 = vmatmul.mubr.bf16.gmra.mrb[0].mxu0 %v4160
        %v4613 = vpop.f32.mrb[0].mxu0
        %v4614 = vadd.f32 %v4405, %v4613
        %v4615 = vpop.f32.mrb[0].mxu0
        %v4616 = vpop.f32.mrb[0].mxu0
        %v4617 = vadd.f32 %v4408, %v4616
        %v4618 = vpop.f32.mrb[0].mxu0
        %4619 = vmatprep.mubr.bf16.mxu0 0
        %4620 = vmatmul.mubr.bf16.gmra.mrb[0].mxu0 %v4161
        %v4621 = vpop.f32.mrb[0].mxu0
        %v4622 = vadd.f32 %v4413, %v4621
        %v4623 = vpop.f32.mrb[0].mxu0
        %v4624 = vpop.f32.mrb[0].mxu0
        %v4625 = vadd.f32 %v4416, %v4624
        %v4626 = vpop.f32.mrb[0].mxu0
        %4627 = vdwg.mxu0
        %v4628 = vld [vmem:[%s11] sm:$0x1]
        %v4630 = vlaneseq
        %v4631 = vshrl.u32 %v4630, 7
        %v4632 = vsub.s32 0, %v4631
        %v4633 = vrot.slane %v4628, %v4632
        %v4635 = vadd.f32 %v4502, %v4633
        %v4636 = vadd.f32 %v4505, %v4633
        %v4637 = vadd.f32 %v4510, %v4633
        %v4638 = vadd.f32 %v4513, %v4633
        %v4639 = vadd.f32 %v4518, %v4633
        %v4640 = vadd.f32 %v4521, %v4633
        %v4641 = vadd.f32 %v4526, %v4633
        %v4642 = vadd.f32 %v4529, %v4633
        %v4643 = vadd.f32 %v4534, %v4633
        %v4644 = vadd.f32 %v4537, %v4633
        %v4645 = vadd.f32 %v4542, %v4633
        %v4646 = vadd.f32 %v4545, %v4633
        %v4647 = vadd.f32 %v4550, %v4633
        %v4648 = vadd.f32 %v4553, %v4633
        %v4649 = vadd.f32 %v4558, %v4633
        %v4650 = vadd.f32 %v4561, %v4633
        %v4651 = vadd.f32 %v4566, %v4633
        %v4652 = vadd.f32 %v4569, %v4633
        %v4653 = vadd.f32 %v4574, %v4633
        %v4654 = vadd.f32 %v4577, %v4633
        %v4655 = vadd.f32 %v4582, %v4633
        %v4656 = vadd.f32 %v4585, %v4633
        %v4657 = vadd.f32 %v4590, %v4633
        %v4658 = vadd.f32 %v4593, %v4633
        %v4659 = vadd.f32 %v4598, %v4633
        %v4660 = vadd.f32 %v4601, %v4633
        %v4661 = vadd.f32 %v4606, %v4633
        %v4662 = vadd.f32 %v4609, %v4633
        %v4663 = vadd.f32 %v4614, %v4633
        %v4664 = vadd.f32 %v4617, %v4633
        %v4665 = vadd.f32 %v4622, %v4633
        %v4666 = vadd.f32 %v4625, %v4633
        %v4667 = vadd.f32 %v4635, %v530
        %v4668 = vadd.f32 %v4636, %v531
        %v4669 = vadd.f32 %v4637, %v532
        %v4670 = vadd.f32 %v4638, %v533
        %v4671 = vadd.f32 %v4639, %v534
        %v4672 = vadd.f32 %v4640, %v535
        %v4673 = vadd.f32 %v4641, %v536
        %v4674 = vadd.f32 %v4642, %v537
        %v4675 = vadd.f32 %v4643, %v538
        %v4676 = vadd.f32 %v4644, %v539
        %v4677 = vadd.f32 %v4645, %v540
        %v4678 = vadd.f32 %v4646, %v541
        %v4679 = vadd.f32 %v4647, %v542
        %v4680 = vadd.f32 %v4648, %v543
        %v4681 = vadd.f32 %v4649, %v544
        %v4682 = vadd.f32 %v4650, %v545
        %v4683 = vadd.f32 %v4651, %v546
        %v4684 = vadd.f32 %v4652, %v547
        %v4685 = vadd.f32 %v4653, %v548
        %v4686 = vadd.f32 %v4654, %v549
        %v4687 = vadd.f32 %v4655, %v550
        %v4688 = vadd.f32 %v4656, %v551
        %v4689 = vadd.f32 %v4657, %v552
        %v4690 = vadd.f32 %v4658, %v553
        %v4691 = vadd.f32 %v4659, %v554
        %v4692 = vadd.f32 %v4660, %v555
        %v4693 = vadd.f32 %v4661, %v556
        %v4694 = vadd.f32 %v4662, %v557
        %v4695 = vadd.f32 %v4663, %v558
        %v4696 = vadd.f32 %v4664, %v559
        %v4697 = vadd.f32 %v4665, %v560
        %v4698 = vadd.f32 %v4666, %v561
        %4699 = vst [vmem:[%s518] sm:$0xff] %v4667
        %4700 = vst [vmem:[%s518 + $0x8] sm:$0xff] %v4668
        %4701 = vst [vmem:[%s518 + $0x10] sm:$0xff] %v4669
        %4702 = vst [vmem:[%s518 + $0x18] sm:$0xff] %v4670
        %4703 = vst [vmem:[%s518 + $0x20] sm:$0xff] %v4671
        %4704 = vst [vmem:[%s518 + $0x28] sm:$0xff] %v4672
        %4705 = vst [vmem:[%s518 + $0x30] sm:$0xff] %v4673
        %4706 = vst [vmem:[%s518 + $0x38] sm:$0xff] %v4674
        %4707 = vst [vmem:[%s518 + $0x40] sm:$0xff] %v4675
        %4708 = vst [vmem:[%s518 + $0x48] sm:$0xff] %v4676
        %4709 = vst [vmem:[%s518 + $0x50] sm:$0xff] %v4677
        %4710 = vst [vmem:[%s518 + $0x58] sm:$0xff] %v4678
        %4711 = vst [vmem:[%s518 + $0x60] sm:$0xff] %v4679
        %4712 = vst [vmem:[%s518 + $0x68] sm:$0xff] %v4680
        %4713 = vst [vmem:[%s518 + $0x70] sm:$0xff] %v4681
        %4714 = vst [vmem:[%s518 + $0x78] sm:$0xff] %v4682
        %4715 = vst [vmem:[%s518 + $0x80] sm:$0xff] %v4683
        %4716 = vst [vmem:[%s518 + $0x88] sm:$0xff] %v4684
        %4717 = vst [vmem:[%s518 + $0x90] sm:$0xff] %v4685
        %4718 = vst [vmem:[%s518 + $0x98] sm:$0xff] %v4686
        %4719 = vst [vmem:[%s518 + $0xa0] sm:$0xff] %v4687
        %4720 = vst [vmem:[%s518 + $0xa8] sm:$0xff] %v4688
        %4721 = vst [vmem:[%s518 + $0xb0] sm:$0xff] %v4689
        %4722 = vst [vmem:[%s518 + $0xb8] sm:$0xff] %v4690
        %4723 = vst [vmem:[%s518 + $0xc0] sm:$0xff] %v4691
        %4724 = vst [vmem:[%s518 + $0xc8] sm:$0xff] %v4692
        %4725 = vst [vmem:[%s518 + $0xd0] sm:$0xff] %v4693
        %4726 = vst [vmem:[%s518 + $0xd8] sm:$0xff] %v4694
        %4727 = vst [vmem:[%s518 + $0xe0] sm:$0xff] %v4695
        %4728 = vst [vmem:[%s518 + $0xe8] sm:$0xff] %v4696
        %4729 = vst [vmem:[%s518 + $0xf0] sm:$0xff] %v4697
        %4730 = vst [vmem:[%s518 + $0xf8] sm:$0xff] %v4698
        %s4731 = sand.u32 %s311, 1
        %s4732 = scalar_lea.sflag [#allocation6], %s4731
        %s4733 = sand.u32 %s311, 1
        %s4734 = smul.addr %s4733, 256
        %s4735 = scalar_lea.vmem [#allocation15], %s4734
        // Predicated region
        $region100: #{tpu_custom_call.1} parent=67 // pred_check
          %p4736 = pneg %p321
        $region101: #{tpu_custom_call.1} parent=67 // pred_check_branch
          %4738 = sbr.rel (%p4736) target = $region103
        $region102: #{tpu_custom_call.1} parent=67 // pred_region
          %s4739 = smul.u32 16, %s37
          %s4741 = ssub.s32 4096, 4096
          %4742 = vsyncadd %s4732, %s4741
          %s4743 = smul.addr %s4739, 2
          %s4744 = smul.addr %s36, 32
          %s4745 = sadd.s32 %s4743, %s4744
          %s4746 = smul.addr %s4745, 128
          %s4747 = scalar_lea.hbm %s12, %s4746
          %s4748 = sshll.u32 %s4735, 4
          %s4749 = int_to_ptr.vmem [resolvable:$true] %s4748
          %4754 = dma.vmem_to_hbm [thread:$0]  %s4749, 4096, %s4747, %s4732, 128, 128, 8
        $region103: #{tpu_custom_call.1} parent=67 // pred_fallthru
          _
      $region68: #{tpu_custom_call.1} parent=5 // pred_fallthru
        _
      %p4755 = scmp.le.s32.totalorder 2, %s27
      // Predicated region
      $region104: #{tpu_custom_call.1} parent=5 // pred_check
        %p4756 = pneg %p4755
      $region105: #{tpu_custom_call.1} parent=5 // pred_check_branch
        %4758 = sbr.rel (%p4756) target = $region107
      $region106: #{tpu_custom_call.1} parent=5 // pred_region
        %s4759 = ssub.s32 %s27, 2
        // Predicated region
        $region108: #{tpu_custom_call.1} parent=106 // pred_check
          %p4760 = pneg %p327
        $region109: #{tpu_custom_call.1} parent=106 // pred_check_branch
          %4762 = sbr.rel (%p4760) target = $region111
        $region110: #{tpu_custom_call.1} parent=106 // pred_region
          %s4763 = sand.u32 %s312, 1
          %s4764 = scalar_lea.sflag [#allocation6], %s4763
          %s4765 = sand.u32 %s312, 1
          %s4766 = smul.addr %s4765, 256
          %s4767 = scalar_lea.vmem [#allocation15], %s4766
          %4768 = dma.done %s4764, 4096
        $region111: #{tpu_custom_call.1} parent=106 // pred_fallthru
          _
      $region107: #{tpu_custom_call.1} parent=5 // pred_fallthru
        _
    $region6: #{tpu_custom_call.1} parent=1 // loop_footer
      %s31 = sadd.s32 1, %s27
    $region7: #{tpu_custom_call.1} parent=1 // loop_footer_branch
      %26 = sbr.rel target = $region3
    $region8: #{tpu_custom_call.1} parent=1 // loop_exit
      _
    %4769 = vsyncpa [#allocation5], 1
    %s4770 = scalar_lea.sflag [#allocation5], 1
    %4771 = vsyncpa %s4770, 1
    %4772 = vsyncpa [#allocation8], 1
    %4773 = vsyncpa [#allocation11], 1
    %4774 = vsyncpa [#allocation14], 1
    %4775 = vsyncpa [#allocation6], 1
    %s4776 = scalar_lea.sflag [#allocation6], 1
    %4777 = vsyncpa %s4776, 1

</llo_original>
